<compile_context>
chip_gen: v7x
topology: tpu7x:2x2x1
jax: 0.10.0
libtpu: 0.0.40
codegen_flags: <defaults>
</compile_context>

<pallas_src>
import functools

import jax
import jax.numpy as jnp
from jax import lax
from jax.experimental import pallas as pl
from jax.experimental.pallas import tpu as pltpu


# ----------------------------- in-kernel helpers -----------------------------

_INV_SQRT2 = 0.7071067811865476


def _gelu_exact(x):
    # PyTorch nn.GELU() default = exact erf-based GELU.
    return 0.5 * x * (1.0 + lax.erf(x * _INV_SQRT2))


def _layernorm(x, gamma, beta, eps=1e-5):
    mean = jnp.mean(x, axis=-1, keepdims=True)
    var = jnp.mean((x - mean) ** 2, axis=-1, keepdims=True)
    return (x - mean) * lax.rsqrt(var + eps) * gamma + beta


# --------------------------------- kernel ------------------------------------

def deltawores_kernel(num_layers, steps,
                      x_ref,
                      proj_w_ref, proj_b_ref,
                      blk_down_ref, blk_up_ref, blk_g_ref, blk_b_ref,
                      cls_g_ref, cls_b_ref,
                      fc1_w_ref, fc1_b_ref,
                      fc2_w_ref, fc2_b_ref,
                      out_ref):
    x = x_ref[...]                                        # (TILE_B, IN_DIM)

    # feature_proj: Linear -> ReLU (-> Dropout: identity)
    h = jnp.dot(x, proj_w_ref[...], preferred_element_type=jnp.float32) + proj_b_ref[...]
    h = jnp.maximum(h, 0.0)

    # Stacked DeltaProductBlockNoResidual (statically unrolled; small counts).
    for layer in range(num_layers):
        state = h
        for s in range(steps):
            d = _gelu_exact(
                jnp.dot(state, blk_down_ref[layer, s],
                        preferred_element_type=jnp.float32))
            state = state + jnp.dot(d, blk_up_ref[layer, s],
                                    preferred_element_type=jnp.float32)
        # LayerNorm, NO residual connection (-> Dropout: identity)
        h = _layernorm(state, blk_g_ref[layer], blk_b_ref[layer])

    # Classifier: LayerNorm -> Linear -> ReLU -> (Dropout: identity) -> Linear.
    y = _layernorm(h, cls_g_ref[...], cls_b_ref[...])
    y = jnp.dot(y, fc1_w_ref[...], preferred_element_type=jnp.float32) + fc1_b_ref[...]
    y = jnp.maximum(y, 0.0)
    # fc2 is zero-padded to a lane-dense 128-wide output; real classes sliced outside.
    logits = jnp.dot(y, fc2_w_ref[...], preferred_element_type=jnp.float32) + fc2_b_ref[...]
    out_ref[...] = logits


# -------------------------------- wrapper -------------------------------------

def deltawores(x, params, *, num_layers, steps, num_classes, tile_b=128):
    B, in_dim = x.shape
    H = params["proj_w"].shape[1]
    fc_hidden = params["fc1_w"].shape[1]
    rank = params["blk_down"].shape[-1]
    assert B % tile_b == 0, "batch must be a multiple of the batch tile"

    # Lane-dense output: pad fc2 to 128 output columns with zeros.
    pad_out = max(128, num_classes)
    fc2_w_pad = jnp.zeros((fc_hidden, pad_out), jnp.float32).at[:, :num_classes].set(
        params["fc2_w"])
    fc2_b_pad = jnp.zeros((1, pad_out), jnp.float32).at[:, :num_classes].set(
        params["fc2_b"])

    inputs = (x,
              params["proj_w"], params["proj_b"],
              params["blk_down"], params["blk_up"],
              params["blk_gamma"], params["blk_beta"],
              params["cls_gamma"], params["cls_beta"],
              params["fc1_w"], params["fc1_b"],
              fc2_w_pad, fc2_b_pad)

    def const_spec(arr):
        # Weight / bias: full-array block, same block every grid step (VMEM-resident).
        nd = arr.ndim
        return pl.BlockSpec(arr.shape, lambda i, _nd=nd: (0,) * _nd)

    in_specs = [pl.BlockSpec((tile_b, in_dim), lambda i: (i, 0))]
    in_specs += [const_spec(a) for a in inputs[1:]]

    out_padded = pl.pallas_call(
        functools.partial(deltawores_kernel, num_layers, steps),
        out_shape=jax.ShapeDtypeStruct((B, pad_out), jnp.float32),
        grid=(B // tile_b,),
        in_specs=in_specs,
        out_specs=pl.BlockSpec((tile_b, pad_out), lambda i: (i, 0)),
        compiler_params=pltpu.CompilerParams(
            dimension_semantics=("parallel",),
            vmem_limit_bytes=32 * 1024 * 1024),
    )(*inputs)

    return out_padded[:, :num_classes]


# --------------------------- pure-JAX reference --------------------------------

def reference(x, p, *, num_layers, steps):
    def ln(v, g, b, eps=1e-5):
        m = v.mean(-1, keepdims=True)
        var = ((v - m) ** 2).mean(-1, keepdims=True)
        return (v - m) / jnp.sqrt(var + eps) * g + b

    h = jnp.maximum(x @ p["proj_w"] + p["proj_b"], 0.0)
    for li in range(num_layers):
        st = h
        for si in range(steps):
            d = st @ p["blk_down"][li, si]
            d = 0.5 * d * (1.0 + lax.erf(d / jnp.sqrt(2.0)))
            st = st + d @ p["blk_up"][li, si]
        h = ln(st, p["blk_gamma"][li], p["blk_beta"][li])
    y = ln(h, p["cls_gamma"], p["cls_beta"])
    y = jnp.maximum(y @ p["fc1_w"] + p["fc1_b"], 0.0)
    return y @ p["fc2_w"] + p["fc2_b"]


# ---------------------------------- main ---------------------------------------

if __name__ == "__main__":
    # Small, module-consistent shapes (scaled down from the 1280/256 defaults),
    # but with enough batch to exercise the batch grid (2 tiles of 128).
    B = 256
    TILE_B = 128
    IN_DIM = 256
    HIDDEN = 128
    RANK, STEPS = 4, 2
    NUM_LAYERS = 2
    FC_HIDDEN = 64
    NUM_CLASSES = 2

    key = jax.random.PRNGKey(0)
    ks = jax.random.split(key, 10)

    def init(k, shape, scale=0.05):
        return jax.random.normal(k, shape, dtype=jnp.float32) * scale

    params = {
        # feature_proj Linear(IN_DIM -> HIDDEN), stored (in, out).
        "proj_w": init(ks[0], (IN_DIM, HIDDEN)),
        "proj_b": init(ks[1], (1, HIDDEN)),
        # DeltaProductBlockNoResidual weights, stacked: (num_layers, steps, ...), no bias.
        "blk_down": init(ks[2], (NUM_LAYERS, STEPS, HIDDEN, RANK), scale=0.2),
        "blk_up": init(ks[3], (NUM_LAYERS, STEPS, RANK, HIDDEN), scale=0.2),
        "blk_gamma": jnp.ones((NUM_LAYERS, 1, HIDDEN), jnp.float32),
        "blk_beta": jnp.zeros((NUM_LAYERS, 1, HIDDEN), jnp.float32),
        # classifier
        "cls_gamma": jnp.ones((1, HIDDEN), jnp.float32),
        "cls_beta": jnp.zeros((1, HIDDEN), jnp.float32),
        "fc1_w": init(ks[4], (HIDDEN, FC_HIDDEN)),
        "fc1_b": init(ks[5], (1, FC_HIDDEN)),
        "fc2_w": init(ks[6], (FC_HIDDEN, NUM_CLASSES)),
        "fc2_b": init(ks[7], (1, NUM_CLASSES)),
    }

    x = jax.random.normal(ks[8], (B, IN_DIM), dtype=jnp.float32)

    logits = deltawores(x, params,
                        num_layers=NUM_LAYERS, steps=STEPS,
                        num_classes=NUM_CLASSES, tile_b=TILE_B)
    logits = jax.block_until_ready(logits)

    ref = reference(x, params, num_layers=NUM_LAYERS, steps=STEPS)
    assert logits.shape == (B, NUM_CLASSES)
    assert jnp.allclose(logits, ref, atol=1e-4, rtol=1e-4), (
        f"mismatch: max abs err {jnp.max(jnp.abs(logits - ref))}")

    print("KERNEL_OK")
</pallas_src>

<mosaic_0001>
module attributes {stable_mosaic.version = 11 : i64} {
  func.func @deltawores_kernel(%arg0: i32, %arg1: memref<128x256xf32, #tpu.memory_space<vmem>>, %arg2: memref<256x128xf32, #tpu.memory_space<vmem>>, %arg3: memref<1x128xf32, #tpu.memory_space<vmem>>, %arg4: memref<2x2x128x4xf32, #tpu.memory_space<vmem>>, %arg5: memref<2x2x4x128xf32, #tpu.memory_space<vmem>>, %arg6: memref<2x1x128xf32, #tpu.memory_space<vmem>>, %arg7: memref<2x1x128xf32, #tpu.memory_space<vmem>>, %arg8: memref<1x128xf32, #tpu.memory_space<vmem>>, %arg9: memref<1x128xf32, #tpu.memory_space<vmem>>, %arg10: memref<128x64xf32, #tpu.memory_space<vmem>>, %arg11: memref<1x64xf32, #tpu.memory_space<vmem>>, %arg12: memref<64x128xf32, #tpu.memory_space<vmem>>, %arg13: memref<1x128xf32, #tpu.memory_space<vmem>>, %arg14: memref<128x128xf32, #tpu.memory_space<vmem>>) attributes {dimension_semantics = [#tpu.dimension_semantics<parallel>], iteration_bounds = array<i64: 2>, scalar_prefetch = 0 : i64, scratch_operands = 0 : i64, tpu.core_type = #tpu.core_type<tc>, window_params = [{transform_indices = @transform_0, window_bounds = array<i64: 128, 256>}, {pipeline_mode = #tpu.pipeline_mode<synchronous>, transform_indices = @transform_1, window_bounds = array<i64: 256, 128>}, {pipeline_mode = #tpu.pipeline_mode<synchronous>, transform_indices = @transform_2, window_bounds = array<i64: 1, 128>}, {pipeline_mode = #tpu.pipeline_mode<synchronous>, transform_indices = @transform_3, window_bounds = array<i64: 2, 2, 128, 4>}, {pipeline_mode = #tpu.pipeline_mode<synchronous>, transform_indices = @transform_4, window_bounds = array<i64: 2, 2, 4, 128>}, {pipeline_mode = #tpu.pipeline_mode<synchronous>, transform_indices = @transform_5, window_bounds = array<i64: 2, 1, 128>}, {pipeline_mode = #tpu.pipeline_mode<synchronous>, transform_indices = @transform_6, window_bounds = array<i64: 2, 1, 128>}, {pipeline_mode = #tpu.pipeline_mode<synchronous>, transform_indices = @transform_7, window_bounds = array<i64: 1, 128>}, {pipeline_mode = #tpu.pipeline_mode<synchronous>, transform_indices = @transform_8, window_bounds = array<i64: 1, 128>}, {pipeline_mode = #tpu.pipeline_mode<synchronous>, transform_indices = @transform_9, window_bounds = array<i64: 128, 64>}, {pipeline_mode = #tpu.pipeline_mode<synchronous>, transform_indices = @transform_10, window_bounds = array<i64: 1, 64>}, {pipeline_mode = #tpu.pipeline_mode<synchronous>, transform_indices = @transform_11, window_bounds = array<i64: 64, 128>}, {pipeline_mode = #tpu.pipeline_mode<synchronous>, transform_indices = @transform_12, window_bounds = array<i64: 1, 128>}, {transform_indices = @transform_13, window_bounds = array<i64: 128, 128>}]} {
    %c0 = arith.constant 0 : index
    %c0_0 = arith.constant 0 : index
    %0 = vector.load %arg1[%c0, %c0_0] : memref<128x256xf32, #tpu.memory_space<vmem>>, vector<128x256xf32>
    %c0_1 = arith.constant 0 : index
    %c0_2 = arith.constant 0 : index
    %1 = vector.load %arg2[%c0_1, %c0_2] : memref<256x128xf32, #tpu.memory_space<vmem>>, vector<256x128xf32>
    %cst = arith.constant dense<0.000000e+00> : vector<128x128xf32>
    %2 = tpu.matmul %0, %1, %cst {dimension_numbers = #tpu.dot_dimension_numbers<[1], [0], [0], [1], [0, 0, 1, 1], [], []>} : vector<128x256xf32>, vector<256x128xf32>, vector<128x128xf32> -> vector<128x128xf32>
    %c0_3 = arith.constant 0 : index
    %c0_4 = arith.constant 0 : index
    %3 = vector.load %arg3[%c0_3, %c0_4] : memref<1x128xf32, #tpu.memory_space<vmem>>, vector<1x128xf32>
    %4 = vector.broadcast %3 : vector<1x128xf32> to vector<128x128xf32>
    %5 = arith.addf %2, %4 : vector<128x128xf32>
    %cst_5 = arith.constant 0.000000e+00 : f32
    %6 = vector.broadcast %cst_5 : f32 to vector<128x128xf32>
    %7 = arith.maximumf %5, %6 : vector<128x128xf32>
    %c0_6 = arith.constant 0 : index
    %c0_7 = arith.constant 0 : index
    %c0_8 = arith.constant 0 : index
    %c0_9 = arith.constant 0 : index
    %8 = vector.load %arg4[%c0_6, %c0_7, %c0_8, %c0_9] : memref<2x2x128x4xf32, #tpu.memory_space<vmem>>, vector<1x1x128x4xf32>
    %9 = vector.shape_cast %8 : vector<1x1x128x4xf32> to vector<128x4xf32>
    %cst_10 = arith.constant dense<0.000000e+00> : vector<128x4xf32>
    %10 = tpu.matmul %7, %9, %cst_10 {dimension_numbers = #tpu.dot_dimension_numbers<[1], [0], [0], [1], [0, 0, 1, 1], [], []>} : vector<128x128xf32>, vector<128x4xf32>, vector<128x4xf32> -> vector<128x4xf32>
    %cst_11 = arith.constant 5.000000e-01 : f32
    %11 = vector.broadcast %cst_11 : f32 to vector<128x4xf32>
    %12 = arith.mulf %11, %10 : vector<128x4xf32>
    %cst_12 = arith.constant 0.707106769 : f32
    %13 = vector.broadcast %cst_12 : f32 to vector<128x4xf32>
    %14 = arith.mulf %10, %13 : vector<128x4xf32>
    %15 = math.erf %14 : vector<128x4xf32>
    %cst_13 = arith.constant 1.000000e+00 : f32
    %16 = vector.broadcast %cst_13 : f32 to vector<128x4xf32>
    %17 = arith.addf %16, %15 : vector<128x4xf32>
    %18 = arith.mulf %12, %17 : vector<128x4xf32>
    %c0_14 = arith.constant 0 : index
    %c0_15 = arith.constant 0 : index
    %c0_16 = arith.constant 0 : index
    %c0_17 = arith.constant 0 : index
    %19 = vector.load %arg5[%c0_14, %c0_15, %c0_16, %c0_17] : memref<2x2x4x128xf32, #tpu.memory_space<vmem>>, vector<1x1x4x128xf32>
    %20 = vector.shape_cast %19 : vector<1x1x4x128xf32> to vector<4x128xf32>
    %cst_18 = arith.constant dense<0.000000e+00> : vector<128x128xf32>
    %21 = tpu.matmul %18, %20, %cst_18 {dimension_numbers = #tpu.dot_dimension_numbers<[1], [0], [0], [1], [0, 0, 1, 1], [], []>} : vector<128x4xf32>, vector<4x128xf32>, vector<128x128xf32> -> vector<128x128xf32>
    %22 = arith.addf %7, %21 : vector<128x128xf32>
    %c0_19 = arith.constant 0 : index
    %c1 = arith.constant 1 : index
    %c0_20 = arith.constant 0 : index
    %c0_21 = arith.constant 0 : index
    %23 = vector.load %arg4[%c0_19, %c1, %c0_20, %c0_21] : memref<2x2x128x4xf32, #tpu.memory_space<vmem>>, vector<1x1x128x4xf32>
    %24 = vector.shape_cast %23 : vector<1x1x128x4xf32> to vector<128x4xf32>
    %cst_22 = arith.constant dense<0.000000e+00> : vector<128x4xf32>
    %25 = tpu.matmul %22, %24, %cst_22 {dimension_numbers = #tpu.dot_dimension_numbers<[1], [0], [0], [1], [0, 0, 1, 1], [], []>} : vector<128x128xf32>, vector<128x4xf32>, vector<128x4xf32> -> vector<128x4xf32>
    %cst_23 = arith.constant 5.000000e-01 : f32
    %26 = vector.broadcast %cst_23 : f32 to vector<128x4xf32>
    %27 = arith.mulf %26, %25 : vector<128x4xf32>
    %cst_24 = arith.constant 0.707106769 : f32
    %28 = vector.broadcast %cst_24 : f32 to vector<128x4xf32>
    %29 = arith.mulf %25, %28 : vector<128x4xf32>
    %30 = math.erf %29 : vector<128x4xf32>
    %cst_25 = arith.constant 1.000000e+00 : f32
    %31 = vector.broadcast %cst_25 : f32 to vector<128x4xf32>
    %32 = arith.addf %31, %30 : vector<128x4xf32>
    %33 = arith.mulf %27, %32 : vector<128x4xf32>
    %c0_26 = arith.constant 0 : index
    %c1_27 = arith.constant 1 : index
    %c0_28 = arith.constant 0 : index
    %c0_29 = arith.constant 0 : index
    %34 = vector.load %arg5[%c0_26, %c1_27, %c0_28, %c0_29] : memref<2x2x4x128xf32, #tpu.memory_space<vmem>>, vector<1x1x4x128xf32>
    %35 = vector.shape_cast %34 : vector<1x1x4x128xf32> to vector<4x128xf32>
    %cst_30 = arith.constant dense<0.000000e+00> : vector<128x128xf32>
    %36 = tpu.matmul %33, %35, %cst_30 {dimension_numbers = #tpu.dot_dimension_numbers<[1], [0], [0], [1], [0, 0, 1, 1], [], []>} : vector<128x4xf32>, vector<4x128xf32>, vector<128x128xf32> -> vector<128x128xf32>
    %37 = arith.addf %22, %36 : vector<128x128xf32>
    %c0_31 = arith.constant 0 : index
    %c0_32 = arith.constant 0 : index
    %c0_33 = arith.constant 0 : index
    %38 = vector.load %arg6[%c0_31, %c0_32, %c0_33] : memref<2x1x128xf32, #tpu.memory_space<vmem>>, vector<1x1x128xf32>
    %39 = vector.shape_cast %38 : vector<1x1x128xf32> to vector<1x128xf32>
    %c0_34 = arith.constant 0 : index
    %c0_35 = arith.constant 0 : index
    %c0_36 = arith.constant 0 : index
    %40 = vector.load %arg7[%c0_34, %c0_35, %c0_36] : memref<2x1x128xf32, #tpu.memory_space<vmem>>, vector<1x1x128xf32>
    %41 = vector.shape_cast %40 : vector<1x1x128xf32> to vector<1x128xf32>
    %cst_37 = arith.constant dense<0.000000e+00> : vector<128xf32>
    %42 = vector.multi_reduction <add>, %37, %cst_37 [1] : vector<128x128xf32> to vector<128xf32>
    %43 = vector.shape_cast %42 : vector<128xf32> to vector<128x1xf32>
    %cst_38 = arith.constant 1.280000e+02 : f32
    %44 = vector.broadcast %cst_38 : f32 to vector<128x1xf32>
    %45 = arith.divf %43, %44 : vector<128x1xf32>
    %46 = vector.broadcast %45 : vector<128x1xf32> to vector<128x128xf32>
    %47 = arith.subf %37, %46 : vector<128x128xf32>
    %48 = arith.mulf %47, %47 : vector<128x128xf32>
    %cst_39 = arith.constant dense<0.000000e+00> : vector<128xf32>
    %49 = vector.multi_reduction <add>, %48, %cst_39 [1] : vector<128x128xf32> to vector<128xf32>
    %50 = vector.shape_cast %49 : vector<128xf32> to vector<128x1xf32>
    %cst_40 = arith.constant 1.280000e+02 : f32
    %51 = vector.broadcast %cst_40 : f32 to vector<128x1xf32>
    %52 = arith.divf %50, %51 : vector<128x1xf32>
    %53 = vector.broadcast %45 : vector<128x1xf32> to vector<128x128xf32>
    %54 = arith.subf %37, %53 : vector<128x128xf32>
    %cst_41 = arith.constant 9.99999974E-6 : f32
    %55 = vector.broadcast %cst_41 : f32 to vector<128x1xf32>
    %56 = arith.addf %52, %55 : vector<128x1xf32>
    %57 = math.rsqrt %56 : vector<128x1xf32>
    %58 = vector.broadcast %57 : vector<128x1xf32> to vector<128x128xf32>
    %59 = arith.mulf %54, %58 : vector<128x128xf32>
    %60 = vector.broadcast %39 : vector<1x128xf32> to vector<128x128xf32>
    %61 = arith.mulf %59, %60 : vector<128x128xf32>
    %62 = vector.broadcast %41 : vector<1x128xf32> to vector<128x128xf32>
    %63 = arith.addf %61, %62 : vector<128x128xf32>
    %c1_42 = arith.constant 1 : index
    %c0_43 = arith.constant 0 : index
    %c0_44 = arith.constant 0 : index
    %c0_45 = arith.constant 0 : index
    %64 = vector.load %arg4[%c1_42, %c0_43, %c0_44, %c0_45] : memref<2x2x128x4xf32, #tpu.memory_space<vmem>>, vector<1x1x128x4xf32>
    %65 = vector.shape_cast %64 : vector<1x1x128x4xf32> to vector<128x4xf32>
    %cst_46 = arith.constant dense<0.000000e+00> : vector<128x4xf32>
    %66 = tpu.matmul %63, %65, %cst_46 {dimension_numbers = #tpu.dot_dimension_numbers<[1], [0], [0], [1], [0, 0, 1, 1], [], []>} : vector<128x128xf32>, vector<128x4xf32>, vector<128x4xf32> -> vector<128x4xf32>
    %cst_47 = arith.constant 5.000000e-01 : f32
    %67 = vector.broadcast %cst_47 : f32 to vector<128x4xf32>
    %68 = arith.mulf %67, %66 : vector<128x4xf32>
    %cst_48 = arith.constant 0.707106769 : f32
    %69 = vector.broadcast %cst_48 : f32 to vector<128x4xf32>
    %70 = arith.mulf %66, %69 : vector<128x4xf32>
    %71 = math.erf %70 : vector<128x4xf32>
    %cst_49 = arith.constant 1.000000e+00 : f32
    %72 = vector.broadcast %cst_49 : f32 to vector<128x4xf32>
    %73 = arith.addf %72, %71 : vector<128x4xf32>
    %74 = arith.mulf %68, %73 : vector<128x4xf32>
    %c1_50 = arith.constant 1 : index
    %c0_51 = arith.constant 0 : index
    %c0_52 = arith.constant 0 : index
    %c0_53 = arith.constant 0 : index
    %75 = vector.load %arg5[%c1_50, %c0_51, %c0_52, %c0_53] : memref<2x2x4x128xf32, #tpu.memory_space<vmem>>, vector<1x1x4x128xf32>
    %76 = vector.shape_cast %75 : vector<1x1x4x128xf32> to vector<4x128xf32>
    %cst_54 = arith.constant dense<0.000000e+00> : vector<128x128xf32>
    %77 = tpu.matmul %74, %76, %cst_54 {dimension_numbers = #tpu.dot_dimension_numbers<[1], [0], [0], [1], [0, 0, 1, 1], [], []>} : vector<128x4xf32>, vector<4x128xf32>, vector<128x128xf32> -> vector<128x128xf32>
    %78 = arith.addf %63, %77 : vector<128x128xf32>
    %c1_55 = arith.constant 1 : index
    %c1_56 = arith.constant 1 : index
    %c0_57 = arith.constant 0 : index
    %c0_58 = arith.constant 0 : index
    %79 = vector.load %arg4[%c1_55, %c1_56, %c0_57, %c0_58] : memref<2x2x128x4xf32, #tpu.memory_space<vmem>>, vector<1x1x128x4xf32>
    %80 = vector.shape_cast %79 : vector<1x1x128x4xf32> to vector<128x4xf32>
    %cst_59 = arith.constant dense<0.000000e+00> : vector<128x4xf32>
    %81 = tpu.matmul %78, %80, %cst_59 {dimension_numbers = #tpu.dot_dimension_numbers<[1], [0], [0], [1], [0, 0, 1, 1], [], []>} : vector<128x128xf32>, vector<128x4xf32>, vector<128x4xf32> -> vector<128x4xf32>
    %cst_60 = arith.constant 5.000000e-01 : f32
    %82 = vector.broadcast %cst_60 : f32 to vector<128x4xf32>
    %83 = arith.mulf %82, %81 : vector<128x4xf32>
    %cst_61 = arith.constant 0.707106769 : f32
    %84 = vector.broadcast %cst_61 : f32 to vector<128x4xf32>
    %85 = arith.mulf %81, %84 : vector<128x4xf32>
    %86 = math.erf %85 : vector<128x4xf32>
    %cst_62 = arith.constant 1.000000e+00 : f32
    %87 = vector.broadcast %cst_62 : f32 to vector<128x4xf32>
    %88 = arith.addf %87, %86 : vector<128x4xf32>
    %89 = arith.mulf %83, %88 : vector<128x4xf32>
    %c1_63 = arith.constant 1 : index
    %c1_64 = arith.constant 1 : index
    %c0_65 = arith.constant 0 : index
    %c0_66 = arith.constant 0 : index
    %90 = vector.load %arg5[%c1_63, %c1_64, %c0_65, %c0_66] : memref<2x2x4x128xf32, #tpu.memory_space<vmem>>, vector<1x1x4x128xf32>
    %91 = vector.shape_cast %90 : vector<1x1x4x128xf32> to vector<4x128xf32>
    %cst_67 = arith.constant dense<0.000000e+00> : vector<128x128xf32>
    %92 = tpu.matmul %89, %91, %cst_67 {dimension_numbers = #tpu.dot_dimension_numbers<[1], [0], [0], [1], [0, 0, 1, 1], [], []>} : vector<128x4xf32>, vector<4x128xf32>, vector<128x128xf32> -> vector<128x128xf32>
    %93 = arith.addf %78, %92 : vector<128x128xf32>
    %c1_68 = arith.constant 1 : index
    %c0_69 = arith.constant 0 : index
    %c0_70 = arith.constant 0 : index
    %94 = vector.load %arg6[%c1_68, %c0_69, %c0_70] : memref<2x1x128xf32, #tpu.memory_space<vmem>>, vector<1x1x128xf32>
    %95 = vector.shape_cast %94 : vector<1x1x128xf32> to vector<1x128xf32>
    %c1_71 = arith.constant 1 : index
    %c0_72 = arith.constant 0 : index
    %c0_73 = arith.constant 0 : index
    %96 = vector.load %arg7[%c1_71, %c0_72, %c0_73] : memref<2x1x128xf32, #tpu.memory_space<vmem>>, vector<1x1x128xf32>
    %97 = vector.shape_cast %96 : vector<1x1x128xf32> to vector<1x128xf32>
    %cst_74 = arith.constant dense<0.000000e+00> : vector<128xf32>
    %98 = vector.multi_reduction <add>, %93, %cst_74 [1] : vector<128x128xf32> to vector<128xf32>
    %99 = vector.shape_cast %98 : vector<128xf32> to vector<128x1xf32>
    %cst_75 = arith.constant 1.280000e+02 : f32
    %100 = vector.broadcast %cst_75 : f32 to vector<128x1xf32>
    %101 = arith.divf %99, %100 : vector<128x1xf32>
    %102 = vector.broadcast %101 : vector<128x1xf32> to vector<128x128xf32>
    %103 = arith.subf %93, %102 : vector<128x128xf32>
    %104 = arith.mulf %103, %103 : vector<128x128xf32>
    %cst_76 = arith.constant dense<0.000000e+00> : vector<128xf32>
    %105 = vector.multi_reduction <add>, %104, %cst_76 [1] : vector<128x128xf32> to vector<128xf32>
    %106 = vector.shape_cast %105 : vector<128xf32> to vector<128x1xf32>
    %cst_77 = arith.constant 1.280000e+02 : f32
    %107 = vector.broadcast %cst_77 : f32 to vector<128x1xf32>
    %108 = arith.divf %106, %107 : vector<128x1xf32>
    %109 = vector.broadcast %101 : vector<128x1xf32> to vector<128x128xf32>
    %110 = arith.subf %93, %109 : vector<128x128xf32>
    %cst_78 = arith.constant 9.99999974E-6 : f32
    %111 = vector.broadcast %cst_78 : f32 to vector<128x1xf32>
    %112 = arith.addf %108, %111 : vector<128x1xf32>
    %113 = math.rsqrt %112 : vector<128x1xf32>
    %114 = vector.broadcast %113 : vector<128x1xf32> to vector<128x128xf32>
    %115 = arith.mulf %110, %114 : vector<128x128xf32>
    %116 = vector.broadcast %95 : vector<1x128xf32> to vector<128x128xf32>
    %117 = arith.mulf %115, %116 : vector<128x128xf32>
    %118 = vector.broadcast %97 : vector<1x128xf32> to vector<128x128xf32>
    %119 = arith.addf %117, %118 : vector<128x128xf32>
    %c0_79 = arith.constant 0 : index
    %c0_80 = arith.constant 0 : index
    %120 = vector.load %arg8[%c0_79, %c0_80] : memref<1x128xf32, #tpu.memory_space<vmem>>, vector<1x128xf32>
    %c0_81 = arith.constant 0 : index
    %c0_82 = arith.constant 0 : index
    %121 = vector.load %arg9[%c0_81, %c0_82] : memref<1x128xf32, #tpu.memory_space<vmem>>, vector<1x128xf32>
    %cst_83 = arith.constant dense<0.000000e+00> : vector<128xf32>
    %122 = vector.multi_reduction <add>, %119, %cst_83 [1] : vector<128x128xf32> to vector<128xf32>
    %123 = vector.shape_cast %122 : vector<128xf32> to vector<128x1xf32>
    %cst_84 = arith.constant 1.280000e+02 : f32
    %124 = vector.broadcast %cst_84 : f32 to vector<128x1xf32>
    %125 = arith.divf %123, %124 : vector<128x1xf32>
    %126 = vector.broadcast %125 : vector<128x1xf32> to vector<128x128xf32>
    %127 = arith.subf %119, %126 : vector<128x128xf32>
    %128 = arith.mulf %127, %127 : vector<128x128xf32>
    %cst_85 = arith.constant dense<0.000000e+00> : vector<128xf32>
    %129 = vector.multi_reduction <add>, %128, %cst_85 [1] : vector<128x128xf32> to vector<128xf32>
    %130 = vector.shape_cast %129 : vector<128xf32> to vector<128x1xf32>
    %cst_86 = arith.constant 1.280000e+02 : f32
    %131 = vector.broadcast %cst_86 : f32 to vector<128x1xf32>
    %132 = arith.divf %130, %131 : vector<128x1xf32>
    %133 = vector.broadcast %125 : vector<128x1xf32> to vector<128x128xf32>
    %134 = arith.subf %119, %133 : vector<128x128xf32>
    %cst_87 = arith.constant 9.99999974E-6 : f32
    %135 = vector.broadcast %cst_87 : f32 to vector<128x1xf32>
    %136 = arith.addf %132, %135 : vector<128x1xf32>
    %137 = math.rsqrt %136 : vector<128x1xf32>
    %138 = vector.broadcast %137 : vector<128x1xf32> to vector<128x128xf32>
    %139 = arith.mulf %134, %138 : vector<128x128xf32>
    %140 = vector.broadcast %120 : vector<1x128xf32> to vector<128x128xf32>
    %141 = arith.mulf %139, %140 : vector<128x128xf32>
    %142 = vector.broadcast %121 : vector<1x128xf32> to vector<128x128xf32>
    %143 = arith.addf %141, %142 : vector<128x128xf32>
    %c0_88 = arith.constant 0 : index
    %c0_89 = arith.constant 0 : index
    %144 = vector.load %arg10[%c0_88, %c0_89] : memref<128x64xf32, #tpu.memory_space<vmem>>, vector<128x64xf32>
    %cst_90 = arith.constant dense<0.000000e+00> : vector<128x64xf32>
    %145 = tpu.matmul %143, %144, %cst_90 {dimension_numbers = #tpu.dot_dimension_numbers<[1], [0], [0], [1], [0, 0, 1, 1], [], []>} : vector<128x128xf32>, vector<128x64xf32>, vector<128x64xf32> -> vector<128x64xf32>
    %c0_91 = arith.constant 0 : index
    %c0_92 = arith.constant 0 : index
    %146 = vector.load %arg11[%c0_91, %c0_92] : memref<1x64xf32, #tpu.memory_space<vmem>>, vector<1x64xf32>
    %147 = vector.broadcast %146 : vector<1x64xf32> to vector<128x64xf32>
    %148 = arith.addf %145, %147 : vector<128x64xf32>
    %cst_93 = arith.constant 0.000000e+00 : f32
    %149 = vector.broadcast %cst_93 : f32 to vector<128x64xf32>
    %150 = arith.maximumf %148, %149 : vector<128x64xf32>
    %c0_94 = arith.constant 0 : index
    %c0_95 = arith.constant 0 : index
    %151 = vector.load %arg12[%c0_94, %c0_95] : memref<64x128xf32, #tpu.memory_space<vmem>>, vector<64x128xf32>
    %cst_96 = arith.constant dense<0.000000e+00> : vector<128x128xf32>
    %152 = tpu.matmul %150, %151, %cst_96 {dimension_numbers = #tpu.dot_dimension_numbers<[1], [0], [0], [1], [0, 0, 1, 1], [], []>} : vector<128x64xf32>, vector<64x128xf32>, vector<128x128xf32> -> vector<128x128xf32>
    %c0_97 = arith.constant 0 : index
    %c0_98 = arith.constant 0 : index
    %153 = vector.load %arg13[%c0_97, %c0_98] : memref<1x128xf32, #tpu.memory_space<vmem>>, vector<1x128xf32>
    %154 = vector.broadcast %153 : vector<1x128xf32> to vector<128x128xf32>
    %155 = arith.addf %152, %154 : vector<128x128xf32>
    %c0_99 = arith.constant 0 : index
    %c0_100 = arith.constant 0 : index
    %156 = vector.load %arg14[%c0_99, %c0_100] : memref<128x128xf32, #tpu.memory_space<vmem>>, vector<128x128xf32>
    tpu.vector_store %arg14[%c0_99, %c0_100], %155 {strides = array<i32>} : memref<128x128xf32, #tpu.memory_space<vmem>>, vector<128x128xf32>,
    return
  }
  func.func @transform_0(%arg0: i32) -> (i32, i32) {
    %c0_i32 = arith.constant 0 : i32
    %c0_i32_0 = arith.constant 0 : i32
    return %arg0, %c0_i32 : i32, i32
  }
  func.func @transform_1(%arg0: i32) -> (i32, i32) {
    %c0_i32 = arith.constant 0 : i32
    %c0_i32_0 = arith.constant 0 : i32
    %c0_i32_1 = arith.constant 0 : i32
    return %c0_i32, %c0_i32_0 : i32, i32
  }
  func.func @transform_2(%arg0: i32) -> (i32, i32) {
    %c0_i32 = arith.constant 0 : i32
    %c0_i32_0 = arith.constant 0 : i32
    %c0_i32_1 = arith.constant 0 : i32
    return %c0_i32, %c0_i32_0 : i32, i32
  }
  func.func @transform_3(%arg0: i32) -> (i32, i32, i32, i32) {
    %c0_i32 = arith.constant 0 : i32
    %c0_i32_0 = arith.constant 0 : i32
    %c0_i32_1 = arith.constant 0 : i32
    %c0_i32_2 = arith.constant 0 : i32
    %c0_i32_3 = arith.constant 0 : i32
    return %c0_i32, %c0_i32_0, %c0_i32_1, %c0_i32_2 : i32, i32, i32, i32
  }
  func.func @transform_4(%arg0: i32) -> (i32, i32, i32, i32) {
    %c0_i32 = arith.constant 0 : i32
    %c0_i32_0 = arith.constant 0 : i32
    %c0_i32_1 = arith.constant 0 : i32
    %c0_i32_2 = arith.constant 0 : i32
    %c0_i32_3 = arith.constant 0 : i32
    return %c0_i32, %c0_i32_0, %c0_i32_1, %c0_i32_2 : i32, i32, i32, i32
  }
  func.func @transform_5(%arg0: i32) -> (i32, i32, i32) {
    %c0_i32 = arith.constant 0 : i32
    %c0_i32_0 = arith.constant 0 : i32
    %c0_i32_1 = arith.constant 0 : i32
    %c0_i32_2 = arith.constant 0 : i32
    return %c0_i32, %c0_i32_0, %c0_i32_1 : i32, i32, i32
  }
  func.func @transform_6(%arg0: i32) -> (i32, i32, i32) {
    %c0_i32 = arith.constant 0 : i32
    %c0_i32_0 = arith.constant 0 : i32
    %c0_i32_1 = arith.constant 0 : i32
    %c0_i32_2 = arith.constant 0 : i32
    return %c0_i32, %c0_i32_0, %c0_i32_1 : i32, i32, i32
  }
  func.func @transform_7(%arg0: i32) -> (i32, i32) {
    %c0_i32 = arith.constant 0 : i32
    %c0_i32_0 = arith.constant 0 : i32
    %c0_i32_1 = arith.constant 0 : i32
    return %c0_i32, %c0_i32_0 : i32, i32
  }
  func.func @transform_8(%arg0: i32) -> (i32, i32) {
    %c0_i32 = arith.constant 0 : i32
    %c0_i32_0 = arith.constant 0 : i32
    %c0_i32_1 = arith.constant 0 : i32
    return %c0_i32, %c0_i32_0 : i32, i32
  }
  func.func @transform_9(%arg0: i32) -> (i32, i32) {
    %c0_i32 = arith.constant 0 : i32
    %c0_i32_0 = arith.constant 0 : i32
    %c0_i32_1 = arith.constant 0 : i32
    return %c0_i32, %c0_i32_0 : i32, i32
  }
  func.func @transform_10(%arg0: i32) -> (i32, i32) {
    %c0_i32 = arith.constant 0 : i32
    %c0_i32_0 = arith.constant 0 : i32
    %c0_i32_1 = arith.constant 0 : i32
    return %c0_i32, %c0_i32_0 : i32, i32
  }
  func.func @transform_11(%arg0: i32) -> (i32, i32) {
    %c0_i32 = arith.constant 0 : i32
    %c0_i32_0 = arith.constant 0 : i32
    %c0_i32_1 = arith.constant 0 : i32
    return %c0_i32, %c0_i32_0 : i32, i32
  }
  func.func @transform_12(%arg0: i32) -> (i32, i32) {
    %c0_i32 = arith.constant 0 : i32
    %c0_i32_0 = arith.constant 0 : i32
    %c0_i32_1 = arith.constant 0 : i32
    return %c0_i32, %c0_i32_0 : i32, i32
  }
  func.func @transform_13(%arg0: i32) -> (i32, i32) {
    %c0_i32 = arith.constant 0 : i32
    %c0_i32_0 = arith.constant 0 : i32
    return %arg0, %c0_i32 : i32, i32
  }
}

</mosaic_0001>

<llo_original>
// kernel: tpu_custom_call.1
$region0: #{tpu_custom_call.1}
  #allocation0 [shape = 'u32[]', space=smem, size = 0x4, offset = 0x4, fixed_abs, tag = 'smem constant byte address 0x4 - core index']
  #allocation1 [shape = 'u32[144,128]{1,0:T(1,128)}', space=vmem, size = 0x12000, scoped, tag = 'internal scratch']
  %s0 = inlined_call_operand.vmem [shape: f32[256,256], index: 0, kind: input, shape index: {}]
  %s1 = inlined_call_operand.hbm [shape: f32[256,128], index: 1, kind: input, shape index: {}]
  %s2 = inlined_call_operand.vmem [shape: f32[1,128], index: 2, kind: input, shape index: {}]
  %s3 = inlined_call_operand.vmem [shape: f32[2,2,128,4], index: 3, kind: input, shape index: {}]
  %s4 = inlined_call_operand.vmem [shape: f32[2,2,4,128], index: 4, kind: input, shape index: {}]
  %s5 = inlined_call_operand.vmem [shape: f32[2,1,128], index: 5, kind: input, shape index: {}]
  %s6 = inlined_call_operand.vmem [shape: f32[2,1,128], index: 6, kind: input, shape index: {}]
  %s7 = inlined_call_operand.vmem [shape: f32[1,128], index: 7, kind: input, shape index: {}]
  %s8 = inlined_call_operand.vmem [shape: f32[1,128], index: 8, kind: input, shape index: {}]
  %s9 = inlined_call_operand.vmem [shape: f32[128,64], index: 9, kind: input, shape index: {}]
  %s10 = inlined_call_operand.vmem [shape: f32[1,64], index: 10, kind: input, shape index: {}]
  %s11 = inlined_call_operand.vmem [shape: f32[64,128], index: 11, kind: input, shape index: {}]
  %s12 = inlined_call_operand.vmem [shape: f32[1,128], index: 12, kind: input, shape index: {}]
  %s13 = inlined_call_operand.hbm [shape: f32[256,128], index: 13, kind: output, shape index: {}]
  %s14 = sld [smem:[#allocation0]]
  $region89: #{tpu_custom_call.1} parent=0
    _
  %s16 = ssub.s32 1, %s14
  %s17 = scalar_select 0, %s16, %s14
  $region1: #{tpu_custom_call.1} parent=0
    #allocation2 [shape = 'u8[131072]{0}', space=vmem, size = 0x20000, scoped, tag = 'input window, operand 1, single buffered']
    #allocation3 [shape = 's32[2]{0}', space=sflag, size = 0x8, scoped, tag = 'scoped memory for tpu_custom_call.1']
    #allocation4 [shape = 's32[2]{0}', space=sflag, size = 0x8, scoped, tag = 'scoped memory for tpu_custom_call.1']
    #allocation5 [shape = 'u8[131072]{0}', space=vmem, size = 0x20000, scoped, tag = 'output window, operand 0']
    %18 = vsyncpa [#allocation3], 0
    %19 = vsyncpa [#allocation4], 0
    %s20 = scalar_lea.sflag [#allocation4], 1
    %21 = vsyncpa %s20, 0
    loop: start=0, step=1, limit=4
    $region2: #{tpu_custom_call.1} parent=1 // loop_pre_header
      _
    $region3: #{tpu_custom_call.1} parent=1 // loop_header
      %s23 = sphi 0, %s27
      %p24 = scmp.ge.s32.totalorder %s23, 4
      %s33 = sphi 0, %s35
      %s36 = sphi 0, %s33
      %s37 = sphi 0, %s36
      %s53 = sphi 0, %s37
      %s57 = sphi 0, %s57
      %s59 = sphi 0, %s57
      %s60 = sphi 0, %s59
      %s74 = sphi 0, %s60
      %s78 = sphi 0, %s78
      %s80 = sphi 0, %s78
      %s81 = sphi 0, %s80
      %s95 = sphi 0, %s81
      %s99 = sphi 0, %s99
      %s101 = sphi 0, %s99
      %s102 = sphi 0, %s101
      %s116 = sphi 0, %s102
      %s120 = sphi 0, %s120
      %s122 = sphi 0, %s120
      %s123 = sphi 0, %s122
      %s137 = sphi 0, %s123
      %s141 = sphi 0, %s141
      %s143 = sphi 0, %s141
      %s144 = sphi 0, %s143
      %s158 = sphi 0, %s144
      %s162 = sphi 0, %s162
      %s164 = sphi 0, %s162
      %s165 = sphi 0, %s164
      %s179 = sphi 0, %s165
      %s183 = sphi 0, %s183
      %s185 = sphi 0, %s183
      %s186 = sphi 0, %s185
      %s200 = sphi 0, %s186
      %s204 = sphi 0, %s204
      %s206 = sphi 0, %s204
      %s207 = sphi 0, %s206
      %s221 = sphi 0, %s207
      %s225 = sphi 0, %s225
      %s227 = sphi 0, %s225
      %s228 = sphi 0, %s227
      %s242 = sphi 0, %s228
      %s246 = sphi 0, %s246
      %s248 = sphi 0, %s246
      %s249 = sphi 0, %s248
      %s263 = sphi 0, %s249
      %s267 = sphi 0, %s267
      %s269 = sphi 0, %s267
      %s270 = sphi 0, %s269
      %s284 = sphi 0, %s270
      %s288 = sphi 0, %s288
      %s290 = sphi 0, %s288
      %s291 = sphi 0, %s290
      %s305 = sphi 0, %s291
      %s311 = sphi 0, %s313
      %s314 = sphi 0, %s311
      %s315 = sphi 0, %s314
      %s331 = sphi 0, %s315
    $region4: #{tpu_custom_call.1} parent=1 // loop_header_branch
      %26 = sbr.rel (%p24) target = $region8
    $region5: #{tpu_custom_call.1} parent=1 // loop_body
      %s28 = ssub.s32 %s23, 1
      %s29 = ssub.s32 %s23, 2
      %s30 = sadd.s32 %s23, 1
      %s31 = ssub.s32 %s23, %s30
      %p32 = scmp.eq.s32.totalorder %s31, 0
      %s34 = sadd.s32 %s33, 1
      %s35 = scalar_select %p32, %s33, %s34
      %p38 = pneg %p32
      %p39 = scmp.eq.s32.totalorder %s23, 1
      %p40 = por %p38, %p39
      %p41 = scmp.ne.s32.totalorder %s33, %s36
      %p42 = scmp.eq.s32.totalorder %s23, 0
      %p43 = por %p41, %p42
      %p44 = scmp.ne.s32.totalorder %s33, %s36
      %p45 = scmp.eq.s32.totalorder %s28, 1
      %p46 = por %p44, %p45
      %p47 = scmp.ne.s32.totalorder %s36, %s37
      %p48 = scmp.eq.s32.totalorder %s28, 0
      %p49 = por %p47, %p48
      %p50 = scmp.ne.s32.totalorder %s36, %s37
      %p51 = scmp.eq.s32.totalorder %s29, 1
      %p52 = por %p50, %p51
      %p54 = scmp.ne.s32.totalorder %s37, %s53
      %p55 = scmp.eq.s32.totalorder %s29, 0
      %p56 = por %p54, %p55
      %s58 = sadd.s32 %s57, 1
      %p61 = scmp.eq.s32.totalorder %s23, 1
      %p62 = scmp.ne.s32.totalorder %s57, %s59
      %p63 = scmp.eq.s32.totalorder %s23, 0
      %p64 = por %p62, %p63
      %p65 = scmp.ne.s32.totalorder %s57, %s59
      %p66 = scmp.eq.s32.totalorder %s28, 1
      %p67 = por %p65, %p66
      %p68 = scmp.ne.s32.totalorder %s59, %s60
      %p69 = scmp.eq.s32.totalorder %s28, 0
      %p70 = por %p68, %p69
      %p71 = scmp.ne.s32.totalorder %s59, %s60
      %p72 = scmp.eq.s32.totalorder %s29, 1
      %p73 = por %p71, %p72
      %p75 = scmp.ne.s32.totalorder %s60, %s74
      %p76 = scmp.eq.s32.totalorder %s29, 0
      %p77 = por %p75, %p76
      %s79 = sadd.s32 %s78, 1
      %p82 = scmp.eq.s32.totalorder %s23, 1
      %p83 = scmp.ne.s32.totalorder %s78, %s80
      %p84 = scmp.eq.s32.totalorder %s23, 0
      %p85 = por %p83, %p84
      %p86 = scmp.ne.s32.totalorder %s78, %s80
      %p87 = scmp.eq.s32.totalorder %s28, 1
      %p88 = por %p86, %p87
      %p89 = scmp.ne.s32.totalorder %s80, %s81
      %p90 = scmp.eq.s32.totalorder %s28, 0
      %p91 = por %p89, %p90
      %p92 = scmp.ne.s32.totalorder %s80, %s81
      %p93 = scmp.eq.s32.totalorder %s29, 1
      %p94 = por %p92, %p93
      %p96 = scmp.ne.s32.totalorder %s81, %s95
      %p97 = scmp.eq.s32.totalorder %s29, 0
      %p98 = por %p96, %p97
      %s100 = sadd.s32 %s99, 1
      %p103 = scmp.eq.s32.totalorder %s23, 1
      %p104 = scmp.ne.s32.totalorder %s99, %s101
      %p105 = scmp.eq.s32.totalorder %s23, 0
      %p106 = por %p104, %p105
      %p107 = scmp.ne.s32.totalorder %s99, %s101
      %p108 = scmp.eq.s32.totalorder %s28, 1
      %p109 = por %p107, %p108
      %p110 = scmp.ne.s32.totalorder %s101, %s102
      %p111 = scmp.eq.s32.totalorder %s28, 0
      %p112 = por %p110, %p111
      %p113 = scmp.ne.s32.totalorder %s101, %s102
      %p114 = scmp.eq.s32.totalorder %s29, 1
      %p115 = por %p113, %p114
      %p117 = scmp.ne.s32.totalorder %s102, %s116
      %p118 = scmp.eq.s32.totalorder %s29, 0
      %p119 = por %p117, %p118
      %s121 = sadd.s32 %s120, 1
      %p124 = scmp.eq.s32.totalorder %s23, 1
      %p125 = scmp.ne.s32.totalorder %s120, %s122
      %p126 = scmp.eq.s32.totalorder %s23, 0
      %p127 = por %p125, %p126
      %p128 = scmp.ne.s32.totalorder %s120, %s122
      %p129 = scmp.eq.s32.totalorder %s28, 1
      %p130 = por %p128, %p129
      %p131 = scmp.ne.s32.totalorder %s122, %s123
      %p132 = scmp.eq.s32.totalorder %s28, 0
      %p133 = por %p131, %p132
      %p134 = scmp.ne.s32.totalorder %s122, %s123
      %p135 = scmp.eq.s32.totalorder %s29, 1
      %p136 = por %p134, %p135
      %p138 = scmp.ne.s32.totalorder %s123, %s137
      %p139 = scmp.eq.s32.totalorder %s29, 0
      %p140 = por %p138, %p139
      %s142 = sadd.s32 %s141, 1
      %p145 = scmp.eq.s32.totalorder %s23, 1
      %p146 = scmp.ne.s32.totalorder %s141, %s143
      %p147 = scmp.eq.s32.totalorder %s23, 0
      %p148 = por %p146, %p147
      %p149 = scmp.ne.s32.totalorder %s141, %s143
      %p150 = scmp.eq.s32.totalorder %s28, 1
      %p151 = por %p149, %p150
      %p152 = scmp.ne.s32.totalorder %s143, %s144
      %p153 = scmp.eq.s32.totalorder %s28, 0
      %p154 = por %p152, %p153
      %p155 = scmp.ne.s32.totalorder %s143, %s144
      %p156 = scmp.eq.s32.totalorder %s29, 1
      %p157 = por %p155, %p156
      %p159 = scmp.ne.s32.totalorder %s144, %s158
      %p160 = scmp.eq.s32.totalorder %s29, 0
      %p161 = por %p159, %p160
      %s163 = sadd.s32 %s162, 1
      %p166 = scmp.eq.s32.totalorder %s23, 1
      %p167 = scmp.ne.s32.totalorder %s162, %s164
      %p168 = scmp.eq.s32.totalorder %s23, 0
      %p169 = por %p167, %p168
      %p170 = scmp.ne.s32.totalorder %s162, %s164
      %p171 = scmp.eq.s32.totalorder %s28, 1
      %p172 = por %p170, %p171
      %p173 = scmp.ne.s32.totalorder %s164, %s165
      %p174 = scmp.eq.s32.totalorder %s28, 0
      %p175 = por %p173, %p174
      %p176 = scmp.ne.s32.totalorder %s164, %s165
      %p177 = scmp.eq.s32.totalorder %s29, 1
      %p178 = por %p176, %p177
      %p180 = scmp.ne.s32.totalorder %s165, %s179
      %p181 = scmp.eq.s32.totalorder %s29, 0
      %p182 = por %p180, %p181
      %s184 = sadd.s32 %s183, 1
      %p187 = scmp.eq.s32.totalorder %s23, 1
      %p188 = scmp.ne.s32.totalorder %s183, %s185
      %p189 = scmp.eq.s32.totalorder %s23, 0
      %p190 = por %p188, %p189
      %p191 = scmp.ne.s32.totalorder %s183, %s185
      %p192 = scmp.eq.s32.totalorder %s28, 1
      %p193 = por %p191, %p192
      %p194 = scmp.ne.s32.totalorder %s185, %s186
      %p195 = scmp.eq.s32.totalorder %s28, 0
      %p196 = por %p194, %p195
      %p197 = scmp.ne.s32.totalorder %s185, %s186
      %p198 = scmp.eq.s32.totalorder %s29, 1
      %p199 = por %p197, %p198
      %p201 = scmp.ne.s32.totalorder %s186, %s200
      %p202 = scmp.eq.s32.totalorder %s29, 0
      %p203 = por %p201, %p202
      %s205 = sadd.s32 %s204, 1
      %p208 = scmp.eq.s32.totalorder %s23, 1
      %p209 = scmp.ne.s32.totalorder %s204, %s206
      %p210 = scmp.eq.s32.totalorder %s23, 0
      %p211 = por %p209, %p210
      %p212 = scmp.ne.s32.totalorder %s204, %s206
      %p213 = scmp.eq.s32.totalorder %s28, 1
      %p214 = por %p212, %p213
      %p215 = scmp.ne.s32.totalorder %s206, %s207
      %p216 = scmp.eq.s32.totalorder %s28, 0
      %p217 = por %p215, %p216
      %p218 = scmp.ne.s32.totalorder %s206, %s207
      %p219 = scmp.eq.s32.totalorder %s29, 1
      %p220 = por %p218, %p219
      %p222 = scmp.ne.s32.totalorder %s207, %s221
      %p223 = scmp.eq.s32.totalorder %s29, 0
      %p224 = por %p222, %p223
      %s226 = sadd.s32 %s225, 1
      %p229 = scmp.eq.s32.totalorder %s23, 1
      %p230 = scmp.ne.s32.totalorder %s225, %s227
      %p231 = scmp.eq.s32.totalorder %s23, 0
      %p232 = por %p230, %p231
      %p233 = scmp.ne.s32.totalorder %s225, %s227
      %p234 = scmp.eq.s32.totalorder %s28, 1
      %p235 = por %p233, %p234
      %p236 = scmp.ne.s32.totalorder %s227, %s228
      %p237 = scmp.eq.s32.totalorder %s28, 0
      %p238 = por %p236, %p237
      %p239 = scmp.ne.s32.totalorder %s227, %s228
      %p240 = scmp.eq.s32.totalorder %s29, 1
      %p241 = por %p239, %p240
      %p243 = scmp.ne.s32.totalorder %s228, %s242
      %p244 = scmp.eq.s32.totalorder %s29, 0
      %p245 = por %p243, %p244
      %s247 = sadd.s32 %s246, 1
      %p250 = scmp.eq.s32.totalorder %s23, 1
      %p251 = scmp.ne.s32.totalorder %s246, %s248
      %p252 = scmp.eq.s32.totalorder %s23, 0
      %p253 = por %p251, %p252
      %p254 = scmp.ne.s32.totalorder %s246, %s248
      %p255 = scmp.eq.s32.totalorder %s28, 1
      %p256 = por %p254, %p255
      %p257 = scmp.ne.s32.totalorder %s248, %s249
      %p258 = scmp.eq.s32.totalorder %s28, 0
      %p259 = por %p257, %p258
      %p260 = scmp.ne.s32.totalorder %s248, %s249
      %p261 = scmp.eq.s32.totalorder %s29, 1
      %p262 = por %p260, %p261
      %p264 = scmp.ne.s32.totalorder %s249, %s263
      %p265 = scmp.eq.s32.totalorder %s29, 0
      %p266 = por %p264, %p265
      %s268 = sadd.s32 %s267, 1
      %p271 = scmp.eq.s32.totalorder %s23, 1
      %p272 = scmp.ne.s32.totalorder %s267, %s269
      %p273 = scmp.eq.s32.totalorder %s23, 0
      %p274 = por %p272, %p273
      %p275 = scmp.ne.s32.totalorder %s267, %s269
      %p276 = scmp.eq.s32.totalorder %s28, 1
      %p277 = por %p275, %p276
      %p278 = scmp.ne.s32.totalorder %s269, %s270
      %p279 = scmp.eq.s32.totalorder %s28, 0
      %p280 = por %p278, %p279
      %p281 = scmp.ne.s32.totalorder %s269, %s270
      %p282 = scmp.eq.s32.totalorder %s29, 1
      %p283 = por %p281, %p282
      %p285 = scmp.ne.s32.totalorder %s270, %s284
      %p286 = scmp.eq.s32.totalorder %s29, 0
      %p287 = por %p285, %p286
      %s289 = sadd.s32 %s288, 1
      %p292 = scmp.eq.s32.totalorder %s23, 1
      %p293 = scmp.ne.s32.totalorder %s288, %s290
      %p294 = scmp.eq.s32.totalorder %s23, 0
      %p295 = por %p293, %p294
      %p296 = scmp.ne.s32.totalorder %s288, %s290
      %p297 = scmp.eq.s32.totalorder %s28, 1
      %p298 = por %p296, %p297
      %p299 = scmp.ne.s32.totalorder %s290, %s291
      %p300 = scmp.eq.s32.totalorder %s28, 0
      %p301 = por %p299, %p300
      %p302 = scmp.ne.s32.totalorder %s290, %s291
      %p303 = scmp.eq.s32.totalorder %s29, 1
      %p304 = por %p302, %p303
      %p306 = scmp.ne.s32.totalorder %s291, %s305
      %p307 = scmp.eq.s32.totalorder %s29, 0
      %p308 = por %p306, %p307
      %s309 = ssub.s32 %s23, %s30
      %p310 = scmp.eq.s32.totalorder %s309, 0
      %s312 = sadd.s32 %s311, 1
      %s313 = scalar_select %p310, %s311, %s312
      %p316 = pneg %p310
      %p317 = scmp.eq.s32.totalorder %s23, 1
      %p318 = por %p316, %p317
      %p319 = scmp.ne.s32.totalorder %s311, %s314
      %p320 = scmp.eq.s32.totalorder %s23, 0
      %p321 = por %p319, %p320
      %p322 = scmp.ne.s32.totalorder %s311, %s314
      %p323 = scmp.eq.s32.totalorder %s28, 1
      %p324 = por %p322, %p323
      %p325 = scmp.ne.s32.totalorder %s314, %s315
      %p326 = scmp.eq.s32.totalorder %s28, 0
      %p327 = por %p325, %p326
      %p328 = scmp.ne.s32.totalorder %s314, %s315
      %p329 = scmp.eq.s32.totalorder %s29, 1
      %p330 = por %p328, %p329
      %p332 = scmp.ne.s32.totalorder %s315, %s331
      %p333 = scmp.eq.s32.totalorder %s29, 0
      %p334 = por %p332, %p333
      %p335 = scmp.le.s32.totalorder 1, %s23
      %p336 = scmp.lt.s32.totalorder %s23, 3
      %p337 = pnand %p335, %p336
      %p338 = pneg %p337
      // Predicated region
      $region9: #{tpu_custom_call.1} parent=5 // pred_check
        _
      $region10: #{tpu_custom_call.1} parent=5 // pred_check_branch
        %340 = sbr.rel (%p337) target = $region12
      $region11: #{tpu_custom_call.1} parent=5 // pred_region
        %s341 = ssub.s32 %s23, 1
        // Predicated region
        $region13: #{tpu_custom_call.1} parent=11 // pred_check
          %p342 = pneg %p70
        $region14: #{tpu_custom_call.1} parent=11 // pred_check_branch
          %344 = sbr.rel (%p342) target = $region16
        $region15: #{tpu_custom_call.1} parent=11 // pred_region
          %s346 = ssub.s32 4096, 4096
          %347 = vsyncadd [#allocation3], %s346
          %s348 = sshll.u32 [#allocation2], 4
          %s349 = int_to_ptr.vmem [resolvable:$true] %s348
          %354 = dma.hbm_to_vmem [thread:$0]  %s1, 4096, %s349, [#allocation3], 128, 128, 8
        $region16: #{tpu_custom_call.1} parent=11 // pred_fallthru
          _
        // Predicated region
        $region17: #{tpu_custom_call.1} parent=11 // pred_check
          %p355 = pneg %p91
        $region18: #{tpu_custom_call.1} parent=11 // pred_check_branch
          %357 = sbr.rel (%p355) target = $region20
        $region19: #{tpu_custom_call.1} parent=11 // pred_region
          _
        $region20: #{tpu_custom_call.1} parent=11 // pred_fallthru
          _
        // Predicated region
        $region21: #{tpu_custom_call.1} parent=11 // pred_check
          %p358 = pneg %p112
        $region22: #{tpu_custom_call.1} parent=11 // pred_check_branch
          %360 = sbr.rel (%p358) target = $region24
        $region23: #{tpu_custom_call.1} parent=11 // pred_region
          _
        $region24: #{tpu_custom_call.1} parent=11 // pred_fallthru
          _
        // Predicated region
        $region25: #{tpu_custom_call.1} parent=11 // pred_check
          %p361 = pneg %p133
        $region26: #{tpu_custom_call.1} parent=11 // pred_check_branch
          %363 = sbr.rel (%p361) target = $region28
        $region27: #{tpu_custom_call.1} parent=11 // pred_region
          _
        $region28: #{tpu_custom_call.1} parent=11 // pred_fallthru
          _
        // Predicated region
        $region29: #{tpu_custom_call.1} parent=11 // pred_check
          %p364 = pneg %p154
        $region30: #{tpu_custom_call.1} parent=11 // pred_check_branch
          %366 = sbr.rel (%p364) target = $region32
        $region31: #{tpu_custom_call.1} parent=11 // pred_region
          _
        $region32: #{tpu_custom_call.1} parent=11 // pred_fallthru
          _
        // Predicated region
        $region33: #{tpu_custom_call.1} parent=11 // pred_check
          %p367 = pneg %p175
        $region34: #{tpu_custom_call.1} parent=11 // pred_check_branch
          %369 = sbr.rel (%p367) target = $region36
        $region35: #{tpu_custom_call.1} parent=11 // pred_region
          _
        $region36: #{tpu_custom_call.1} parent=11 // pred_fallthru
          _
        // Predicated region
        $region37: #{tpu_custom_call.1} parent=11 // pred_check
          %p370 = pneg %p196
        $region38: #{tpu_custom_call.1} parent=11 // pred_check_branch
          %372 = sbr.rel (%p370) target = $region40
        $region39: #{tpu_custom_call.1} parent=11 // pred_region
          _
        $region40: #{tpu_custom_call.1} parent=11 // pred_fallthru
          _
        // Predicated region
        $region41: #{tpu_custom_call.1} parent=11 // pred_check
          %p373 = pneg %p217
        $region42: #{tpu_custom_call.1} parent=11 // pred_check_branch
          %375 = sbr.rel (%p373) target = $region44
        $region43: #{tpu_custom_call.1} parent=11 // pred_region
          _
        $region44: #{tpu_custom_call.1} parent=11 // pred_fallthru
          _
        // Predicated region
        $region45: #{tpu_custom_call.1} parent=11 // pred_check
          %p376 = pneg %p238
        $region46: #{tpu_custom_call.1} parent=11 // pred_check_branch
          %378 = sbr.rel (%p376) target = $region48
        $region47: #{tpu_custom_call.1} parent=11 // pred_region
          _
        $region48: #{tpu_custom_call.1} parent=11 // pred_fallthru
          _
        // Predicated region
        $region49: #{tpu_custom_call.1} parent=11 // pred_check
          %p379 = pneg %p259
        $region50: #{tpu_custom_call.1} parent=11 // pred_check_branch
          %381 = sbr.rel (%p379) target = $region52
        $region51: #{tpu_custom_call.1} parent=11 // pred_region
          _
        $region52: #{tpu_custom_call.1} parent=11 // pred_fallthru
          _
        // Predicated region
        $region53: #{tpu_custom_call.1} parent=11 // pred_check
          %p382 = pneg %p280
        $region54: #{tpu_custom_call.1} parent=11 // pred_check_branch
          %384 = sbr.rel (%p382) target = $region56
        $region55: #{tpu_custom_call.1} parent=11 // pred_region
          _
        $region56: #{tpu_custom_call.1} parent=11 // pred_fallthru
          _
        // Predicated region
        $region57: #{tpu_custom_call.1} parent=11 // pred_check
          %p385 = pneg %p301
        $region58: #{tpu_custom_call.1} parent=11 // pred_check_branch
          %387 = sbr.rel (%p385) target = $region60
        $region59: #{tpu_custom_call.1} parent=11 // pred_region
          _
        $region60: #{tpu_custom_call.1} parent=11 // pred_fallthru
          _
      $region12: #{tpu_custom_call.1} parent=5 // pred_fallthru
        _
      %p388 = scmp.lt.s32.totalorder %s23, 2
      // Predicated region
      $region61: #{tpu_custom_call.1} parent=5 // pred_check
        %p389 = pneg %p388
      $region62: #{tpu_custom_call.1} parent=5 // pred_check_branch
        %391 = sbr.rel (%p389) target = $region64
      $region63: #{tpu_custom_call.1} parent=5 // pred_region
        // Predicated region
        $region65: #{tpu_custom_call.1} parent=63 // pred_check
          %p392 = pneg %p43
        $region66: #{tpu_custom_call.1} parent=63 // pred_check_branch
          %394 = sbr.rel (%p392) target = $region68
        $region67: #{tpu_custom_call.1} parent=63 // pred_region
          %s395 = smul.u32 16, %s23
          %p396 = scmp.lt.s32.totalorder %s395, 31
          %s397 = scalar_select %p396, %s395, 31
          %s398 = smul.addr %s397, 2
          %s399 = smul.addr %s398, 8
          %s400 = scalar_lea.vmem %s0, %s399
          %s401 = smul.u32 16, %s23
        $region68: #{tpu_custom_call.1} parent=63 // pred_fallthru
          _
      $region64: #{tpu_custom_call.1} parent=5 // pred_fallthru
        _
      %p402 = scmp.le.s32.totalorder 1, %s23
      %p403 = scmp.lt.s32.totalorder %s23, 3
      %p404 = pnand %p402, %p403
      %p405 = pneg %p404
      // Predicated region
      $region69: #{tpu_custom_call.1} parent=5 // pred_check
        _
      $region70: #{tpu_custom_call.1} parent=5 // pred_check_branch
        %407 = sbr.rel (%p404) target = $region72
      $region71: #{tpu_custom_call.1} parent=5 // pred_region
        %s408 = ssub.s32 %s23, 1
        // Predicated region
        $region73: #{tpu_custom_call.1} parent=71 // pred_check
          %p409 = pneg %p70
        $region74: #{tpu_custom_call.1} parent=71 // pred_check_branch
          %411 = sbr.rel (%p409) target = $region76
        $region75: #{tpu_custom_call.1} parent=71 // pred_region
          %412 = dma.done [#allocation3], 4096
        $region76: #{tpu_custom_call.1} parent=71 // pred_fallthru
          _
        %s413 = smul.u32 16, %s28
        %p414 = scmp.lt.s32.totalorder %s413, 31
        %s415 = scalar_select %p414, %s413, 31
        %s416 = smul.addr %s415, 2
        %s417 = smul.addr %s416, 8
        %s418 = scalar_lea.vmem %s0, %s417
        %p419 = pneg %p49
        %p420 = pneg %p46
        %p421 = pneg %p70
        %p422 = pneg %p67
        %p423 = pneg %p91
        %p424 = pneg %p88
        %p425 = pneg %p112
        %p426 = pneg %p109
        %p427 = pneg %p133
        %p428 = pneg %p130
        %p429 = pneg %p154
        %p430 = pneg %p151
        %p431 = pneg %p175
        %p432 = pneg %p172
        %p433 = pneg %p196
        %p434 = pneg %p193
        %p435 = pneg %p217
        %p436 = pneg %p214
        %p437 = pneg %p238
        %p438 = pneg %p235
        %p439 = pneg %p259
        %p440 = pneg %p256
        %p441 = pneg %p280
        %p442 = pneg %p277
        %p443 = pneg %p301
        %p444 = pneg %p298
        %p445 = pneg %p327
        %p446 = pneg %p324
        %s447 = sand.u32 %s314, 1
        %s448 = scalar_lea.sflag [#allocation4], %s447
        %s449 = sand.u32 %s314, 1
        %s450 = smul.addr %s449, 128
        %s451 = scalar_lea.vmem [#allocation5], %s450
        %s452 = smul.u32 16, %s28
        %p453 = scmp.lt.s32.totalorder %s452, 31
        %s454 = scalar_select %p453, %s452, 31
        %s455 = smul.addr %s454, 2
        %s456 = smul.addr %s455, 8
        %s457 = scalar_lea.vmem %s0, %s456
        %s458 = smul.u32 16, %s28
        %s459 = smul.u32 16, %s28
        %v460 = vld [vmem:[%s457] sm:$0xff]
        %v461 = vld [vmem:[%s457 + $0x8] sm:$0xff]
        %v462 = vld [vmem:[%s457 + $0x10] sm:$0xff]
        %v463 = vld [vmem:[%s457 + $0x18] sm:$0xff]
        %v464 = vld [vmem:[%s457 + $0x20] sm:$0xff]
        %v465 = vld [vmem:[%s457 + $0x28] sm:$0xff]
        %v466 = vld [vmem:[%s457 + $0x30] sm:$0xff]
        %v467 = vld [vmem:[%s457 + $0x38] sm:$0xff]
        %v468 = vld [vmem:[%s457 + $0x40] sm:$0xff]
        %v469 = vld [vmem:[%s457 + $0x48] sm:$0xff]
        %v470 = vld [vmem:[%s457 + $0x50] sm:$0xff]
        %v471 = vld [vmem:[%s457 + $0x58] sm:$0xff]
        %v472 = vld [vmem:[%s457 + $0x60] sm:$0xff]
        %v473 = vld [vmem:[%s457 + $0x68] sm:$0xff]
        %v474 = vld [vmem:[%s457 + $0x70] sm:$0xff]
        %v475 = vld [vmem:[%s457 + $0x78] sm:$0xff]
        %v476 = vld [vmem:[%s457 + $0x80] sm:$0xff]
        %v477 = vld [vmem:[%s457 + $0x88] sm:$0xff]
        %v478 = vld [vmem:[%s457 + $0x90] sm:$0xff]
        %v479 = vld [vmem:[%s457 + $0x98] sm:$0xff]
        %v480 = vld [vmem:[%s457 + $0xa0] sm:$0xff]
        %v481 = vld [vmem:[%s457 + $0xa8] sm:$0xff]
        %v482 = vld [vmem:[%s457 + $0xb0] sm:$0xff]
        %v483 = vld [vmem:[%s457 + $0xb8] sm:$0xff]
        %v484 = vld [vmem:[%s457 + $0xc0] sm:$0xff]
        %v485 = vld [vmem:[%s457 + $0xc8] sm:$0xff]
        %v486 = vld [vmem:[%s457 + $0xd0] sm:$0xff]
        %v487 = vld [vmem:[%s457 + $0xd8] sm:$0xff]
        %v488 = vld [vmem:[%s457 + $0xe0] sm:$0xff]
        %v489 = vld [vmem:[%s457 + $0xe8] sm:$0xff]
        %v490 = vld [vmem:[%s457 + $0xf0] sm:$0xff]
        %v491 = vld [vmem:[%s457 + $0xf8] sm:$0xff]
        %v492 = vld [vmem:[#allocation2] sm:$0xff]
        %v493 = vld [vmem:[#allocation2 + $0x8] sm:$0xff]
        %v494 = vld [vmem:[#allocation2 + $0x10] sm:$0xff]
        %v495 = vld [vmem:[#allocation2 + $0x18] sm:$0xff]
        %v496 = vld [vmem:[#allocation2 + $0x20] sm:$0xff]
        %v497 = vld [vmem:[#allocation2 + $0x28] sm:$0xff]
        %v498 = vld [vmem:[#allocation2 + $0x30] sm:$0xff]
        %v499 = vld [vmem:[#allocation2 + $0x38] sm:$0xff]
        %v500 = vld [vmem:[#allocation2 + $0x40] sm:$0xff]
        %v501 = vld [vmem:[#allocation2 + $0x48] sm:$0xff]
        %v502 = vld [vmem:[#allocation2 + $0x50] sm:$0xff]
        %v503 = vld [vmem:[#allocation2 + $0x58] sm:$0xff]
        %v504 = vld [vmem:[#allocation2 + $0x60] sm:$0xff]
        %v505 = vld [vmem:[#allocation2 + $0x68] sm:$0xff]
        %v506 = vld [vmem:[#allocation2 + $0x70] sm:$0xff]
        %v507 = vld [vmem:[#allocation2 + $0x78] sm:$0xff]
        %v508 = vld [vmem:[#allocation2 + $0x80] sm:$0xff]
        %v509 = vld [vmem:[#allocation2 + $0x88] sm:$0xff]
        %v510 = vld [vmem:[#allocation2 + $0x90] sm:$0xff]
        %v511 = vld [vmem:[#allocation2 + $0x98] sm:$0xff]
        %v512 = vld [vmem:[#allocation2 + $0xa0] sm:$0xff]
        %v513 = vld [vmem:[#allocation2 + $0xa8] sm:$0xff]
        %v514 = vld [vmem:[#allocation2 + $0xb0] sm:$0xff]
        %v515 = vld [vmem:[#allocation2 + $0xb8] sm:$0xff]
        %v516 = vld [vmem:[#allocation2 + $0xc0] sm:$0xff]
        %v517 = vld [vmem:[#allocation2 + $0xc8] sm:$0xff]
        %v518 = vld [vmem:[#allocation2 + $0xd0] sm:$0xff]
        %v519 = vld [vmem:[#allocation2 + $0xd8] sm:$0xff]
        %v520 = vld [vmem:[#allocation2 + $0xe0] sm:$0xff]
        %v521 = vld [vmem:[#allocation2 + $0xe8] sm:$0xff]
        %v522 = vld [vmem:[#allocation2 + $0xf0] sm:$0xff]
        %v523 = vld [vmem:[#allocation2 + $0xf8] sm:$0xff]
        %v524 = vld [vmem:[%s2] sm:$0x1]
        %v526 = vlaneseq
        %v527 = vshrl.u32 %v526, 7
        %v528 = vsub.s32 0, %v527
        %v529 = vrot.slane %v524, %v528
        %531 = vmatprep.subr.mxu0 0.0
        %532 = vmatpush1.msra.mxu0 %v492
        %533 = vmatprep.subr.mxu0 0.0
        %534 = vmatpush1.msra.mxu0 %v493
        %535 = vmatprep.subr.mxu0 0.0
        %536 = vmatpush1.msra.mxu0 %v494
        %537 = vmatprep.subr.mxu0 0.0
        %538 = vmatpush1.msra.mxu0 %v495
        %539 = vmatprep.subr.mxu0 0.0
        %540 = vmatpush1.msra.mxu0 %v496
        %541 = vmatprep.subr.mxu0 0.0
        %542 = vmatpush1.msra.mxu0 %v497
        %543 = vmatprep.subr.mxu0 0.0
        %544 = vmatpush1.msra.mxu0 %v498
        %545 = vmatprep.subr.mxu0 0.0
        %546 = vmatpush1.msra.mxu0 %v499
        %547 = vmatprep.subr.mxu0 0.0
        %548 = vmatpush1.msra.mxu0 %v500
        %549 = vmatprep.subr.mxu0 0.0
        %550 = vmatpush1.msra.mxu0 %v501
        %551 = vmatprep.subr.mxu0 0.0
        %552 = vmatpush1.msra.mxu0 %v502
        %553 = vmatprep.subr.mxu0 0.0
        %554 = vmatpush1.msra.mxu0 %v503
        %555 = vmatprep.subr.mxu0 0.0
        %556 = vmatpush1.msra.mxu0 %v504
        %557 = vmatprep.subr.mxu0 0.0
        %558 = vmatpush1.msra.mxu0 %v505
        %559 = vmatprep.subr.mxu0 0.0
        %560 = vmatpush1.msra.mxu0 %v506
        %561 = vmatprep.subr.mxu0 0.0
        %562 = vmatpush1.msra.mxu0 %v507
        %563 = vmatprep.subr.mxu0 0.0
        %564 = vmatpush1.msra.mxu0 %v508
        %565 = vmatprep.subr.mxu0 0.0
        %566 = vmatpush1.msra.mxu0 %v509
        %567 = vmatprep.subr.mxu0 0.0
        %568 = vmatpush1.msra.mxu0 %v510
        %569 = vmatprep.subr.mxu0 0.0
        %570 = vmatpush1.msra.mxu0 %v511
        %571 = vmatprep.subr.mxu0 0.0
        %572 = vmatpush1.msra.mxu0 %v512
        %573 = vmatprep.subr.mxu0 0.0
        %574 = vmatpush1.msra.mxu0 %v513
        %575 = vmatprep.subr.mxu0 0.0
        %576 = vmatpush1.msra.mxu0 %v514
        %577 = vmatprep.subr.mxu0 0.0
        %578 = vmatpush1.msra.mxu0 %v515
        %579 = vmatprep.subr.mxu0 0.0
        %580 = vmatpush1.msra.mxu0 %v516
        %581 = vmatprep.subr.mxu0 0.0
        %582 = vmatpush1.msra.mxu0 %v517
        %583 = vmatprep.subr.mxu0 0.0
        %584 = vmatpush1.msra.mxu0 %v518
        %585 = vmatprep.subr.mxu0 0.0
        %586 = vmatpush1.msra.mxu0 %v519
        %587 = vmatprep.subr.mxu0 0.0
        %588 = vmatpush1.msra.mxu0 %v520
        %589 = vmatprep.subr.mxu0 0.0
        %590 = vmatpush1.msra.mxu0 %v521
        %591 = vmatprep.subr.mxu0 0.0
        %592 = vmatpush1.msra.mxu0 %v522
        %593 = vmatprep.subr.mxu0 0.0
        %594 = vmatpush1.msra.mxu0 %v523
        %595 = vmatprep.mubr.f32.mxu0 %v461
        %596 = vmatmul.mubr.f32.gmra.mrb[0].mxu0 %v460
        %v597 = vpop.f32.mrb[0].mxu0
        %v598 = vadd.f32 %v529, %v597
        %v599 = vpop.f32.mrb[0].mxu0
        %600 = vmatprep.mubr.f32.mxu0 %v463
        %601 = vmatmul.mubr.f32.gmra.mrb[0].mxu0 %v462
        %v602 = vpop.f32.mrb[0].mxu0
        %v603 = vadd.f32 %v529, %v602
        %v604 = vpop.f32.mrb[0].mxu0
        %605 = vmatprep.mubr.f32.mxu0 %v465
        %606 = vmatmul.mubr.f32.gmra.mrb[0].mxu0 %v464
        %v607 = vpop.f32.mrb[0].mxu0
        %v608 = vadd.f32 %v529, %v607
        %v609 = vpop.f32.mrb[0].mxu0
        %610 = vmatprep.mubr.f32.mxu0 %v467
        %611 = vmatmul.mubr.f32.gmra.mrb[0].mxu0 %v466
        %v612 = vpop.f32.mrb[0].mxu0
        %v613 = vadd.f32 %v529, %v612
        %v614 = vpop.f32.mrb[0].mxu0
        %615 = vmatprep.mubr.f32.mxu0 %v469
        %616 = vmatmul.mubr.f32.gmra.mrb[0].mxu0 %v468
        %v617 = vpop.f32.mrb[0].mxu0
        %v618 = vadd.f32 %v529, %v617
        %v619 = vpop.f32.mrb[0].mxu0
        %620 = vmatprep.mubr.f32.mxu0 %v471
        %621 = vmatmul.mubr.f32.gmra.mrb[0].mxu0 %v470
        %v622 = vpop.f32.mrb[0].mxu0
        %v623 = vadd.f32 %v529, %v622
        %v624 = vpop.f32.mrb[0].mxu0
        %625 = vmatprep.mubr.f32.mxu0 %v473
        %626 = vmatmul.mubr.f32.gmra.mrb[0].mxu0 %v472
        %v627 = vpop.f32.mrb[0].mxu0
        %v628 = vadd.f32 %v529, %v627
        %v629 = vpop.f32.mrb[0].mxu0
        %630 = vmatprep.mubr.f32.mxu0 %v475
        %631 = vmatmul.mubr.f32.gmra.mrb[0].mxu0 %v474
        %v632 = vpop.f32.mrb[0].mxu0
        %v633 = vadd.f32 %v529, %v632
        %v634 = vpop.f32.mrb[0].mxu0
        %635 = vmatprep.mubr.f32.mxu0 %v477
        %636 = vmatmul.mubr.f32.gmra.mrb[0].mxu0 %v476
        %v637 = vpop.f32.mrb[0].mxu0
        %v638 = vadd.f32 %v529, %v637
        %v639 = vpop.f32.mrb[0].mxu0
        %640 = vmatprep.mubr.f32.mxu0 %v479
        %641 = vmatmul.mubr.f32.gmra.mrb[0].mxu0 %v478
        %v642 = vpop.f32.mrb[0].mxu0
        %v643 = vadd.f32 %v529, %v642
        %v644 = vpop.f32.mrb[0].mxu0
        %645 = vmatprep.mubr.f32.mxu0 %v481
        %646 = vmatmul.mubr.f32.gmra.mrb[0].mxu0 %v480
        %v647 = vpop.f32.mrb[0].mxu0
        %v648 = vadd.f32 %v529, %v647
        %v649 = vpop.f32.mrb[0].mxu0
        %650 = vmatprep.mubr.f32.mxu0 %v483
        %651 = vmatmul.mubr.f32.gmra.mrb[0].mxu0 %v482
        %v652 = vpop.f32.mrb[0].mxu0
        %v653 = vadd.f32 %v529, %v652
        %v654 = vpop.f32.mrb[0].mxu0
        %655 = vmatprep.mubr.f32.mxu0 %v485
        %656 = vmatmul.mubr.f32.gmra.mrb[0].mxu0 %v484
        %v657 = vpop.f32.mrb[0].mxu0
        %v658 = vadd.f32 %v529, %v657
        %v659 = vpop.f32.mrb[0].mxu0
        %660 = vmatprep.mubr.f32.mxu0 %v487
        %661 = vmatmul.mubr.f32.gmra.mrb[0].mxu0 %v486
        %v662 = vpop.f32.mrb[0].mxu0
        %v663 = vadd.f32 %v529, %v662
        %v664 = vpop.f32.mrb[0].mxu0
        %665 = vmatprep.mubr.f32.mxu0 %v489
        %666 = vmatmul.mubr.f32.gmra.mrb[0].mxu0 %v488
        %v667 = vpop.f32.mrb[0].mxu0
        %v668 = vadd.f32 %v529, %v667
        %v669 = vpop.f32.mrb[0].mxu0
        %670 = vmatprep.mubr.f32.mxu0 %v491
        %671 = vmatmul.mubr.f32.gmra.mrb[0].mxu0 %v490
        %v672 = vpop.f32.mrb[0].mxu0
        %v673 = vadd.f32 %v529, %v672
        %v674 = vpop.f32.mrb[0].mxu0
        %675 = vdwg.mxu0
        %v676 = vmax.f32 %v598, 0.0
        %v677 = vmax.f32 %v603, 0.0
        %v678 = vmax.f32 %v608, 0.0
        %v679 = vmax.f32 %v613, 0.0
        %v680 = vmax.f32 %v618, 0.0
        %v681 = vmax.f32 %v623, 0.0
        %v682 = vmax.f32 %v628, 0.0
        %v683 = vmax.f32 %v633, 0.0
        %v684 = vmax.f32 %v638, 0.0
        %v685 = vmax.f32 %v643, 0.0
        %v686 = vmax.f32 %v648, 0.0
        %v687 = vmax.f32 %v653, 0.0
        %v688 = vmax.f32 %v658, 0.0
        %v689 = vmax.f32 %v663, 0.0
        %v690 = vmax.f32 %v668, 0.0
        %v691 = vmax.f32 %v673, 0.0
        %v692 = vld [vmem:[%s3] sm:$0xff]
        %v693 = vld [vmem:[%s3 + $0x8] sm:$0xff]
        %v694 = vld [vmem:[%s3 + $0x10] sm:$0xff]
        %v695 = vld [vmem:[%s3 + $0x18] sm:$0xff]
        %v696 = vld [vmem:[%s3 + $0x20] sm:$0xff]
        %v697 = vld [vmem:[%s3 + $0x28] sm:$0xff]
        %v698 = vld [vmem:[%s3 + $0x30] sm:$0xff]
        %v699 = vld [vmem:[%s3 + $0x38] sm:$0xff]
        %v700 = vld [vmem:[%s3 + $0x40] sm:$0xff]
        %v701 = vld [vmem:[%s3 + $0x48] sm:$0xff]
        %v702 = vld [vmem:[%s3 + $0x50] sm:$0xff]
        %v703 = vld [vmem:[%s3 + $0x58] sm:$0xff]
        %v704 = vld [vmem:[%s3 + $0x60] sm:$0xff]
        %v705 = vld [vmem:[%s3 + $0x68] sm:$0xff]
        %v706 = vld [vmem:[%s3 + $0x70] sm:$0xff]
        %v707 = vld [vmem:[%s3 + $0x78] sm:$0xff]
        %708 = vmatprep.subr.mxu0 0.0
        %709 = vmatpush1.msra.mxu0 %v692
        %710 = vmatprep.subr.mxu0 0.0
        %711 = vmatpush1.msra.mxu0 %v693
        %712 = vmatprep.subr.mxu0 0.0
        %713 = vmatpush1.msra.mxu0 %v694
        %714 = vmatprep.subr.mxu0 0.0
        %715 = vmatpush1.msra.mxu0 %v695
        %716 = vmatprep.subr.mxu0 0.0
        %717 = vmatpush1.msra.mxu0 %v696
        %718 = vmatprep.subr.mxu0 0.0
        %719 = vmatpush1.msra.mxu0 %v697
        %720 = vmatprep.subr.mxu0 0.0
        %721 = vmatpush1.msra.mxu0 %v698
        %722 = vmatprep.subr.mxu0 0.0
        %723 = vmatpush1.msra.mxu0 %v699
        %724 = vmatprep.subr.mxu0 0.0
        %725 = vmatpush1.msra.mxu0 %v700
        %726 = vmatprep.subr.mxu0 0.0
        %727 = vmatpush1.msra.mxu0 %v701
        %728 = vmatprep.subr.mxu0 0.0
        %729 = vmatpush1.msra.mxu0 %v702
        %730 = vmatprep.subr.mxu0 0.0
        %731 = vmatpush1.msra.mxu0 %v703
        %732 = vmatprep.subr.mxu0 0.0
        %733 = vmatpush1.msra.mxu0 %v704
        %734 = vmatprep.subr.mxu0 0.0
        %735 = vmatpush1.msra.mxu0 %v705
        %736 = vmatprep.subr.mxu0 0.0
        %737 = vmatpush1.msra.mxu0 %v706
        %738 = vmatprep.subr.mxu0 0.0
        %739 = vmatpush1.msra.mxu0 %v707
        %740 = vmatprep.subr.mxu0 0.0
        %741 = vmatpush1.msra.mxu0 0.0
        %742 = vmatprep.subr.mxu0 0.0
        %743 = vmatpush1.msra.mxu0 0.0
        %744 = vmatprep.subr.mxu0 0.0
        %745 = vmatpush1.msra.mxu0 0.0
        %746 = vmatprep.subr.mxu0 0.0
        %747 = vmatpush1.msra.mxu0 0.0
        %748 = vmatprep.subr.mxu0 0.0
        %749 = vmatpush1.msra.mxu0 0.0
        %750 = vmatprep.subr.mxu0 0.0
        %751 = vmatpush1.msra.mxu0 0.0
        %752 = vmatprep.subr.mxu0 0.0
        %753 = vmatpush1.msra.mxu0 0.0
        %754 = vmatprep.subr.mxu0 0.0
        %755 = vmatpush1.msra.mxu0 0.0
        %756 = vmatprep.subr.mxu0 0.0
        %757 = vmatpush1.msra.mxu0 0.0
        %758 = vmatprep.subr.mxu0 0.0
        %759 = vmatpush1.msra.mxu0 0.0
        %760 = vmatprep.subr.mxu0 0.0
        %761 = vmatpush1.msra.mxu0 0.0
        %762 = vmatprep.subr.mxu0 0.0
        %763 = vmatpush1.msra.mxu0 0.0
        %764 = vmatprep.subr.mxu0 0.0
        %765 = vmatpush1.msra.mxu0 0.0
        %766 = vmatprep.subr.mxu0 0.0
        %767 = vmatpush1.msra.mxu0 0.0
        %768 = vmatprep.subr.mxu0 0.0
        %769 = vmatpush1.msra.mxu0 0.0
        %770 = vmatprep.subr.mxu0 0.0
        %771 = vmatpush1.msra.mxu0 0.0
        %772 = vmatprep.mubr.f32.mxu0 0.0
        %773 = vmatmul.mubr.f32.gmra.mrb[0].mxu0 %v676
        %v774 = vpop.f32.mrb[0].mxu0
        %v775 = vadd.f32 0.0, %v774
        %v776 = vpop.f32.mrb[0].mxu0
        %777 = vmatprep.mubr.f32.mxu0 0.0
        %778 = vmatmul.mubr.f32.gmra.mrb[0].mxu0 %v677
        %v779 = vpop.f32.mrb[0].mxu0
        %v780 = vadd.f32 0.0, %v779
        %v781 = vpop.f32.mrb[0].mxu0
        %782 = vmatprep.mubr.f32.mxu0 0.0
        %783 = vmatmul.mubr.f32.gmra.mrb[0].mxu0 %v678
        %v784 = vpop.f32.mrb[0].mxu0
        %v785 = vadd.f32 0.0, %v784
        %v786 = vpop.f32.mrb[0].mxu0
        %787 = vmatprep.mubr.f32.mxu0 0.0
        %788 = vmatmul.mubr.f32.gmra.mrb[0].mxu0 %v679
        %v789 = vpop.f32.mrb[0].mxu0
        %v790 = vadd.f32 0.0, %v789
        %v791 = vpop.f32.mrb[0].mxu0
        %792 = vmatprep.mubr.f32.mxu0 0.0
        %793 = vmatmul.mubr.f32.gmra.mrb[0].mxu0 %v680
        %v794 = vpop.f32.mrb[0].mxu0
        %v795 = vadd.f32 0.0, %v794
        %v796 = vpop.f32.mrb[0].mxu0
        %797 = vmatprep.mubr.f32.mxu0 0.0
        %798 = vmatmul.mubr.f32.gmra.mrb[0].mxu0 %v681
        %v799 = vpop.f32.mrb[0].mxu0
        %v800 = vadd.f32 0.0, %v799
        %v801 = vpop.f32.mrb[0].mxu0
        %802 = vmatprep.mubr.f32.mxu0 0.0
        %803 = vmatmul.mubr.f32.gmra.mrb[0].mxu0 %v682
        %v804 = vpop.f32.mrb[0].mxu0
        %v805 = vadd.f32 0.0, %v804
        %v806 = vpop.f32.mrb[0].mxu0
        %807 = vmatprep.mubr.f32.mxu0 0.0
        %808 = vmatmul.mubr.f32.gmra.mrb[0].mxu0 %v683
        %v809 = vpop.f32.mrb[0].mxu0
        %v810 = vadd.f32 0.0, %v809
        %v811 = vpop.f32.mrb[0].mxu0
        %812 = vmatprep.mubr.f32.mxu0 0.0
        %813 = vmatmul.mubr.f32.gmra.mrb[0].mxu0 %v684
        %v814 = vpop.f32.mrb[0].mxu0
        %v815 = vadd.f32 0.0, %v814
        %v816 = vpop.f32.mrb[0].mxu0
        %817 = vmatprep.mubr.f32.mxu0 0.0
        %818 = vmatmul.mubr.f32.gmra.mrb[0].mxu0 %v685
        %v819 = vpop.f32.mrb[0].mxu0
        %v820 = vadd.f32 0.0, %v819
        %v821 = vpop.f32.mrb[0].mxu0
        %822 = vmatprep.mubr.f32.mxu0 0.0
        %823 = vmatmul.mubr.f32.gmra.mrb[0].mxu0 %v686
        %v824 = vpop.f32.mrb[0].mxu0
        %v825 = vadd.f32 0.0, %v824
        %v826 = vpop.f32.mrb[0].mxu0
        %827 = vmatprep.mubr.f32.mxu0 0.0
        %828 = vmatmul.mubr.f32.gmra.mrb[0].mxu0 %v687
        %v829 = vpop.f32.mrb[0].mxu0
        %v830 = vadd.f32 0.0, %v829
        %v831 = vpop.f32.mrb[0].mxu0
        %832 = vmatprep.mubr.f32.mxu0 0.0
        %833 = vmatmul.mubr.f32.gmra.mrb[0].mxu0 %v688
        %v834 = vpop.f32.mrb[0].mxu0
        %v835 = vadd.f32 0.0, %v834
        %v836 = vpop.f32.mrb[0].mxu0
        %837 = vmatprep.mubr.f32.mxu0 0.0
        %838 = vmatmul.mubr.f32.gmra.mrb[0].mxu0 %v689
        %v839 = vpop.f32.mrb[0].mxu0
        %v840 = vadd.f32 0.0, %v839
        %v841 = vpop.f32.mrb[0].mxu0
        %842 = vmatprep.mubr.f32.mxu0 0.0
        %843 = vmatmul.mubr.f32.gmra.mrb[0].mxu0 %v690
        %v844 = vpop.f32.mrb[0].mxu0
        %v845 = vadd.f32 0.0, %v844
        %v846 = vpop.f32.mrb[0].mxu0
        %847 = vmatprep.mubr.f32.mxu0 0.0
        %848 = vmatmul.mubr.f32.gmra.mrb[0].mxu0 %v691
        %v849 = vpop.f32.mrb[0].mxu0
        %v850 = vadd.f32 0.0, %v849
        %v851 = vpop.f32.mrb[0].mxu0
        %852 = vdwg.mxu0
        %v853 = vmul.f32 %v775, 0.5
        %v854 = vmul.f32 %v780, 0.5
        %v855 = vmul.f32 %v785, 0.5
        %v856 = vmul.f32 %v790, 0.5
        %v857 = vmul.f32 %v795, 0.5
        %v858 = vmul.f32 %v800, 0.5
        %v859 = vmul.f32 %v805, 0.5
        %v860 = vmul.f32 %v810, 0.5
        %v861 = vmul.f32 %v815, 0.5
        %v862 = vmul.f32 %v820, 0.5
        %v863 = vmul.f32 %v825, 0.5
        %v864 = vmul.f32 %v830, 0.5
        %v865 = vmul.f32 %v835, 0.5
        %v866 = vmul.f32 %v840, 0.5
        %v867 = vmul.f32 %v845, 0.5
        %v868 = vmul.f32 %v850, 0.5
        %v869 = vmul.f32 %v775, 0.70710677
        %v870 = vmul.f32 %v780, 0.70710677
        %v871 = vmul.f32 %v785, 0.70710677
        %v872 = vmul.f32 %v790, 0.70710677
        %v873 = vmul.f32 %v795, 0.70710677
        %v874 = vmul.f32 %v800, 0.70710677
        %v875 = vmul.f32 %v805, 0.70710677
        %v876 = vmul.f32 %v810, 0.70710677
        %v877 = vmul.f32 %v815, 0.70710677
        %v878 = vmul.f32 %v820, 0.70710677
        %v879 = vmul.f32 %v825, 0.70710677
        %v880 = vmul.f32 %v830, 0.70710677
        %v881 = vmul.f32 %v835, 0.70710677
        %v882 = vmul.f32 %v840, 0.70710677
        %v883 = vmul.f32 %v845, 0.70710677
        %v884 = vmul.f32 %v850, 0.70710677
        %v885 = verf.f32.pop %v869
        %v886 = verf.f32.pop %v870
        %v887 = verf.f32.pop %v871
        %v888 = verf.f32.pop %v872
        %v889 = verf.f32.pop %v873
        %v890 = verf.f32.pop %v874
        %v891 = verf.f32.pop %v875
        %v892 = verf.f32.pop %v876
        %v893 = verf.f32.pop %v877
        %v894 = verf.f32.pop %v878
        %v895 = verf.f32.pop %v879
        %v896 = verf.f32.pop %v880
        %v897 = verf.f32.pop %v881
        %v898 = verf.f32.pop %v882
        %v899 = verf.f32.pop %v883
        %v900 = verf.f32.pop %v884
        %v901 = vadd.f32 %v885, 1.0
        %v902 = vadd.f32 %v886, 1.0
        %v903 = vadd.f32 %v887, 1.0
        %v904 = vadd.f32 %v888, 1.0
        %v905 = vadd.f32 %v889, 1.0
        %v906 = vadd.f32 %v890, 1.0
        %v907 = vadd.f32 %v891, 1.0
        %v908 = vadd.f32 %v892, 1.0
        %v909 = vadd.f32 %v893, 1.0
        %v910 = vadd.f32 %v894, 1.0
        %v911 = vadd.f32 %v895, 1.0
        %v912 = vadd.f32 %v896, 1.0
        %v913 = vadd.f32 %v897, 1.0
        %v914 = vadd.f32 %v898, 1.0
        %v915 = vadd.f32 %v899, 1.0
        %v916 = vadd.f32 %v900, 1.0
        %v917 = vmul.f32 %v853, %v901
        %v918 = vmul.f32 %v854, %v902
        %v919 = vmul.f32 %v855, %v903
        %v920 = vmul.f32 %v856, %v904
        %v921 = vmul.f32 %v857, %v905
        %v922 = vmul.f32 %v858, %v906
        %v923 = vmul.f32 %v859, %v907
        %v924 = vmul.f32 %v860, %v908
        %v925 = vmul.f32 %v861, %v909
        %v926 = vmul.f32 %v862, %v910
        %v927 = vmul.f32 %v863, %v911
        %v928 = vmul.f32 %v864, %v912
        %v929 = vmul.f32 %v865, %v913
        %v930 = vmul.f32 %v866, %v914
        %v931 = vmul.f32 %v867, %v915
        %v932 = vmul.f32 %v868, %v916
        %v933 = vld [vmem:[%s4] sm:$0xf]
        %vm934 = vcmask 31744
        %v936 = vsel %vm934, %v917, 0
        %v939 = vsel %vm934, %v918, 0
        %v942 = vsel %vm934, %v919, 0
        %v945 = vsel %vm934, %v920, 0
        %v948 = vsel %vm934, %v921, 0
        %v951 = vsel %vm934, %v922, 0
        %v954 = vsel %vm934, %v923, 0
        %v957 = vsel %vm934, %v924, 0
        %v960 = vsel %vm934, %v925, 0
        %v963 = vsel %vm934, %v926, 0
        %v966 = vsel %vm934, %v927, 0
        %v969 = vsel %vm934, %v928, 0
        %v972 = vsel %vm934, %v929, 0
        %v975 = vsel %vm934, %v930, 0
        %v978 = vsel %vm934, %v931, 0
        %v981 = vsel %vm934, %v932, 0
        %vm983 = vcmask 1043456
        %v985 = vsel %vm983, %v933, 0
        %987 = vmatprep.subr.mxu0 0.0
        %988 = vmatpush1.msra.mxu0 %v985
        %989 = vmatprep.subr.mxu0 0.0
        %990 = vmatpush1.msra.mxu0 0.0
        %991 = vmatprep.subr.mxu0 0.0
        %992 = vmatpush1.msra.mxu0 0.0
        %993 = vmatprep.subr.mxu0 0.0
        %994 = vmatpush1.msra.mxu0 0.0
        %995 = vmatprep.subr.mxu0 0.0
        %996 = vmatpush1.msra.mxu0 0.0
        %997 = vmatprep.subr.mxu0 0.0
        %998 = vmatpush1.msra.mxu0 0.0
        %999 = vmatprep.subr.mxu0 0.0
        %1000 = vmatpush1.msra.mxu0 0.0
        %1001 = vmatprep.subr.mxu0 0.0
        %1002 = vmatpush1.msra.mxu0 0.0
        %1003 = vmatprep.subr.mxu0 0.0
        %1004 = vmatpush1.msra.mxu0 0.0
        %1005 = vmatprep.subr.mxu0 0.0
        %1006 = vmatpush1.msra.mxu0 0.0
        %1007 = vmatprep.subr.mxu0 0.0
        %1008 = vmatpush1.msra.mxu0 0.0
        %1009 = vmatprep.subr.mxu0 0.0
        %1010 = vmatpush1.msra.mxu0 0.0
        %1011 = vmatprep.subr.mxu0 0.0
        %1012 = vmatpush1.msra.mxu0 0.0
        %1013 = vmatprep.subr.mxu0 0.0
        %1014 = vmatpush1.msra.mxu0 0.0
        %1015 = vmatprep.subr.mxu0 0.0
        %1016 = vmatpush1.msra.mxu0 0.0
        %1017 = vmatprep.subr.mxu0 0.0
        %1018 = vmatpush1.msra.mxu0 0.0
        %1019 = vmatprep.subr.mxu0 0.0
        %1020 = vmatpush1.msra.mxu0 0.0
        %1021 = vmatprep.subr.mxu0 0.0
        %1022 = vmatpush1.msra.mxu0 0.0
        %1023 = vmatprep.subr.mxu0 0.0
        %1024 = vmatpush1.msra.mxu0 0.0
        %1025 = vmatprep.subr.mxu0 0.0
        %1026 = vmatpush1.msra.mxu0 0.0
        %1027 = vmatprep.subr.mxu0 0.0
        %1028 = vmatpush1.msra.mxu0 0.0
        %1029 = vmatprep.subr.mxu0 0.0
        %1030 = vmatpush1.msra.mxu0 0.0
        %1031 = vmatprep.subr.mxu0 0.0
        %1032 = vmatpush1.msra.mxu0 0.0
        %1033 = vmatprep.subr.mxu0 0.0
        %1034 = vmatpush1.msra.mxu0 0.0
        %1035 = vmatprep.subr.mxu0 0.0
        %1036 = vmatpush1.msra.mxu0 0.0
        %1037 = vmatprep.subr.mxu0 0.0
        %1038 = vmatpush1.msra.mxu0 0.0
        %1039 = vmatprep.subr.mxu0 0.0
        %1040 = vmatpush1.msra.mxu0 0.0
        %1041 = vmatprep.subr.mxu0 0.0
        %1042 = vmatpush1.msra.mxu0 0.0
        %1043 = vmatprep.subr.mxu0 0.0
        %1044 = vmatpush1.msra.mxu0 0.0
        %1045 = vmatprep.subr.mxu0 0.0
        %1046 = vmatpush1.msra.mxu0 0.0
        %1047 = vmatprep.subr.mxu0 0.0
        %1048 = vmatpush1.msra.mxu0 0.0
        %1049 = vmatprep.subr.mxu0 0.0
        %1050 = vmatpush1.msra.mxu0 0.0
        %1051 = vmatprep.mubr.f32.mxu0 0.0
        %1052 = vmatmul.mubr.f32.gmra.mrb[0].mxu0 %v936
        %v1053 = vpop.f32.mrb[0].mxu0
        %v1054 = vadd.f32 0.0, %v1053
        %v1055 = vpop.f32.mrb[0].mxu0
        %1056 = vmatprep.mubr.f32.mxu0 0.0
        %1057 = vmatmul.mubr.f32.gmra.mrb[0].mxu0 %v939
        %v1058 = vpop.f32.mrb[0].mxu0
        %v1059 = vadd.f32 0.0, %v1058
        %v1060 = vpop.f32.mrb[0].mxu0
        %1061 = vmatprep.mubr.f32.mxu0 0.0
        %1062 = vmatmul.mubr.f32.gmra.mrb[0].mxu0 %v942
        %v1063 = vpop.f32.mrb[0].mxu0
        %v1064 = vadd.f32 0.0, %v1063
        %v1065 = vpop.f32.mrb[0].mxu0
        %1066 = vmatprep.mubr.f32.mxu0 0.0
        %1067 = vmatmul.mubr.f32.gmra.mrb[0].mxu0 %v945
        %v1068 = vpop.f32.mrb[0].mxu0
        %v1069 = vadd.f32 0.0, %v1068
        %v1070 = vpop.f32.mrb[0].mxu0
        %1071 = vmatprep.mubr.f32.mxu0 0.0
        %1072 = vmatmul.mubr.f32.gmra.mrb[0].mxu0 %v948
        %v1073 = vpop.f32.mrb[0].mxu0
        %v1074 = vadd.f32 0.0, %v1073
        %v1075 = vpop.f32.mrb[0].mxu0
        %1076 = vmatprep.mubr.f32.mxu0 0.0
        %1077 = vmatmul.mubr.f32.gmra.mrb[0].mxu0 %v951
        %v1078 = vpop.f32.mrb[0].mxu0
        %v1079 = vadd.f32 0.0, %v1078
        %v1080 = vpop.f32.mrb[0].mxu0
        %1081 = vmatprep.mubr.f32.mxu0 0.0
        %1082 = vmatmul.mubr.f32.gmra.mrb[0].mxu0 %v954
        %v1083 = vpop.f32.mrb[0].mxu0
        %v1084 = vadd.f32 0.0, %v1083
        %v1085 = vpop.f32.mrb[0].mxu0
        %1086 = vmatprep.mubr.f32.mxu0 0.0
        %1087 = vmatmul.mubr.f32.gmra.mrb[0].mxu0 %v957
        %v1088 = vpop.f32.mrb[0].mxu0
        %v1089 = vadd.f32 0.0, %v1088
        %v1090 = vpop.f32.mrb[0].mxu0
        %1091 = vmatprep.mubr.f32.mxu0 0.0
        %1092 = vmatmul.mubr.f32.gmra.mrb[0].mxu0 %v960
        %v1093 = vpop.f32.mrb[0].mxu0
        %v1094 = vadd.f32 0.0, %v1093
        %v1095 = vpop.f32.mrb[0].mxu0
        %1096 = vmatprep.mubr.f32.mxu0 0.0
        %1097 = vmatmul.mubr.f32.gmra.mrb[0].mxu0 %v963
        %v1098 = vpop.f32.mrb[0].mxu0
        %v1099 = vadd.f32 0.0, %v1098
        %v1100 = vpop.f32.mrb[0].mxu0
        %1101 = vmatprep.mubr.f32.mxu0 0.0
        %1102 = vmatmul.mubr.f32.gmra.mrb[0].mxu0 %v966
        %v1103 = vpop.f32.mrb[0].mxu0
        %v1104 = vadd.f32 0.0, %v1103
        %v1105 = vpop.f32.mrb[0].mxu0
        %1106 = vmatprep.mubr.f32.mxu0 0.0
        %1107 = vmatmul.mubr.f32.gmra.mrb[0].mxu0 %v969
        %v1108 = vpop.f32.mrb[0].mxu0
        %v1109 = vadd.f32 0.0, %v1108
        %v1110 = vpop.f32.mrb[0].mxu0
        %1111 = vmatprep.mubr.f32.mxu0 0.0
        %1112 = vmatmul.mubr.f32.gmra.mrb[0].mxu0 %v972
        %v1113 = vpop.f32.mrb[0].mxu0
        %v1114 = vadd.f32 0.0, %v1113
        %v1115 = vpop.f32.mrb[0].mxu0
        %1116 = vmatprep.mubr.f32.mxu0 0.0
        %1117 = vmatmul.mubr.f32.gmra.mrb[0].mxu0 %v975
        %v1118 = vpop.f32.mrb[0].mxu0
        %v1119 = vadd.f32 0.0, %v1118
        %v1120 = vpop.f32.mrb[0].mxu0
        %1121 = vmatprep.mubr.f32.mxu0 0.0
        %1122 = vmatmul.mubr.f32.gmra.mrb[0].mxu0 %v978
        %v1123 = vpop.f32.mrb[0].mxu0
        %v1124 = vadd.f32 0.0, %v1123
        %v1125 = vpop.f32.mrb[0].mxu0
        %1126 = vmatprep.mubr.f32.mxu0 0.0
        %1127 = vmatmul.mubr.f32.gmra.mrb[0].mxu0 %v981
        %v1128 = vpop.f32.mrb[0].mxu0
        %v1129 = vadd.f32 0.0, %v1128
        %v1130 = vpop.f32.mrb[0].mxu0
        %1131 = vdwg.mxu0
        %v1132 = vadd.f32 %v676, %v1054
        %v1133 = vadd.f32 %v677, %v1059
        %v1134 = vadd.f32 %v678, %v1064
        %v1135 = vadd.f32 %v679, %v1069
        %v1136 = vadd.f32 %v680, %v1074
        %v1137 = vadd.f32 %v681, %v1079
        %v1138 = vadd.f32 %v682, %v1084
        %v1139 = vadd.f32 %v683, %v1089
        %v1140 = vadd.f32 %v684, %v1094
        %v1141 = vadd.f32 %v685, %v1099
        %v1142 = vadd.f32 %v686, %v1104
        %v1143 = vadd.f32 %v687, %v1109
        %v1144 = vadd.f32 %v688, %v1114
        %v1145 = vadd.f32 %v689, %v1119
        %v1146 = vadd.f32 %v690, %v1124
        %v1147 = vadd.f32 %v691, %v1129
        %s1148 = scalar_lea.vmem %s3, 128
        %v1149 = vld [vmem:[%s1148] sm:$0xff]
        %v1150 = vld [vmem:[%s1148 + $0x8] sm:$0xff]
        %v1151 = vld [vmem:[%s1148 + $0x10] sm:$0xff]
        %v1152 = vld [vmem:[%s1148 + $0x18] sm:$0xff]
        %v1153 = vld [vmem:[%s1148 + $0x20] sm:$0xff]
        %v1154 = vld [vmem:[%s1148 + $0x28] sm:$0xff]
        %v1155 = vld [vmem:[%s1148 + $0x30] sm:$0xff]
        %v1156 = vld [vmem:[%s1148 + $0x38] sm:$0xff]
        %v1157 = vld [vmem:[%s1148 + $0x40] sm:$0xff]
        %v1158 = vld [vmem:[%s1148 + $0x48] sm:$0xff]
        %v1159 = vld [vmem:[%s1148 + $0x50] sm:$0xff]
        %v1160 = vld [vmem:[%s1148 + $0x58] sm:$0xff]
        %v1161 = vld [vmem:[%s1148 + $0x60] sm:$0xff]
        %v1162 = vld [vmem:[%s1148 + $0x68] sm:$0xff]
        %v1163 = vld [vmem:[%s1148 + $0x70] sm:$0xff]
        %v1164 = vld [vmem:[%s1148 + $0x78] sm:$0xff]
        %1165 = vmatprep.subr.mxu0 0.0
        %1166 = vmatpush1.msra.mxu0 %v1149
        %1167 = vmatprep.subr.mxu0 0.0
        %1168 = vmatpush1.msra.mxu0 %v1150
        %1169 = vmatprep.subr.mxu0 0.0
        %1170 = vmatpush1.msra.mxu0 %v1151
        %1171 = vmatprep.subr.mxu0 0.0
        %1172 = vmatpush1.msra.mxu0 %v1152
        %1173 = vmatprep.subr.mxu0 0.0
        %1174 = vmatpush1.msra.mxu0 %v1153
        %1175 = vmatprep.subr.mxu0 0.0
        %1176 = vmatpush1.msra.mxu0 %v1154
        %1177 = vmatprep.subr.mxu0 0.0
        %1178 = vmatpush1.msra.mxu0 %v1155
        %1179 = vmatprep.subr.mxu0 0.0
        %1180 = vmatpush1.msra.mxu0 %v1156
        %1181 = vmatprep.subr.mxu0 0.0
        %1182 = vmatpush1.msra.mxu0 %v1157
        %1183 = vmatprep.subr.mxu0 0.0
        %1184 = vmatpush1.msra.mxu0 %v1158
        %1185 = vmatprep.subr.mxu0 0.0
        %1186 = vmatpush1.msra.mxu0 %v1159
        %1187 = vmatprep.subr.mxu0 0.0
        %1188 = vmatpush1.msra.mxu0 %v1160
        %1189 = vmatprep.subr.mxu0 0.0
        %1190 = vmatpush1.msra.mxu0 %v1161
        %1191 = vmatprep.subr.mxu0 0.0
        %1192 = vmatpush1.msra.mxu0 %v1162
        %1193 = vmatprep.subr.mxu0 0.0
        %1194 = vmatpush1.msra.mxu0 %v1163
        %1195 = vmatprep.subr.mxu0 0.0
        %1196 = vmatpush1.msra.mxu0 %v1164
        %1197 = vmatprep.subr.mxu0 0.0
        %1198 = vmatpush1.msra.mxu0 0.0
        %1199 = vmatprep.subr.mxu0 0.0
        %1200 = vmatpush1.msra.mxu0 0.0
        %1201 = vmatprep.subr.mxu0 0.0
        %1202 = vmatpush1.msra.mxu0 0.0
        %1203 = vmatprep.subr.mxu0 0.0
        %1204 = vmatpush1.msra.mxu0 0.0
        %1205 = vmatprep.subr.mxu0 0.0
        %1206 = vmatpush1.msra.mxu0 0.0
        %1207 = vmatprep.subr.mxu0 0.0
        %1208 = vmatpush1.msra.mxu0 0.0
        %1209 = vmatprep.subr.mxu0 0.0
        %1210 = vmatpush1.msra.mxu0 0.0
        %1211 = vmatprep.subr.mxu0 0.0
        %1212 = vmatpush1.msra.mxu0 0.0
        %1213 = vmatprep.subr.mxu0 0.0
        %1214 = vmatpush1.msra.mxu0 0.0
        %1215 = vmatprep.subr.mxu0 0.0
        %1216 = vmatpush1.msra.mxu0 0.0
        %1217 = vmatprep.subr.mxu0 0.0
        %1218 = vmatpush1.msra.mxu0 0.0
        %1219 = vmatprep.subr.mxu0 0.0
        %1220 = vmatpush1.msra.mxu0 0.0
        %1221 = vmatprep.subr.mxu0 0.0
        %1222 = vmatpush1.msra.mxu0 0.0
        %1223 = vmatprep.subr.mxu0 0.0
        %1224 = vmatpush1.msra.mxu0 0.0
        %1225 = vmatprep.subr.mxu0 0.0
        %1226 = vmatpush1.msra.mxu0 0.0
        %1227 = vmatprep.subr.mxu0 0.0
        %1228 = vmatpush1.msra.mxu0 0.0
        %1229 = vmatprep.mubr.f32.mxu0 0.0
        %1230 = vmatmul.mubr.f32.gmra.mrb[0].mxu0 %v1132
        %v1231 = vpop.f32.mrb[0].mxu0
        %v1232 = vadd.f32 0.0, %v1231
        %v1233 = vpop.f32.mrb[0].mxu0
        %1234 = vmatprep.mubr.f32.mxu0 0.0
        %1235 = vmatmul.mubr.f32.gmra.mrb[0].mxu0 %v1133
        %v1236 = vpop.f32.mrb[0].mxu0
        %v1237 = vadd.f32 0.0, %v1236
        %v1238 = vpop.f32.mrb[0].mxu0
        %1239 = vmatprep.mubr.f32.mxu0 0.0
        %1240 = vmatmul.mubr.f32.gmra.mrb[0].mxu0 %v1134
        %v1241 = vpop.f32.mrb[0].mxu0
        %v1242 = vadd.f32 0.0, %v1241
        %v1243 = vpop.f32.mrb[0].mxu0
        %1244 = vmatprep.mubr.f32.mxu0 0.0
        %1245 = vmatmul.mubr.f32.gmra.mrb[0].mxu0 %v1135
        %v1246 = vpop.f32.mrb[0].mxu0
        %v1247 = vadd.f32 0.0, %v1246
        %v1248 = vpop.f32.mrb[0].mxu0
        %1249 = vmatprep.mubr.f32.mxu0 0.0
        %1250 = vmatmul.mubr.f32.gmra.mrb[0].mxu0 %v1136
        %v1251 = vpop.f32.mrb[0].mxu0
        %v1252 = vadd.f32 0.0, %v1251
        %v1253 = vpop.f32.mrb[0].mxu0
        %1254 = vmatprep.mubr.f32.mxu0 0.0
        %1255 = vmatmul.mubr.f32.gmra.mrb[0].mxu0 %v1137
        %v1256 = vpop.f32.mrb[0].mxu0
        %v1257 = vadd.f32 0.0, %v1256
        %v1258 = vpop.f32.mrb[0].mxu0
        %1259 = vmatprep.mubr.f32.mxu0 0.0
        %1260 = vmatmul.mubr.f32.gmra.mrb[0].mxu0 %v1138
        %v1261 = vpop.f32.mrb[0].mxu0
        %v1262 = vadd.f32 0.0, %v1261
        %v1263 = vpop.f32.mrb[0].mxu0
        %1264 = vmatprep.mubr.f32.mxu0 0.0
        %1265 = vmatmul.mubr.f32.gmra.mrb[0].mxu0 %v1139
        %v1266 = vpop.f32.mrb[0].mxu0
        %v1267 = vadd.f32 0.0, %v1266
        %v1268 = vpop.f32.mrb[0].mxu0
        %1269 = vmatprep.mubr.f32.mxu0 0.0
        %1270 = vmatmul.mubr.f32.gmra.mrb[0].mxu0 %v1140
        %v1271 = vpop.f32.mrb[0].mxu0
        %v1272 = vadd.f32 0.0, %v1271
        %v1273 = vpop.f32.mrb[0].mxu0
        %1274 = vmatprep.mubr.f32.mxu0 0.0
        %1275 = vmatmul.mubr.f32.gmra.mrb[0].mxu0 %v1141
        %v1276 = vpop.f32.mrb[0].mxu0
        %v1277 = vadd.f32 0.0, %v1276
        %v1278 = vpop.f32.mrb[0].mxu0
        %1279 = vmatprep.mubr.f32.mxu0 0.0
        %1280 = vmatmul.mubr.f32.gmra.mrb[0].mxu0 %v1142
        %v1281 = vpop.f32.mrb[0].mxu0
        %v1282 = vadd.f32 0.0, %v1281
        %v1283 = vpop.f32.mrb[0].mxu0
        %1284 = vmatprep.mubr.f32.mxu0 0.0
        %1285 = vmatmul.mubr.f32.gmra.mrb[0].mxu0 %v1143
        %v1286 = vpop.f32.mrb[0].mxu0
        %v1287 = vadd.f32 0.0, %v1286
        %v1288 = vpop.f32.mrb[0].mxu0
        %1289 = vmatprep.mubr.f32.mxu0 0.0
        %1290 = vmatmul.mubr.f32.gmra.mrb[0].mxu0 %v1144
        %v1291 = vpop.f32.mrb[0].mxu0
        %v1292 = vadd.f32 0.0, %v1291
        %v1293 = vpop.f32.mrb[0].mxu0
        %1294 = vmatprep.mubr.f32.mxu0 0.0
        %1295 = vmatmul.mubr.f32.gmra.mrb[0].mxu0 %v1145
        %v1296 = vpop.f32.mrb[0].mxu0
        %v1297 = vadd.f32 0.0, %v1296
        %v1298 = vpop.f32.mrb[0].mxu0
        %1299 = vmatprep.mubr.f32.mxu0 0.0
        %1300 = vmatmul.mubr.f32.gmra.mrb[0].mxu0 %v1146
        %v1301 = vpop.f32.mrb[0].mxu0
        %v1302 = vadd.f32 0.0, %v1301
        %v1303 = vpop.f32.mrb[0].mxu0
        %1304 = vmatprep.mubr.f32.mxu0 0.0
        %1305 = vmatmul.mubr.f32.gmra.mrb[0].mxu0 %v1147
        %v1306 = vpop.f32.mrb[0].mxu0
        %v1307 = vadd.f32 0.0, %v1306
        %v1308 = vpop.f32.mrb[0].mxu0
        %1309 = vdwg.mxu0
        %v1310 = vmul.f32 %v1232, 0.5
        %v1311 = vmul.f32 %v1237, 0.5
        %v1312 = vmul.f32 %v1242, 0.5
        %v1313 = vmul.f32 %v1247, 0.5
        %v1314 = vmul.f32 %v1252, 0.5
        %v1315 = vmul.f32 %v1257, 0.5
        %v1316 = vmul.f32 %v1262, 0.5
        %v1317 = vmul.f32 %v1267, 0.5
        %v1318 = vmul.f32 %v1272, 0.5
        %v1319 = vmul.f32 %v1277, 0.5
        %v1320 = vmul.f32 %v1282, 0.5
        %v1321 = vmul.f32 %v1287, 0.5
        %v1322 = vmul.f32 %v1292, 0.5
        %v1323 = vmul.f32 %v1297, 0.5
        %v1324 = vmul.f32 %v1302, 0.5
        %v1325 = vmul.f32 %v1307, 0.5
        %v1326 = vmul.f32 %v1232, 0.70710677
        %v1327 = vmul.f32 %v1237, 0.70710677
        %v1328 = vmul.f32 %v1242, 0.70710677
        %v1329 = vmul.f32 %v1247, 0.70710677
        %v1330 = vmul.f32 %v1252, 0.70710677
        %v1331 = vmul.f32 %v1257, 0.70710677
        %v1332 = vmul.f32 %v1262, 0.70710677
        %v1333 = vmul.f32 %v1267, 0.70710677
        %v1334 = vmul.f32 %v1272, 0.70710677
        %v1335 = vmul.f32 %v1277, 0.70710677
        %v1336 = vmul.f32 %v1282, 0.70710677
        %v1337 = vmul.f32 %v1287, 0.70710677
        %v1338 = vmul.f32 %v1292, 0.70710677
        %v1339 = vmul.f32 %v1297, 0.70710677
        %v1340 = vmul.f32 %v1302, 0.70710677
        %v1341 = vmul.f32 %v1307, 0.70710677
        %v1342 = verf.f32.pop %v1326
        %v1343 = verf.f32.pop %v1327
        %v1344 = verf.f32.pop %v1328
        %v1345 = verf.f32.pop %v1329
        %v1346 = verf.f32.pop %v1330
        %v1347 = verf.f32.pop %v1331
        %v1348 = verf.f32.pop %v1332
        %v1349 = verf.f32.pop %v1333
        %v1350 = verf.f32.pop %v1334
        %v1351 = verf.f32.pop %v1335
        %v1352 = verf.f32.pop %v1336
        %v1353 = verf.f32.pop %v1337
        %v1354 = verf.f32.pop %v1338
        %v1355 = verf.f32.pop %v1339
        %v1356 = verf.f32.pop %v1340
        %v1357 = verf.f32.pop %v1341
        %v1358 = vadd.f32 %v1342, 1.0
        %v1359 = vadd.f32 %v1343, 1.0
        %v1360 = vadd.f32 %v1344, 1.0
        %v1361 = vadd.f32 %v1345, 1.0
        %v1362 = vadd.f32 %v1346, 1.0
        %v1363 = vadd.f32 %v1347, 1.0
        %v1364 = vadd.f32 %v1348, 1.0
        %v1365 = vadd.f32 %v1349, 1.0
        %v1366 = vadd.f32 %v1350, 1.0
        %v1367 = vadd.f32 %v1351, 1.0
        %v1368 = vadd.f32 %v1352, 1.0
        %v1369 = vadd.f32 %v1353, 1.0
        %v1370 = vadd.f32 %v1354, 1.0
        %v1371 = vadd.f32 %v1355, 1.0
        %v1372 = vadd.f32 %v1356, 1.0
        %v1373 = vadd.f32 %v1357, 1.0
        %v1374 = vmul.f32 %v1310, %v1358
        %v1375 = vmul.f32 %v1311, %v1359
        %v1376 = vmul.f32 %v1312, %v1360
        %v1377 = vmul.f32 %v1313, %v1361
        %v1378 = vmul.f32 %v1314, %v1362
        %v1379 = vmul.f32 %v1315, %v1363
        %v1380 = vmul.f32 %v1316, %v1364
        %v1381 = vmul.f32 %v1317, %v1365
        %v1382 = vmul.f32 %v1318, %v1366
        %v1383 = vmul.f32 %v1319, %v1367
        %v1384 = vmul.f32 %v1320, %v1368
        %v1385 = vmul.f32 %v1321, %v1369
        %v1386 = vmul.f32 %v1322, %v1370
        %v1387 = vmul.f32 %v1323, %v1371
        %v1388 = vmul.f32 %v1324, %v1372
        %v1389 = vmul.f32 %v1325, %v1373
        %s1390 = scalar_lea.vmem %s4, 4
        %v1391 = vld [vmem:[%s1390] sm:$0xf]
        %v1393 = vsel %vm934, %v1374, 0
        %v1396 = vsel %vm934, %v1375, 0
        %v1399 = vsel %vm934, %v1376, 0
        %v1402 = vsel %vm934, %v1377, 0
        %v1405 = vsel %vm934, %v1378, 0
        %v1408 = vsel %vm934, %v1379, 0
        %v1411 = vsel %vm934, %v1380, 0
        %v1414 = vsel %vm934, %v1381, 0
        %v1417 = vsel %vm934, %v1382, 0
        %v1420 = vsel %vm934, %v1383, 0
        %v1423 = vsel %vm934, %v1384, 0
        %v1426 = vsel %vm934, %v1385, 0
        %v1429 = vsel %vm934, %v1386, 0
        %v1432 = vsel %vm934, %v1387, 0
        %v1435 = vsel %vm934, %v1388, 0
        %v1438 = vsel %vm934, %v1389, 0
        %v1441 = vsel %vm983, %v1391, 0
        %1443 = vmatprep.subr.mxu0 0.0
        %1444 = vmatpush1.msra.mxu0 %v1441
        %1445 = vmatprep.subr.mxu0 0.0
        %1446 = vmatpush1.msra.mxu0 0.0
        %1447 = vmatprep.subr.mxu0 0.0
        %1448 = vmatpush1.msra.mxu0 0.0
        %1449 = vmatprep.subr.mxu0 0.0
        %1450 = vmatpush1.msra.mxu0 0.0
        %1451 = vmatprep.subr.mxu0 0.0
        %1452 = vmatpush1.msra.mxu0 0.0
        %1453 = vmatprep.subr.mxu0 0.0
        %1454 = vmatpush1.msra.mxu0 0.0
        %1455 = vmatprep.subr.mxu0 0.0
        %1456 = vmatpush1.msra.mxu0 0.0
        %1457 = vmatprep.subr.mxu0 0.0
        %1458 = vmatpush1.msra.mxu0 0.0
        %1459 = vmatprep.subr.mxu0 0.0
        %1460 = vmatpush1.msra.mxu0 0.0
        %1461 = vmatprep.subr.mxu0 0.0
        %1462 = vmatpush1.msra.mxu0 0.0
        %1463 = vmatprep.subr.mxu0 0.0
        %1464 = vmatpush1.msra.mxu0 0.0
        %1465 = vmatprep.subr.mxu0 0.0
        %1466 = vmatpush1.msra.mxu0 0.0
        %1467 = vmatprep.subr.mxu0 0.0
        %1468 = vmatpush1.msra.mxu0 0.0
        %1469 = vmatprep.subr.mxu0 0.0
        %1470 = vmatpush1.msra.mxu0 0.0
        %1471 = vmatprep.subr.mxu0 0.0
        %1472 = vmatpush1.msra.mxu0 0.0
        %1473 = vmatprep.subr.mxu0 0.0
        %1474 = vmatpush1.msra.mxu0 0.0
        %1475 = vmatprep.subr.mxu0 0.0
        %1476 = vmatpush1.msra.mxu0 0.0
        %1477 = vmatprep.subr.mxu0 0.0
        %1478 = vmatpush1.msra.mxu0 0.0
        %1479 = vmatprep.subr.mxu0 0.0
        %1480 = vmatpush1.msra.mxu0 0.0
        %1481 = vmatprep.subr.mxu0 0.0
        %1482 = vmatpush1.msra.mxu0 0.0
        %1483 = vmatprep.subr.mxu0 0.0
        %1484 = vmatpush1.msra.mxu0 0.0
        %1485 = vmatprep.subr.mxu0 0.0
        %1486 = vmatpush1.msra.mxu0 0.0
        %1487 = vmatprep.subr.mxu0 0.0
        %1488 = vmatpush1.msra.mxu0 0.0
        %1489 = vmatprep.subr.mxu0 0.0
        %1490 = vmatpush1.msra.mxu0 0.0
        %1491 = vmatprep.subr.mxu0 0.0
        %1492 = vmatpush1.msra.mxu0 0.0
        %1493 = vmatprep.subr.mxu0 0.0
        %1494 = vmatpush1.msra.mxu0 0.0
        %1495 = vmatprep.subr.mxu0 0.0
        %1496 = vmatpush1.msra.mxu0 0.0
        %1497 = vmatprep.subr.mxu0 0.0
        %1498 = vmatpush1.msra.mxu0 0.0
        %1499 = vmatprep.subr.mxu0 0.0
        %1500 = vmatpush1.msra.mxu0 0.0
        %1501 = vmatprep.subr.mxu0 0.0
        %1502 = vmatpush1.msra.mxu0 0.0
        %1503 = vmatprep.subr.mxu0 0.0
        %1504 = vmatpush1.msra.mxu0 0.0
        %1505 = vmatprep.subr.mxu0 0.0
        %1506 = vmatpush1.msra.mxu0 0.0
        %1507 = vmatprep.mubr.f32.mxu0 0.0
        %1508 = vmatmul.mubr.f32.gmra.mrb[0].mxu0 %v1393
        %v1509 = vpop.f32.mrb[0].mxu0
        %v1510 = vadd.f32 0.0, %v1509
        %v1511 = vpop.f32.mrb[0].mxu0
        %1512 = vmatprep.mubr.f32.mxu0 0.0
        %1513 = vmatmul.mubr.f32.gmra.mrb[0].mxu0 %v1396
        %v1514 = vpop.f32.mrb[0].mxu0
        %v1515 = vadd.f32 0.0, %v1514
        %v1516 = vpop.f32.mrb[0].mxu0
        %1517 = vmatprep.mubr.f32.mxu0 0.0
        %1518 = vmatmul.mubr.f32.gmra.mrb[0].mxu0 %v1399
        %v1519 = vpop.f32.mrb[0].mxu0
        %v1520 = vadd.f32 0.0, %v1519
        %v1521 = vpop.f32.mrb[0].mxu0
        %1522 = vmatprep.mubr.f32.mxu0 0.0
        %1523 = vmatmul.mubr.f32.gmra.mrb[0].mxu0 %v1402
        %v1524 = vpop.f32.mrb[0].mxu0
        %v1525 = vadd.f32 0.0, %v1524
        %v1526 = vpop.f32.mrb[0].mxu0
        %1527 = vmatprep.mubr.f32.mxu0 0.0
        %1528 = vmatmul.mubr.f32.gmra.mrb[0].mxu0 %v1405
        %v1529 = vpop.f32.mrb[0].mxu0
        %v1530 = vadd.f32 0.0, %v1529
        %v1531 = vpop.f32.mrb[0].mxu0
        %1532 = vmatprep.mubr.f32.mxu0 0.0
        %1533 = vmatmul.mubr.f32.gmra.mrb[0].mxu0 %v1408
        %v1534 = vpop.f32.mrb[0].mxu0
        %v1535 = vadd.f32 0.0, %v1534
        %v1536 = vpop.f32.mrb[0].mxu0
        %1537 = vmatprep.mubr.f32.mxu0 0.0
        %1538 = vmatmul.mubr.f32.gmra.mrb[0].mxu0 %v1411
        %v1539 = vpop.f32.mrb[0].mxu0
        %v1540 = vadd.f32 0.0, %v1539
        %v1541 = vpop.f32.mrb[0].mxu0
        %1542 = vmatprep.mubr.f32.mxu0 0.0
        %1543 = vmatmul.mubr.f32.gmra.mrb[0].mxu0 %v1414
        %v1544 = vpop.f32.mrb[0].mxu0
        %v1545 = vadd.f32 0.0, %v1544
        %v1546 = vpop.f32.mrb[0].mxu0
        %1547 = vmatprep.mubr.f32.mxu0 0.0
        %1548 = vmatmul.mubr.f32.gmra.mrb[0].mxu0 %v1417
        %v1549 = vpop.f32.mrb[0].mxu0
        %v1550 = vadd.f32 0.0, %v1549
        %v1551 = vpop.f32.mrb[0].mxu0
        %1552 = vmatprep.mubr.f32.mxu0 0.0
        %1553 = vmatmul.mubr.f32.gmra.mrb[0].mxu0 %v1420
        %v1554 = vpop.f32.mrb[0].mxu0
        %v1555 = vadd.f32 0.0, %v1554
        %v1556 = vpop.f32.mrb[0].mxu0
        %1557 = vmatprep.mubr.f32.mxu0 0.0
        %1558 = vmatmul.mubr.f32.gmra.mrb[0].mxu0 %v1423
        %v1559 = vpop.f32.mrb[0].mxu0
        %v1560 = vadd.f32 0.0, %v1559
        %v1561 = vpop.f32.mrb[0].mxu0
        %1562 = vmatprep.mubr.f32.mxu0 0.0
        %1563 = vmatmul.mubr.f32.gmra.mrb[0].mxu0 %v1426
        %v1564 = vpop.f32.mrb[0].mxu0
        %v1565 = vadd.f32 0.0, %v1564
        %v1566 = vpop.f32.mrb[0].mxu0
        %1567 = vmatprep.mubr.f32.mxu0 0.0
        %1568 = vmatmul.mubr.f32.gmra.mrb[0].mxu0 %v1429
        %v1569 = vpop.f32.mrb[0].mxu0
        %v1570 = vadd.f32 0.0, %v1569
        %v1571 = vpop.f32.mrb[0].mxu0
        %1572 = vmatprep.mubr.f32.mxu0 0.0
        %1573 = vmatmul.mubr.f32.gmra.mrb[0].mxu0 %v1432
        %v1574 = vpop.f32.mrb[0].mxu0
        %v1575 = vadd.f32 0.0, %v1574
        %v1576 = vpop.f32.mrb[0].mxu0
        %1577 = vmatprep.mubr.f32.mxu0 0.0
        %1578 = vmatmul.mubr.f32.gmra.mrb[0].mxu0 %v1435
        %v1579 = vpop.f32.mrb[0].mxu0
        %v1580 = vadd.f32 0.0, %v1579
        %v1581 = vpop.f32.mrb[0].mxu0
        %1582 = vmatprep.mubr.f32.mxu0 0.0
        %1583 = vmatmul.mubr.f32.gmra.mrb[0].mxu0 %v1438
        %v1584 = vpop.f32.mrb[0].mxu0
        %v1585 = vadd.f32 0.0, %v1584
        %v1586 = vpop.f32.mrb[0].mxu0
        %1587 = vdwg.mxu0
        %v1588 = vadd.f32 %v1132, %v1510
        %v1589 = vadd.f32 %v1133, %v1515
        %v1590 = vadd.f32 %v1134, %v1520
        %v1591 = vadd.f32 %v1135, %v1525
        %v1592 = vadd.f32 %v1136, %v1530
        %v1593 = vadd.f32 %v1137, %v1535
        %v1594 = vadd.f32 %v1138, %v1540
        %v1595 = vadd.f32 %v1139, %v1545
        %v1596 = vadd.f32 %v1140, %v1550
        %v1597 = vadd.f32 %v1141, %v1555
        %v1598 = vadd.f32 %v1142, %v1560
        %v1599 = vadd.f32 %v1143, %v1565
        %v1600 = vadd.f32 %v1144, %v1570
        %v1601 = vadd.f32 %v1145, %v1575
        %v1602 = vadd.f32 %v1146, %v1580
        %v1603 = vadd.f32 %v1147, %v1585
        %v1604 = vld [vmem:[%s5] sm:$0x1]
        %v1605 = vld [vmem:[%s6] sm:$0x1]
        %1606 = vadd.xlane.f32.xlu0 %v1588
        %v1607 = vpop.xlane.xlu0 %1606
        %1608 = vadd.xlane.f32.xlu0 %v1589
        %v1609 = vpop.xlane.xlu0 %1608
        %1610 = vadd.xlane.f32.xlu0 %v1590
        %v1611 = vpop.xlane.xlu0 %1610
        %1612 = vadd.xlane.f32.xlu0 %v1591
        %v1613 = vpop.xlane.xlu0 %1612
        %1614 = vadd.xlane.f32.xlu0 %v1592
        %v1615 = vpop.xlane.xlu0 %1614
        %1616 = vadd.xlane.f32.xlu0 %v1593
        %v1617 = vpop.xlane.xlu0 %1616
        %1618 = vadd.xlane.f32.xlu0 %v1594
        %v1619 = vpop.xlane.xlu0 %1618
        %1620 = vadd.xlane.f32.xlu0 %v1595
        %v1621 = vpop.xlane.xlu0 %1620
        %1622 = vadd.xlane.f32.xlu0 %v1596
        %v1623 = vpop.xlane.xlu0 %1622
        %1624 = vadd.xlane.f32.xlu0 %v1597
        %v1625 = vpop.xlane.xlu0 %1624
        %1626 = vadd.xlane.f32.xlu0 %v1598
        %v1627 = vpop.xlane.xlu0 %1626
        %1628 = vadd.xlane.f32.xlu0 %v1599
        %v1629 = vpop.xlane.xlu0 %1628
        %1630 = vadd.xlane.f32.xlu0 %v1600
        %v1631 = vpop.xlane.xlu0 %1630
        %1632 = vadd.xlane.f32.xlu0 %v1601
        %v1633 = vpop.xlane.xlu0 %1632
        %1634 = vadd.xlane.f32.xlu0 %v1602
        %v1635 = vpop.xlane.xlu0 %1634
        %1636 = vadd.xlane.f32.xlu0 %v1603
        %v1637 = vpop.xlane.xlu0 %1636
        %v1638 = vrcp.pop 128.0
        %v1639 = vmul.f32 %v1607, %v1638
        %v1640 = vmul.f32 %v1609, %v1638
        %v1641 = vmul.f32 %v1611, %v1638
        %v1642 = vmul.f32 %v1613, %v1638
        %v1643 = vmul.f32 %v1615, %v1638
        %v1644 = vmul.f32 %v1617, %v1638
        %v1645 = vmul.f32 %v1619, %v1638
        %v1646 = vmul.f32 %v1621, %v1638
        %v1647 = vmul.f32 %v1623, %v1638
        %v1648 = vmul.f32 %v1625, %v1638
        %v1649 = vmul.f32 %v1627, %v1638
        %v1650 = vmul.f32 %v1629, %v1638
        %v1651 = vmul.f32 %v1631, %v1638
        %v1652 = vmul.f32 %v1633, %v1638
        %v1653 = vmul.f32 %v1635, %v1638
        %v1654 = vmul.f32 %v1637, %v1638
        %v1655 = vsub.f32 %v1588, %v1639
        %v1656 = vsub.f32 %v1589, %v1640
        %v1657 = vsub.f32 %v1590, %v1641
        %v1658 = vsub.f32 %v1591, %v1642
        %v1659 = vsub.f32 %v1592, %v1643
        %v1660 = vsub.f32 %v1593, %v1644
        %v1661 = vsub.f32 %v1594, %v1645
        %v1662 = vsub.f32 %v1595, %v1646
        %v1663 = vsub.f32 %v1596, %v1647
        %v1664 = vsub.f32 %v1597, %v1648
        %v1665 = vsub.f32 %v1598, %v1649
        %v1666 = vsub.f32 %v1599, %v1650
        %v1667 = vsub.f32 %v1600, %v1651
        %v1668 = vsub.f32 %v1601, %v1652
        %v1669 = vsub.f32 %v1602, %v1653
        %v1670 = vsub.f32 %v1603, %v1654
        %v1671 = vmul.f32 %v1655, %v1655
        %v1672 = vmul.f32 %v1656, %v1656
        %v1673 = vmul.f32 %v1657, %v1657
        %v1674 = vmul.f32 %v1658, %v1658
        %v1675 = vmul.f32 %v1659, %v1659
        %v1676 = vmul.f32 %v1660, %v1660
        %v1677 = vmul.f32 %v1661, %v1661
        %v1678 = vmul.f32 %v1662, %v1662
        %v1679 = vmul.f32 %v1663, %v1663
        %v1680 = vmul.f32 %v1664, %v1664
        %v1681 = vmul.f32 %v1665, %v1665
        %v1682 = vmul.f32 %v1666, %v1666
        %v1683 = vmul.f32 %v1667, %v1667
        %v1684 = vmul.f32 %v1668, %v1668
        %v1685 = vmul.f32 %v1669, %v1669
        %v1686 = vmul.f32 %v1670, %v1670
        %1687 = vadd.xlane.f32.xlu0 %v1671
        %v1688 = vpop.xlane.xlu0 %1687
        %1689 = vadd.xlane.f32.xlu0 %v1672
        %v1690 = vpop.xlane.xlu0 %1689
        %1691 = vadd.xlane.f32.xlu0 %v1673
        %v1692 = vpop.xlane.xlu0 %1691
        %1693 = vadd.xlane.f32.xlu0 %v1674
        %v1694 = vpop.xlane.xlu0 %1693
        %1695 = vadd.xlane.f32.xlu0 %v1675
        %v1696 = vpop.xlane.xlu0 %1695
        %1697 = vadd.xlane.f32.xlu0 %v1676
        %v1698 = vpop.xlane.xlu0 %1697
        %1699 = vadd.xlane.f32.xlu0 %v1677
        %v1700 = vpop.xlane.xlu0 %1699
        %1701 = vadd.xlane.f32.xlu0 %v1678
        %v1702 = vpop.xlane.xlu0 %1701
        %1703 = vadd.xlane.f32.xlu0 %v1679
        %v1704 = vpop.xlane.xlu0 %1703
        %1705 = vadd.xlane.f32.xlu0 %v1680
        %v1706 = vpop.xlane.xlu0 %1705
        %1707 = vadd.xlane.f32.xlu0 %v1681
        %v1708 = vpop.xlane.xlu0 %1707
        %1709 = vadd.xlane.f32.xlu0 %v1682
        %v1710 = vpop.xlane.xlu0 %1709
        %1711 = vadd.xlane.f32.xlu0 %v1683
        %v1712 = vpop.xlane.xlu0 %1711
        %1713 = vadd.xlane.f32.xlu0 %v1684
        %v1714 = vpop.xlane.xlu0 %1713
        %1715 = vadd.xlane.f32.xlu0 %v1685
        %v1716 = vpop.xlane.xlu0 %1715
        %1717 = vadd.xlane.f32.xlu0 %v1686
        %v1718 = vpop.xlane.xlu0 %1717
        %v1719 = vmul.f32 %v1688, %v1638
        %v1720 = vmul.f32 %v1690, %v1638
        %v1721 = vmul.f32 %v1692, %v1638
        %v1722 = vmul.f32 %v1694, %v1638
        %v1723 = vmul.f32 %v1696, %v1638
        %v1724 = vmul.f32 %v1698, %v1638
        %v1725 = vmul.f32 %v1700, %v1638
        %v1726 = vmul.f32 %v1702, %v1638
        %v1727 = vmul.f32 %v1704, %v1638
        %v1728 = vmul.f32 %v1706, %v1638
        %v1729 = vmul.f32 %v1708, %v1638
        %v1730 = vmul.f32 %v1710, %v1638
        %v1731 = vmul.f32 %v1712, %v1638
        %v1732 = vmul.f32 %v1714, %v1638
        %v1733 = vmul.f32 %v1716, %v1638
        %v1734 = vmul.f32 %v1718, %v1638
        %v1735 = vadd.f32 %v1719, 1e-05
        %v1736 = vadd.f32 %v1720, 1e-05
        %v1737 = vadd.f32 %v1721, 1e-05
        %v1738 = vadd.f32 %v1722, 1e-05
        %v1739 = vadd.f32 %v1723, 1e-05
        %v1740 = vadd.f32 %v1724, 1e-05
        %v1741 = vadd.f32 %v1725, 1e-05
        %v1742 = vadd.f32 %v1726, 1e-05
        %v1743 = vadd.f32 %v1727, 1e-05
        %v1744 = vadd.f32 %v1728, 1e-05
        %v1745 = vadd.f32 %v1729, 1e-05
        %v1746 = vadd.f32 %v1730, 1e-05
        %v1747 = vadd.f32 %v1731, 1e-05
        %v1748 = vadd.f32 %v1732, 1e-05
        %v1749 = vadd.f32 %v1733, 1e-05
        %v1750 = vadd.f32 %v1734, 1e-05
        %v1751 = vrsqrt.pop %v1735
        %v1752 = vrsqrt.pop %v1736
        %v1753 = vrsqrt.pop %v1737
        %v1754 = vrsqrt.pop %v1738
        %v1755 = vrsqrt.pop %v1739
        %v1756 = vrsqrt.pop %v1740
        %v1757 = vrsqrt.pop %v1741
        %v1758 = vrsqrt.pop %v1742
        %v1759 = vrsqrt.pop %v1743
        %v1760 = vrsqrt.pop %v1744
        %v1761 = vrsqrt.pop %v1745
        %v1762 = vrsqrt.pop %v1746
        %v1763 = vrsqrt.pop %v1747
        %v1764 = vrsqrt.pop %v1748
        %v1765 = vrsqrt.pop %v1749
        %v1766 = vrsqrt.pop %v1750
        %v1767 = vmul.f32 %v1655, %v1751
        %v1768 = vmul.f32 %v1656, %v1752
        %v1769 = vmul.f32 %v1657, %v1753
        %v1770 = vmul.f32 %v1658, %v1754
        %v1771 = vmul.f32 %v1659, %v1755
        %v1772 = vmul.f32 %v1660, %v1756
        %v1773 = vmul.f32 %v1661, %v1757
        %v1774 = vmul.f32 %v1662, %v1758
        %v1775 = vmul.f32 %v1663, %v1759
        %v1776 = vmul.f32 %v1664, %v1760
        %v1777 = vmul.f32 %v1665, %v1761
        %v1778 = vmul.f32 %v1666, %v1762
        %v1779 = vmul.f32 %v1667, %v1763
        %v1780 = vmul.f32 %v1668, %v1764
        %v1781 = vmul.f32 %v1669, %v1765
        %v1782 = vmul.f32 %v1670, %v1766
        %v1784 = vlaneseq
        %v1785 = vshrl.u32 %v1784, 7
        %v1786 = vsub.s32 0, %v1785
        %v1787 = vrot.slane %v1604, %v1786
        %v1789 = vmul.f32 %v1767, %v1787
        %v1790 = vmul.f32 %v1768, %v1787
        %v1791 = vmul.f32 %v1769, %v1787
        %v1792 = vmul.f32 %v1770, %v1787
        %v1793 = vmul.f32 %v1771, %v1787
        %v1794 = vmul.f32 %v1772, %v1787
        %v1795 = vmul.f32 %v1773, %v1787
        %v1796 = vmul.f32 %v1774, %v1787
        %v1797 = vmul.f32 %v1775, %v1787
        %v1798 = vmul.f32 %v1776, %v1787
        %v1799 = vmul.f32 %v1777, %v1787
        %v1800 = vmul.f32 %v1778, %v1787
        %v1801 = vmul.f32 %v1779, %v1787
        %v1802 = vmul.f32 %v1780, %v1787
        %v1803 = vmul.f32 %v1781, %v1787
        %v1804 = vmul.f32 %v1782, %v1787
        %v1806 = vlaneseq
        %v1807 = vshrl.u32 %v1806, 7
        %v1808 = vsub.s32 0, %v1807
        %v1809 = vrot.slane %v1605, %v1808
        %v1811 = vadd.f32 %v1789, %v1809
        %v1812 = vadd.f32 %v1790, %v1809
        %v1813 = vadd.f32 %v1791, %v1809
        %v1814 = vadd.f32 %v1792, %v1809
        %v1815 = vadd.f32 %v1793, %v1809
        %v1816 = vadd.f32 %v1794, %v1809
        %v1817 = vadd.f32 %v1795, %v1809
        %v1818 = vadd.f32 %v1796, %v1809
        %v1819 = vadd.f32 %v1797, %v1809
        %v1820 = vadd.f32 %v1798, %v1809
        %v1821 = vadd.f32 %v1799, %v1809
        %v1822 = vadd.f32 %v1800, %v1809
        %v1823 = vadd.f32 %v1801, %v1809
        %v1824 = vadd.f32 %v1802, %v1809
        %v1825 = vadd.f32 %v1803, %v1809
        %v1826 = vadd.f32 %v1804, %v1809
        %s1827 = scalar_lea.vmem %s3, 256
        %v1828 = vld [vmem:[%s1827] sm:$0xff]
        %v1829 = vld [vmem:[%s1827 + $0x8] sm:$0xff]
        %v1830 = vld [vmem:[%s1827 + $0x10] sm:$0xff]
        %v1831 = vld [vmem:[%s1827 + $0x18] sm:$0xff]
        %v1832 = vld [vmem:[%s1827 + $0x20] sm:$0xff]
        %v1833 = vld [vmem:[%s1827 + $0x28] sm:$0xff]
        %v1834 = vld [vmem:[%s1827 + $0x30] sm:$0xff]
        %v1835 = vld [vmem:[%s1827 + $0x38] sm:$0xff]
        %v1836 = vld [vmem:[%s1827 + $0x40] sm:$0xff]
        %v1837 = vld [vmem:[%s1827 + $0x48] sm:$0xff]
        %v1838 = vld [vmem:[%s1827 + $0x50] sm:$0xff]
        %v1839 = vld [vmem:[%s1827 + $0x58] sm:$0xff]
        %v1840 = vld [vmem:[%s1827 + $0x60] sm:$0xff]
        %v1841 = vld [vmem:[%s1827 + $0x68] sm:$0xff]
        %v1842 = vld [vmem:[%s1827 + $0x70] sm:$0xff]
        %v1843 = vld [vmem:[%s1827 + $0x78] sm:$0xff]
        %1844 = vmatprep.subr.mxu0 0.0
        %1845 = vmatpush1.msra.mxu0 %v1828
        %1846 = vmatprep.subr.mxu0 0.0
        %1847 = vmatpush1.msra.mxu0 %v1829
        %1848 = vmatprep.subr.mxu0 0.0
        %1849 = vmatpush1.msra.mxu0 %v1830
        %1850 = vmatprep.subr.mxu0 0.0
        %1851 = vmatpush1.msra.mxu0 %v1831
        %1852 = vmatprep.subr.mxu0 0.0
        %1853 = vmatpush1.msra.mxu0 %v1832
        %1854 = vmatprep.subr.mxu0 0.0
        %1855 = vmatpush1.msra.mxu0 %v1833
        %1856 = vmatprep.subr.mxu0 0.0
        %1857 = vmatpush1.msra.mxu0 %v1834
        %1858 = vmatprep.subr.mxu0 0.0
        %1859 = vmatpush1.msra.mxu0 %v1835
        %1860 = vmatprep.subr.mxu0 0.0
        %1861 = vmatpush1.msra.mxu0 %v1836
        %1862 = vmatprep.subr.mxu0 0.0
        %1863 = vmatpush1.msra.mxu0 %v1837
        %1864 = vmatprep.subr.mxu0 0.0
        %1865 = vmatpush1.msra.mxu0 %v1838
        %1866 = vmatprep.subr.mxu0 0.0
        %1867 = vmatpush1.msra.mxu0 %v1839
        %1868 = vmatprep.subr.mxu0 0.0
        %1869 = vmatpush1.msra.mxu0 %v1840
        %1870 = vmatprep.subr.mxu0 0.0
        %1871 = vmatpush1.msra.mxu0 %v1841
        %1872 = vmatprep.subr.mxu0 0.0
        %1873 = vmatpush1.msra.mxu0 %v1842
        %1874 = vmatprep.subr.mxu0 0.0
        %1875 = vmatpush1.msra.mxu0 %v1843
        %1876 = vmatprep.subr.mxu0 0.0
        %1877 = vmatpush1.msra.mxu0 0.0
        %1878 = vmatprep.subr.mxu0 0.0
        %1879 = vmatpush1.msra.mxu0 0.0
        %1880 = vmatprep.subr.mxu0 0.0
        %1881 = vmatpush1.msra.mxu0 0.0
        %1882 = vmatprep.subr.mxu0 0.0
        %1883 = vmatpush1.msra.mxu0 0.0
        %1884 = vmatprep.subr.mxu0 0.0
        %1885 = vmatpush1.msra.mxu0 0.0
        %1886 = vmatprep.subr.mxu0 0.0
        %1887 = vmatpush1.msra.mxu0 0.0
        %1888 = vmatprep.subr.mxu0 0.0
        %1889 = vmatpush1.msra.mxu0 0.0
        %1890 = vmatprep.subr.mxu0 0.0
        %1891 = vmatpush1.msra.mxu0 0.0
        %1892 = vmatprep.subr.mxu0 0.0
        %1893 = vmatpush1.msra.mxu0 0.0
        %1894 = vmatprep.subr.mxu0 0.0
        %1895 = vmatpush1.msra.mxu0 0.0
        %1896 = vmatprep.subr.mxu0 0.0
        %1897 = vmatpush1.msra.mxu0 0.0
        %1898 = vmatprep.subr.mxu0 0.0
        %1899 = vmatpush1.msra.mxu0 0.0
        %1900 = vmatprep.subr.mxu0 0.0
        %1901 = vmatpush1.msra.mxu0 0.0
        %1902 = vmatprep.subr.mxu0 0.0
        %1903 = vmatpush1.msra.mxu0 0.0
        %1904 = vmatprep.subr.mxu0 0.0
        %1905 = vmatpush1.msra.mxu0 0.0
        %1906 = vmatprep.subr.mxu0 0.0
        %1907 = vmatpush1.msra.mxu0 0.0
        %1908 = vmatprep.mubr.f32.mxu0 0.0
        %1909 = vmatmul.mubr.f32.gmra.mrb[0].mxu0 %v1811
        %v1910 = vpop.f32.mrb[0].mxu0
        %v1911 = vadd.f32 0.0, %v1910
        %v1912 = vpop.f32.mrb[0].mxu0
        %1913 = vmatprep.mubr.f32.mxu0 0.0
        %1914 = vmatmul.mubr.f32.gmra.mrb[0].mxu0 %v1812
        %v1915 = vpop.f32.mrb[0].mxu0
        %v1916 = vadd.f32 0.0, %v1915
        %v1917 = vpop.f32.mrb[0].mxu0
        %1918 = vmatprep.mubr.f32.mxu0 0.0
        %1919 = vmatmul.mubr.f32.gmra.mrb[0].mxu0 %v1813
        %v1920 = vpop.f32.mrb[0].mxu0
        %v1921 = vadd.f32 0.0, %v1920
        %v1922 = vpop.f32.mrb[0].mxu0
        %1923 = vmatprep.mubr.f32.mxu0 0.0
        %1924 = vmatmul.mubr.f32.gmra.mrb[0].mxu0 %v1814
        %v1925 = vpop.f32.mrb[0].mxu0
        %v1926 = vadd.f32 0.0, %v1925
        %v1927 = vpop.f32.mrb[0].mxu0
        %1928 = vmatprep.mubr.f32.mxu0 0.0
        %1929 = vmatmul.mubr.f32.gmra.mrb[0].mxu0 %v1815
        %v1930 = vpop.f32.mrb[0].mxu0
        %v1931 = vadd.f32 0.0, %v1930
        %v1932 = vpop.f32.mrb[0].mxu0
        %1933 = vmatprep.mubr.f32.mxu0 0.0
        %1934 = vmatmul.mubr.f32.gmra.mrb[0].mxu0 %v1816
        %v1935 = vpop.f32.mrb[0].mxu0
        %v1936 = vadd.f32 0.0, %v1935
        %v1937 = vpop.f32.mrb[0].mxu0
        %1938 = vmatprep.mubr.f32.mxu0 0.0
        %1939 = vmatmul.mubr.f32.gmra.mrb[0].mxu0 %v1817
        %v1940 = vpop.f32.mrb[0].mxu0
        %v1941 = vadd.f32 0.0, %v1940
        %v1942 = vpop.f32.mrb[0].mxu0
        %1943 = vmatprep.mubr.f32.mxu0 0.0
        %1944 = vmatmul.mubr.f32.gmra.mrb[0].mxu0 %v1818
        %v1945 = vpop.f32.mrb[0].mxu0
        %v1946 = vadd.f32 0.0, %v1945
        %v1947 = vpop.f32.mrb[0].mxu0
        %1948 = vmatprep.mubr.f32.mxu0 0.0
        %1949 = vmatmul.mubr.f32.gmra.mrb[0].mxu0 %v1819
        %v1950 = vpop.f32.mrb[0].mxu0
        %v1951 = vadd.f32 0.0, %v1950
        %v1952 = vpop.f32.mrb[0].mxu0
        %1953 = vmatprep.mubr.f32.mxu0 0.0
        %1954 = vmatmul.mubr.f32.gmra.mrb[0].mxu0 %v1820
        %v1955 = vpop.f32.mrb[0].mxu0
        %v1956 = vadd.f32 0.0, %v1955
        %v1957 = vpop.f32.mrb[0].mxu0
        %1958 = vmatprep.mubr.f32.mxu0 0.0
        %1959 = vmatmul.mubr.f32.gmra.mrb[0].mxu0 %v1821
        %v1960 = vpop.f32.mrb[0].mxu0
        %v1961 = vadd.f32 0.0, %v1960
        %v1962 = vpop.f32.mrb[0].mxu0
        %1963 = vmatprep.mubr.f32.mxu0 0.0
        %1964 = vmatmul.mubr.f32.gmra.mrb[0].mxu0 %v1822
        %v1965 = vpop.f32.mrb[0].mxu0
        %v1966 = vadd.f32 0.0, %v1965
        %v1967 = vpop.f32.mrb[0].mxu0
        %1968 = vmatprep.mubr.f32.mxu0 0.0
        %1969 = vmatmul.mubr.f32.gmra.mrb[0].mxu0 %v1823
        %v1970 = vpop.f32.mrb[0].mxu0
        %v1971 = vadd.f32 0.0, %v1970
        %v1972 = vpop.f32.mrb[0].mxu0
        %1973 = vmatprep.mubr.f32.mxu0 0.0
        %1974 = vmatmul.mubr.f32.gmra.mrb[0].mxu0 %v1824
        %v1975 = vpop.f32.mrb[0].mxu0
        %v1976 = vadd.f32 0.0, %v1975
        %v1977 = vpop.f32.mrb[0].mxu0
        %1978 = vmatprep.mubr.f32.mxu0 0.0
        %1979 = vmatmul.mubr.f32.gmra.mrb[0].mxu0 %v1825
        %v1980 = vpop.f32.mrb[0].mxu0
        %v1981 = vadd.f32 0.0, %v1980
        %v1982 = vpop.f32.mrb[0].mxu0
        %1983 = vmatprep.mubr.f32.mxu0 0.0
        %1984 = vmatmul.mubr.f32.gmra.mrb[0].mxu0 %v1826
        %v1985 = vpop.f32.mrb[0].mxu0
        %v1986 = vadd.f32 0.0, %v1985
        %v1987 = vpop.f32.mrb[0].mxu0
        %1988 = vdwg.mxu0
        %v1989 = vmul.f32 %v1911, 0.5
        %v1990 = vmul.f32 %v1916, 0.5
        %v1991 = vmul.f32 %v1921, 0.5
        %v1992 = vmul.f32 %v1926, 0.5
        %v1993 = vmul.f32 %v1931, 0.5
        %v1994 = vmul.f32 %v1936, 0.5
        %v1995 = vmul.f32 %v1941, 0.5
        %v1996 = vmul.f32 %v1946, 0.5
        %v1997 = vmul.f32 %v1951, 0.5
        %v1998 = vmul.f32 %v1956, 0.5
        %v1999 = vmul.f32 %v1961, 0.5
        %v2000 = vmul.f32 %v1966, 0.5
        %v2001 = vmul.f32 %v1971, 0.5
        %v2002 = vmul.f32 %v1976, 0.5
        %v2003 = vmul.f32 %v1981, 0.5
        %v2004 = vmul.f32 %v1986, 0.5
        %v2005 = vmul.f32 %v1911, 0.70710677
        %v2006 = vmul.f32 %v1916, 0.70710677
        %v2007 = vmul.f32 %v1921, 0.70710677
        %v2008 = vmul.f32 %v1926, 0.70710677
        %v2009 = vmul.f32 %v1931, 0.70710677
        %v2010 = vmul.f32 %v1936, 0.70710677
        %v2011 = vmul.f32 %v1941, 0.70710677
        %v2012 = vmul.f32 %v1946, 0.70710677
        %v2013 = vmul.f32 %v1951, 0.70710677
        %v2014 = vmul.f32 %v1956, 0.70710677
        %v2015 = vmul.f32 %v1961, 0.70710677
        %v2016 = vmul.f32 %v1966, 0.70710677
        %v2017 = vmul.f32 %v1971, 0.70710677
        %v2018 = vmul.f32 %v1976, 0.70710677
        %v2019 = vmul.f32 %v1981, 0.70710677
        %v2020 = vmul.f32 %v1986, 0.70710677
        %v2021 = verf.f32.pop %v2005
        %v2022 = verf.f32.pop %v2006
        %v2023 = verf.f32.pop %v2007
        %v2024 = verf.f32.pop %v2008
        %v2025 = verf.f32.pop %v2009
        %v2026 = verf.f32.pop %v2010
        %v2027 = verf.f32.pop %v2011
        %v2028 = verf.f32.pop %v2012
        %v2029 = verf.f32.pop %v2013
        %v2030 = verf.f32.pop %v2014
        %v2031 = verf.f32.pop %v2015
        %v2032 = verf.f32.pop %v2016
        %v2033 = verf.f32.pop %v2017
        %v2034 = verf.f32.pop %v2018
        %v2035 = verf.f32.pop %v2019
        %v2036 = verf.f32.pop %v2020
        %v2037 = vadd.f32 %v2021, 1.0
        %v2038 = vadd.f32 %v2022, 1.0
        %v2039 = vadd.f32 %v2023, 1.0
        %v2040 = vadd.f32 %v2024, 1.0
        %v2041 = vadd.f32 %v2025, 1.0
        %v2042 = vadd.f32 %v2026, 1.0
        %v2043 = vadd.f32 %v2027, 1.0
        %v2044 = vadd.f32 %v2028, 1.0
        %v2045 = vadd.f32 %v2029, 1.0
        %v2046 = vadd.f32 %v2030, 1.0
        %v2047 = vadd.f32 %v2031, 1.0
        %v2048 = vadd.f32 %v2032, 1.0
        %v2049 = vadd.f32 %v2033, 1.0
        %v2050 = vadd.f32 %v2034, 1.0
        %v2051 = vadd.f32 %v2035, 1.0
        %v2052 = vadd.f32 %v2036, 1.0
        %v2053 = vmul.f32 %v1989, %v2037
        %v2054 = vmul.f32 %v1990, %v2038
        %v2055 = vmul.f32 %v1991, %v2039
        %v2056 = vmul.f32 %v1992, %v2040
        %v2057 = vmul.f32 %v1993, %v2041
        %v2058 = vmul.f32 %v1994, %v2042
        %v2059 = vmul.f32 %v1995, %v2043
        %v2060 = vmul.f32 %v1996, %v2044
        %v2061 = vmul.f32 %v1997, %v2045
        %v2062 = vmul.f32 %v1998, %v2046
        %v2063 = vmul.f32 %v1999, %v2047
        %v2064 = vmul.f32 %v2000, %v2048
        %v2065 = vmul.f32 %v2001, %v2049
        %v2066 = vmul.f32 %v2002, %v2050
        %v2067 = vmul.f32 %v2003, %v2051
        %v2068 = vmul.f32 %v2004, %v2052
        %s2069 = scalar_lea.vmem %s4, 8
        %v2070 = vld [vmem:[%s2069] sm:$0xf]
        %v2072 = vsel %vm934, %v2053, 0
        %v2075 = vsel %vm934, %v2054, 0
        %v2078 = vsel %vm934, %v2055, 0
        %v2081 = vsel %vm934, %v2056, 0
        %v2084 = vsel %vm934, %v2057, 0
        %v2087 = vsel %vm934, %v2058, 0
        %v2090 = vsel %vm934, %v2059, 0
        %v2093 = vsel %vm934, %v2060, 0
        %v2096 = vsel %vm934, %v2061, 0
        %v2099 = vsel %vm934, %v2062, 0
        %v2102 = vsel %vm934, %v2063, 0
        %v2105 = vsel %vm934, %v2064, 0
        %v2108 = vsel %vm934, %v2065, 0
        %v2111 = vsel %vm934, %v2066, 0
        %v2114 = vsel %vm934, %v2067, 0
        %v2117 = vsel %vm934, %v2068, 0
        %v2120 = vsel %vm983, %v2070, 0
        %2122 = vmatprep.subr.mxu0 0.0
        %2123 = vmatpush1.msra.mxu0 %v2120
        %2124 = vmatprep.subr.mxu0 0.0
        %2125 = vmatpush1.msra.mxu0 0.0
        %2126 = vmatprep.subr.mxu0 0.0
        %2127 = vmatpush1.msra.mxu0 0.0
        %2128 = vmatprep.subr.mxu0 0.0
        %2129 = vmatpush1.msra.mxu0 0.0
        %2130 = vmatprep.subr.mxu0 0.0
        %2131 = vmatpush1.msra.mxu0 0.0
        %2132 = vmatprep.subr.mxu0 0.0
        %2133 = vmatpush1.msra.mxu0 0.0
        %2134 = vmatprep.subr.mxu0 0.0
        %2135 = vmatpush1.msra.mxu0 0.0
        %2136 = vmatprep.subr.mxu0 0.0
        %2137 = vmatpush1.msra.mxu0 0.0
        %2138 = vmatprep.subr.mxu0 0.0
        %2139 = vmatpush1.msra.mxu0 0.0
        %2140 = vmatprep.subr.mxu0 0.0
        %2141 = vmatpush1.msra.mxu0 0.0
        %2142 = vmatprep.subr.mxu0 0.0
        %2143 = vmatpush1.msra.mxu0 0.0
        %2144 = vmatprep.subr.mxu0 0.0
        %2145 = vmatpush1.msra.mxu0 0.0
        %2146 = vmatprep.subr.mxu0 0.0
        %2147 = vmatpush1.msra.mxu0 0.0
        %2148 = vmatprep.subr.mxu0 0.0
        %2149 = vmatpush1.msra.mxu0 0.0
        %2150 = vmatprep.subr.mxu0 0.0
        %2151 = vmatpush1.msra.mxu0 0.0
        %2152 = vmatprep.subr.mxu0 0.0
        %2153 = vmatpush1.msra.mxu0 0.0
        %2154 = vmatprep.subr.mxu0 0.0
        %2155 = vmatpush1.msra.mxu0 0.0
        %2156 = vmatprep.subr.mxu0 0.0
        %2157 = vmatpush1.msra.mxu0 0.0
        %2158 = vmatprep.subr.mxu0 0.0
        %2159 = vmatpush1.msra.mxu0 0.0
        %2160 = vmatprep.subr.mxu0 0.0
        %2161 = vmatpush1.msra.mxu0 0.0
        %2162 = vmatprep.subr.mxu0 0.0
        %2163 = vmatpush1.msra.mxu0 0.0
        %2164 = vmatprep.subr.mxu0 0.0
        %2165 = vmatpush1.msra.mxu0 0.0
        %2166 = vmatprep.subr.mxu0 0.0
        %2167 = vmatpush1.msra.mxu0 0.0
        %2168 = vmatprep.subr.mxu0 0.0
        %2169 = vmatpush1.msra.mxu0 0.0
        %2170 = vmatprep.subr.mxu0 0.0
        %2171 = vmatpush1.msra.mxu0 0.0
        %2172 = vmatprep.subr.mxu0 0.0
        %2173 = vmatpush1.msra.mxu0 0.0
        %2174 = vmatprep.subr.mxu0 0.0
        %2175 = vmatpush1.msra.mxu0 0.0
        %2176 = vmatprep.subr.mxu0 0.0
        %2177 = vmatpush1.msra.mxu0 0.0
        %2178 = vmatprep.subr.mxu0 0.0
        %2179 = vmatpush1.msra.mxu0 0.0
        %2180 = vmatprep.subr.mxu0 0.0
        %2181 = vmatpush1.msra.mxu0 0.0
        %2182 = vmatprep.subr.mxu0 0.0
        %2183 = vmatpush1.msra.mxu0 0.0
        %2184 = vmatprep.subr.mxu0 0.0
        %2185 = vmatpush1.msra.mxu0 0.0
        %2186 = vmatprep.mubr.f32.mxu0 0.0
        %2187 = vmatmul.mubr.f32.gmra.mrb[0].mxu0 %v2072
        %v2188 = vpop.f32.mrb[0].mxu0
        %v2189 = vadd.f32 0.0, %v2188
        %v2190 = vpop.f32.mrb[0].mxu0
        %2191 = vmatprep.mubr.f32.mxu0 0.0
        %2192 = vmatmul.mubr.f32.gmra.mrb[0].mxu0 %v2075
        %v2193 = vpop.f32.mrb[0].mxu0
        %v2194 = vadd.f32 0.0, %v2193
        %v2195 = vpop.f32.mrb[0].mxu0
        %2196 = vmatprep.mubr.f32.mxu0 0.0
        %2197 = vmatmul.mubr.f32.gmra.mrb[0].mxu0 %v2078
        %v2198 = vpop.f32.mrb[0].mxu0
        %v2199 = vadd.f32 0.0, %v2198
        %v2200 = vpop.f32.mrb[0].mxu0
        %2201 = vmatprep.mubr.f32.mxu0 0.0
        %2202 = vmatmul.mubr.f32.gmra.mrb[0].mxu0 %v2081
        %v2203 = vpop.f32.mrb[0].mxu0
        %v2204 = vadd.f32 0.0, %v2203
        %v2205 = vpop.f32.mrb[0].mxu0
        %2206 = vmatprep.mubr.f32.mxu0 0.0
        %2207 = vmatmul.mubr.f32.gmra.mrb[0].mxu0 %v2084
        %v2208 = vpop.f32.mrb[0].mxu0
        %v2209 = vadd.f32 0.0, %v2208
        %v2210 = vpop.f32.mrb[0].mxu0
        %2211 = vmatprep.mubr.f32.mxu0 0.0
        %2212 = vmatmul.mubr.f32.gmra.mrb[0].mxu0 %v2087
        %v2213 = vpop.f32.mrb[0].mxu0
        %v2214 = vadd.f32 0.0, %v2213
        %v2215 = vpop.f32.mrb[0].mxu0
        %2216 = vmatprep.mubr.f32.mxu0 0.0
        %2217 = vmatmul.mubr.f32.gmra.mrb[0].mxu0 %v2090
        %v2218 = vpop.f32.mrb[0].mxu0
        %v2219 = vadd.f32 0.0, %v2218
        %v2220 = vpop.f32.mrb[0].mxu0
        %2221 = vmatprep.mubr.f32.mxu0 0.0
        %2222 = vmatmul.mubr.f32.gmra.mrb[0].mxu0 %v2093
        %v2223 = vpop.f32.mrb[0].mxu0
        %v2224 = vadd.f32 0.0, %v2223
        %v2225 = vpop.f32.mrb[0].mxu0
        %2226 = vmatprep.mubr.f32.mxu0 0.0
        %2227 = vmatmul.mubr.f32.gmra.mrb[0].mxu0 %v2096
        %v2228 = vpop.f32.mrb[0].mxu0
        %v2229 = vadd.f32 0.0, %v2228
        %v2230 = vpop.f32.mrb[0].mxu0
        %2231 = vmatprep.mubr.f32.mxu0 0.0
        %2232 = vmatmul.mubr.f32.gmra.mrb[0].mxu0 %v2099
        %v2233 = vpop.f32.mrb[0].mxu0
        %v2234 = vadd.f32 0.0, %v2233
        %v2235 = vpop.f32.mrb[0].mxu0
        %2236 = vmatprep.mubr.f32.mxu0 0.0
        %2237 = vmatmul.mubr.f32.gmra.mrb[0].mxu0 %v2102
        %v2238 = vpop.f32.mrb[0].mxu0
        %v2239 = vadd.f32 0.0, %v2238
        %v2240 = vpop.f32.mrb[0].mxu0
        %2241 = vmatprep.mubr.f32.mxu0 0.0
        %2242 = vmatmul.mubr.f32.gmra.mrb[0].mxu0 %v2105
        %v2243 = vpop.f32.mrb[0].mxu0
        %v2244 = vadd.f32 0.0, %v2243
        %v2245 = vpop.f32.mrb[0].mxu0
        %2246 = vmatprep.mubr.f32.mxu0 0.0
        %2247 = vmatmul.mubr.f32.gmra.mrb[0].mxu0 %v2108
        %v2248 = vpop.f32.mrb[0].mxu0
        %v2249 = vadd.f32 0.0, %v2248
        %v2250 = vpop.f32.mrb[0].mxu0
        %2251 = vmatprep.mubr.f32.mxu0 0.0
        %2252 = vmatmul.mubr.f32.gmra.mrb[0].mxu0 %v2111
        %v2253 = vpop.f32.mrb[0].mxu0
        %v2254 = vadd.f32 0.0, %v2253
        %v2255 = vpop.f32.mrb[0].mxu0
        %2256 = vmatprep.mubr.f32.mxu0 0.0
        %2257 = vmatmul.mubr.f32.gmra.mrb[0].mxu0 %v2114
        %v2258 = vpop.f32.mrb[0].mxu0
        %v2259 = vadd.f32 0.0, %v2258
        %v2260 = vpop.f32.mrb[0].mxu0
        %2261 = vmatprep.mubr.f32.mxu0 0.0
        %2262 = vmatmul.mubr.f32.gmra.mrb[0].mxu0 %v2117
        %v2263 = vpop.f32.mrb[0].mxu0
        %v2264 = vadd.f32 0.0, %v2263
        %v2265 = vpop.f32.mrb[0].mxu0
        %2266 = vdwg.mxu0
        %v2267 = vadd.f32 %v1811, %v2189
        %v2268 = vadd.f32 %v1812, %v2194
        %v2269 = vadd.f32 %v1813, %v2199
        %v2270 = vadd.f32 %v1814, %v2204
        %v2271 = vadd.f32 %v1815, %v2209
        %v2272 = vadd.f32 %v1816, %v2214
        %v2273 = vadd.f32 %v1817, %v2219
        %v2274 = vadd.f32 %v1818, %v2224
        %v2275 = vadd.f32 %v1819, %v2229
        %v2276 = vadd.f32 %v1820, %v2234
        %v2277 = vadd.f32 %v1821, %v2239
        %v2278 = vadd.f32 %v1822, %v2244
        %v2279 = vadd.f32 %v1823, %v2249
        %v2280 = vadd.f32 %v1824, %v2254
        %v2281 = vadd.f32 %v1825, %v2259
        %v2282 = vadd.f32 %v1826, %v2264
        %s2283 = scalar_lea.vmem %s3, 384
        %v2284 = vld [vmem:[%s2283] sm:$0xff]
        %v2285 = vld [vmem:[%s2283 + $0x8] sm:$0xff]
        %v2286 = vld [vmem:[%s2283 + $0x10] sm:$0xff]
        %v2287 = vld [vmem:[%s2283 + $0x18] sm:$0xff]
        %v2288 = vld [vmem:[%s2283 + $0x20] sm:$0xff]
        %v2289 = vld [vmem:[%s2283 + $0x28] sm:$0xff]
        %v2290 = vld [vmem:[%s2283 + $0x30] sm:$0xff]
        %v2291 = vld [vmem:[%s2283 + $0x38] sm:$0xff]
        %v2292 = vld [vmem:[%s2283 + $0x40] sm:$0xff]
        %v2293 = vld [vmem:[%s2283 + $0x48] sm:$0xff]
        %v2294 = vld [vmem:[%s2283 + $0x50] sm:$0xff]
        %v2295 = vld [vmem:[%s2283 + $0x58] sm:$0xff]
        %v2296 = vld [vmem:[%s2283 + $0x60] sm:$0xff]
        %v2297 = vld [vmem:[%s2283 + $0x68] sm:$0xff]
        %v2298 = vld [vmem:[%s2283 + $0x70] sm:$0xff]
        %v2299 = vld [vmem:[%s2283 + $0x78] sm:$0xff]
        %2300 = vmatprep.subr.mxu0 0.0
        %2301 = vmatpush1.msra.mxu0 %v2284
        %2302 = vmatprep.subr.mxu0 0.0
        %2303 = vmatpush1.msra.mxu0 %v2285
        %2304 = vmatprep.subr.mxu0 0.0
        %2305 = vmatpush1.msra.mxu0 %v2286
        %2306 = vmatprep.subr.mxu0 0.0
        %2307 = vmatpush1.msra.mxu0 %v2287
        %2308 = vmatprep.subr.mxu0 0.0
        %2309 = vmatpush1.msra.mxu0 %v2288
        %2310 = vmatprep.subr.mxu0 0.0
        %2311 = vmatpush1.msra.mxu0 %v2289
        %2312 = vmatprep.subr.mxu0 0.0
        %2313 = vmatpush1.msra.mxu0 %v2290
        %2314 = vmatprep.subr.mxu0 0.0
        %2315 = vmatpush1.msra.mxu0 %v2291
        %2316 = vmatprep.subr.mxu0 0.0
        %2317 = vmatpush1.msra.mxu0 %v2292
        %2318 = vmatprep.subr.mxu0 0.0
        %2319 = vmatpush1.msra.mxu0 %v2293
        %2320 = vmatprep.subr.mxu0 0.0
        %2321 = vmatpush1.msra.mxu0 %v2294
        %2322 = vmatprep.subr.mxu0 0.0
        %2323 = vmatpush1.msra.mxu0 %v2295
        %2324 = vmatprep.subr.mxu0 0.0
        %2325 = vmatpush1.msra.mxu0 %v2296
        %2326 = vmatprep.subr.mxu0 0.0
        %2327 = vmatpush1.msra.mxu0 %v2297
        %2328 = vmatprep.subr.mxu0 0.0
        %2329 = vmatpush1.msra.mxu0 %v2298
        %2330 = vmatprep.subr.mxu0 0.0
        %2331 = vmatpush1.msra.mxu0 %v2299
        %2332 = vmatprep.subr.mxu0 0.0
        %2333 = vmatpush1.msra.mxu0 0.0
        %2334 = vmatprep.subr.mxu0 0.0
        %2335 = vmatpush1.msra.mxu0 0.0
        %2336 = vmatprep.subr.mxu0 0.0
        %2337 = vmatpush1.msra.mxu0 0.0
        %2338 = vmatprep.subr.mxu0 0.0
        %2339 = vmatpush1.msra.mxu0 0.0
        %2340 = vmatprep.subr.mxu0 0.0
        %2341 = vmatpush1.msra.mxu0 0.0
        %2342 = vmatprep.subr.mxu0 0.0
        %2343 = vmatpush1.msra.mxu0 0.0
        %2344 = vmatprep.subr.mxu0 0.0
        %2345 = vmatpush1.msra.mxu0 0.0
        %2346 = vmatprep.subr.mxu0 0.0
        %2347 = vmatpush1.msra.mxu0 0.0
        %2348 = vmatprep.subr.mxu0 0.0
        %2349 = vmatpush1.msra.mxu0 0.0
        %2350 = vmatprep.subr.mxu0 0.0
        %2351 = vmatpush1.msra.mxu0 0.0
        %2352 = vmatprep.subr.mxu0 0.0
        %2353 = vmatpush1.msra.mxu0 0.0
        %2354 = vmatprep.subr.mxu0 0.0
        %2355 = vmatpush1.msra.mxu0 0.0
        %2356 = vmatprep.subr.mxu0 0.0
        %2357 = vmatpush1.msra.mxu0 0.0
        %2358 = vmatprep.subr.mxu0 0.0
        %2359 = vmatpush1.msra.mxu0 0.0
        %2360 = vmatprep.subr.mxu0 0.0
        %2361 = vmatpush1.msra.mxu0 0.0
        %2362 = vmatprep.subr.mxu0 0.0
        %2363 = vmatpush1.msra.mxu0 0.0
        %2364 = vmatprep.mubr.f32.mxu0 0.0
        %2365 = vmatmul.mubr.f32.gmra.mrb[0].mxu0 %v2267
        %v2366 = vpop.f32.mrb[0].mxu0
        %v2367 = vadd.f32 0.0, %v2366
        %v2368 = vpop.f32.mrb[0].mxu0
        %2369 = vmatprep.mubr.f32.mxu0 0.0
        %2370 = vmatmul.mubr.f32.gmra.mrb[0].mxu0 %v2268
        %v2371 = vpop.f32.mrb[0].mxu0
        %v2372 = vadd.f32 0.0, %v2371
        %v2373 = vpop.f32.mrb[0].mxu0
        %2374 = vmatprep.mubr.f32.mxu0 0.0
        %2375 = vmatmul.mubr.f32.gmra.mrb[0].mxu0 %v2269
        %v2376 = vpop.f32.mrb[0].mxu0
        %v2377 = vadd.f32 0.0, %v2376
        %v2378 = vpop.f32.mrb[0].mxu0
        %2379 = vmatprep.mubr.f32.mxu0 0.0
        %2380 = vmatmul.mubr.f32.gmra.mrb[0].mxu0 %v2270
        %v2381 = vpop.f32.mrb[0].mxu0
        %v2382 = vadd.f32 0.0, %v2381
        %v2383 = vpop.f32.mrb[0].mxu0
        %2384 = vmatprep.mubr.f32.mxu0 0.0
        %2385 = vmatmul.mubr.f32.gmra.mrb[0].mxu0 %v2271
        %v2386 = vpop.f32.mrb[0].mxu0
        %v2387 = vadd.f32 0.0, %v2386
        %v2388 = vpop.f32.mrb[0].mxu0
        %2389 = vmatprep.mubr.f32.mxu0 0.0
        %2390 = vmatmul.mubr.f32.gmra.mrb[0].mxu0 %v2272
        %v2391 = vpop.f32.mrb[0].mxu0
        %v2392 = vadd.f32 0.0, %v2391
        %v2393 = vpop.f32.mrb[0].mxu0
        %2394 = vmatprep.mubr.f32.mxu0 0.0
        %2395 = vmatmul.mubr.f32.gmra.mrb[0].mxu0 %v2273
        %v2396 = vpop.f32.mrb[0].mxu0
        %v2397 = vadd.f32 0.0, %v2396
        %v2398 = vpop.f32.mrb[0].mxu0
        %2399 = vmatprep.mubr.f32.mxu0 0.0
        %2400 = vmatmul.mubr.f32.gmra.mrb[0].mxu0 %v2274
        %v2401 = vpop.f32.mrb[0].mxu0
        %v2402 = vadd.f32 0.0, %v2401
        %v2403 = vpop.f32.mrb[0].mxu0
        %2404 = vmatprep.mubr.f32.mxu0 0.0
        %2405 = vmatmul.mubr.f32.gmra.mrb[0].mxu0 %v2275
        %v2406 = vpop.f32.mrb[0].mxu0
        %v2407 = vadd.f32 0.0, %v2406
        %v2408 = vpop.f32.mrb[0].mxu0
        %2409 = vmatprep.mubr.f32.mxu0 0.0
        %2410 = vmatmul.mubr.f32.gmra.mrb[0].mxu0 %v2276
        %v2411 = vpop.f32.mrb[0].mxu0
        %v2412 = vadd.f32 0.0, %v2411
        %v2413 = vpop.f32.mrb[0].mxu0
        %2414 = vmatprep.mubr.f32.mxu0 0.0
        %2415 = vmatmul.mubr.f32.gmra.mrb[0].mxu0 %v2277
        %v2416 = vpop.f32.mrb[0].mxu0
        %v2417 = vadd.f32 0.0, %v2416
        %v2418 = vpop.f32.mrb[0].mxu0
        %2419 = vmatprep.mubr.f32.mxu0 0.0
        %2420 = vmatmul.mubr.f32.gmra.mrb[0].mxu0 %v2278
        %v2421 = vpop.f32.mrb[0].mxu0
        %v2422 = vadd.f32 0.0, %v2421
        %v2423 = vpop.f32.mrb[0].mxu0
        %2424 = vmatprep.mubr.f32.mxu0 0.0
        %2425 = vmatmul.mubr.f32.gmra.mrb[0].mxu0 %v2279
        %v2426 = vpop.f32.mrb[0].mxu0
        %v2427 = vadd.f32 0.0, %v2426
        %v2428 = vpop.f32.mrb[0].mxu0
        %2429 = vmatprep.mubr.f32.mxu0 0.0
        %2430 = vmatmul.mubr.f32.gmra.mrb[0].mxu0 %v2280
        %v2431 = vpop.f32.mrb[0].mxu0
        %v2432 = vadd.f32 0.0, %v2431
        %v2433 = vpop.f32.mrb[0].mxu0
        %2434 = vmatprep.mubr.f32.mxu0 0.0
        %2435 = vmatmul.mubr.f32.gmra.mrb[0].mxu0 %v2281
        %v2436 = vpop.f32.mrb[0].mxu0
        %v2437 = vadd.f32 0.0, %v2436
        %v2438 = vpop.f32.mrb[0].mxu0
        %2439 = vmatprep.mubr.f32.mxu0 0.0
        %2440 = vmatmul.mubr.f32.gmra.mrb[0].mxu0 %v2282
        %v2441 = vpop.f32.mrb[0].mxu0
        %v2442 = vadd.f32 0.0, %v2441
        %v2443 = vpop.f32.mrb[0].mxu0
        %2444 = vdwg.mxu0
        %v2445 = vmul.f32 %v2367, 0.5
        %v2446 = vmul.f32 %v2372, 0.5
        %v2447 = vmul.f32 %v2377, 0.5
        %v2448 = vmul.f32 %v2382, 0.5
        %v2449 = vmul.f32 %v2387, 0.5
        %v2450 = vmul.f32 %v2392, 0.5
        %v2451 = vmul.f32 %v2397, 0.5
        %v2452 = vmul.f32 %v2402, 0.5
        %v2453 = vmul.f32 %v2407, 0.5
        %v2454 = vmul.f32 %v2412, 0.5
        %v2455 = vmul.f32 %v2417, 0.5
        %v2456 = vmul.f32 %v2422, 0.5
        %v2457 = vmul.f32 %v2427, 0.5
        %v2458 = vmul.f32 %v2432, 0.5
        %v2459 = vmul.f32 %v2437, 0.5
        %v2460 = vmul.f32 %v2442, 0.5
        %v2461 = vmul.f32 %v2367, 0.70710677
        %v2462 = vmul.f32 %v2372, 0.70710677
        %v2463 = vmul.f32 %v2377, 0.70710677
        %v2464 = vmul.f32 %v2382, 0.70710677
        %v2465 = vmul.f32 %v2387, 0.70710677
        %v2466 = vmul.f32 %v2392, 0.70710677
        %v2467 = vmul.f32 %v2397, 0.70710677
        %v2468 = vmul.f32 %v2402, 0.70710677
        %v2469 = vmul.f32 %v2407, 0.70710677
        %v2470 = vmul.f32 %v2412, 0.70710677
        %v2471 = vmul.f32 %v2417, 0.70710677
        %v2472 = vmul.f32 %v2422, 0.70710677
        %v2473 = vmul.f32 %v2427, 0.70710677
        %v2474 = vmul.f32 %v2432, 0.70710677
        %v2475 = vmul.f32 %v2437, 0.70710677
        %v2476 = vmul.f32 %v2442, 0.70710677
        %v2477 = verf.f32.pop %v2461
        %v2478 = verf.f32.pop %v2462
        %v2479 = verf.f32.pop %v2463
        %v2480 = verf.f32.pop %v2464
        %v2481 = verf.f32.pop %v2465
        %v2482 = verf.f32.pop %v2466
        %v2483 = verf.f32.pop %v2467
        %v2484 = verf.f32.pop %v2468
        %v2485 = verf.f32.pop %v2469
        %v2486 = verf.f32.pop %v2470
        %v2487 = verf.f32.pop %v2471
        %v2488 = verf.f32.pop %v2472
        %v2489 = verf.f32.pop %v2473
        %v2490 = verf.f32.pop %v2474
        %v2491 = verf.f32.pop %v2475
        %v2492 = verf.f32.pop %v2476
        %v2493 = vadd.f32 %v2477, 1.0
        %v2494 = vadd.f32 %v2478, 1.0
        %v2495 = vadd.f32 %v2479, 1.0
        %v2496 = vadd.f32 %v2480, 1.0
        %v2497 = vadd.f32 %v2481, 1.0
        %v2498 = vadd.f32 %v2482, 1.0
        %v2499 = vadd.f32 %v2483, 1.0
        %v2500 = vadd.f32 %v2484, 1.0
        %v2501 = vadd.f32 %v2485, 1.0
        %v2502 = vadd.f32 %v2486, 1.0
        %v2503 = vadd.f32 %v2487, 1.0
        %v2504 = vadd.f32 %v2488, 1.0
        %v2505 = vadd.f32 %v2489, 1.0
        %v2506 = vadd.f32 %v2490, 1.0
        %v2507 = vadd.f32 %v2491, 1.0
        %v2508 = vadd.f32 %v2492, 1.0
        %v2509 = vmul.f32 %v2445, %v2493
        %v2510 = vmul.f32 %v2446, %v2494
        %v2511 = vmul.f32 %v2447, %v2495
        %v2512 = vmul.f32 %v2448, %v2496
        %v2513 = vmul.f32 %v2449, %v2497
        %v2514 = vmul.f32 %v2450, %v2498
        %v2515 = vmul.f32 %v2451, %v2499
        %v2516 = vmul.f32 %v2452, %v2500
        %v2517 = vmul.f32 %v2453, %v2501
        %v2518 = vmul.f32 %v2454, %v2502
        %v2519 = vmul.f32 %v2455, %v2503
        %v2520 = vmul.f32 %v2456, %v2504
        %v2521 = vmul.f32 %v2457, %v2505
        %v2522 = vmul.f32 %v2458, %v2506
        %v2523 = vmul.f32 %v2459, %v2507
        %v2524 = vmul.f32 %v2460, %v2508
        %s2525 = scalar_lea.vmem %s4, 12
        %v2526 = vld [vmem:[%s2525] sm:$0xf]
        %v2528 = vsel %vm934, %v2509, 0
        %v2531 = vsel %vm934, %v2510, 0
        %v2534 = vsel %vm934, %v2511, 0
        %v2537 = vsel %vm934, %v2512, 0
        %v2540 = vsel %vm934, %v2513, 0
        %v2543 = vsel %vm934, %v2514, 0
        %v2546 = vsel %vm934, %v2515, 0
        %v2549 = vsel %vm934, %v2516, 0
        %v2552 = vsel %vm934, %v2517, 0
        %v2555 = vsel %vm934, %v2518, 0
        %v2558 = vsel %vm934, %v2519, 0
        %v2561 = vsel %vm934, %v2520, 0
        %v2564 = vsel %vm934, %v2521, 0
        %v2567 = vsel %vm934, %v2522, 0
        %v2570 = vsel %vm934, %v2523, 0
        %v2573 = vsel %vm934, %v2524, 0
        %v2576 = vsel %vm983, %v2526, 0
        %2578 = vmatprep.subr.mxu0 0.0
        %2579 = vmatpush1.msra.mxu0 %v2576
        %2580 = vmatprep.subr.mxu0 0.0
        %2581 = vmatpush1.msra.mxu0 0.0
        %2582 = vmatprep.subr.mxu0 0.0
        %2583 = vmatpush1.msra.mxu0 0.0
        %2584 = vmatprep.subr.mxu0 0.0
        %2585 = vmatpush1.msra.mxu0 0.0
        %2586 = vmatprep.subr.mxu0 0.0
        %2587 = vmatpush1.msra.mxu0 0.0
        %2588 = vmatprep.subr.mxu0 0.0
        %2589 = vmatpush1.msra.mxu0 0.0
        %2590 = vmatprep.subr.mxu0 0.0
        %2591 = vmatpush1.msra.mxu0 0.0
        %2592 = vmatprep.subr.mxu0 0.0
        %2593 = vmatpush1.msra.mxu0 0.0
        %2594 = vmatprep.subr.mxu0 0.0
        %2595 = vmatpush1.msra.mxu0 0.0
        %2596 = vmatprep.subr.mxu0 0.0
        %2597 = vmatpush1.msra.mxu0 0.0
        %2598 = vmatprep.subr.mxu0 0.0
        %2599 = vmatpush1.msra.mxu0 0.0
        %2600 = vmatprep.subr.mxu0 0.0
        %2601 = vmatpush1.msra.mxu0 0.0
        %2602 = vmatprep.subr.mxu0 0.0
        %2603 = vmatpush1.msra.mxu0 0.0
        %2604 = vmatprep.subr.mxu0 0.0
        %2605 = vmatpush1.msra.mxu0 0.0
        %2606 = vmatprep.subr.mxu0 0.0
        %2607 = vmatpush1.msra.mxu0 0.0
        %2608 = vmatprep.subr.mxu0 0.0
        %2609 = vmatpush1.msra.mxu0 0.0
        %2610 = vmatprep.subr.mxu0 0.0
        %2611 = vmatpush1.msra.mxu0 0.0
        %2612 = vmatprep.subr.mxu0 0.0
        %2613 = vmatpush1.msra.mxu0 0.0
        %2614 = vmatprep.subr.mxu0 0.0
        %2615 = vmatpush1.msra.mxu0 0.0
        %2616 = vmatprep.subr.mxu0 0.0
        %2617 = vmatpush1.msra.mxu0 0.0
        %2618 = vmatprep.subr.mxu0 0.0
        %2619 = vmatpush1.msra.mxu0 0.0
        %2620 = vmatprep.subr.mxu0 0.0
        %2621 = vmatpush1.msra.mxu0 0.0
        %2622 = vmatprep.subr.mxu0 0.0
        %2623 = vmatpush1.msra.mxu0 0.0
        %2624 = vmatprep.subr.mxu0 0.0
        %2625 = vmatpush1.msra.mxu0 0.0
        %2626 = vmatprep.subr.mxu0 0.0
        %2627 = vmatpush1.msra.mxu0 0.0
        %2628 = vmatprep.subr.mxu0 0.0
        %2629 = vmatpush1.msra.mxu0 0.0
        %2630 = vmatprep.subr.mxu0 0.0
        %2631 = vmatpush1.msra.mxu0 0.0
        %2632 = vmatprep.subr.mxu0 0.0
        %2633 = vmatpush1.msra.mxu0 0.0
        %2634 = vmatprep.subr.mxu0 0.0
        %2635 = vmatpush1.msra.mxu0 0.0
        %2636 = vmatprep.subr.mxu0 0.0
        %2637 = vmatpush1.msra.mxu0 0.0
        %2638 = vmatprep.subr.mxu0 0.0
        %2639 = vmatpush1.msra.mxu0 0.0
        %2640 = vmatprep.subr.mxu0 0.0
        %2641 = vmatpush1.msra.mxu0 0.0
        %2642 = vmatprep.mubr.f32.mxu0 0.0
        %2643 = vmatmul.mubr.f32.gmra.mrb[0].mxu0 %v2528
        %v2644 = vpop.f32.mrb[0].mxu0
        %v2645 = vadd.f32 0.0, %v2644
        %v2646 = vpop.f32.mrb[0].mxu0
        %2647 = vmatprep.mubr.f32.mxu0 0.0
        %2648 = vmatmul.mubr.f32.gmra.mrb[0].mxu0 %v2531
        %v2649 = vpop.f32.mrb[0].mxu0
        %v2650 = vadd.f32 0.0, %v2649
        %v2651 = vpop.f32.mrb[0].mxu0
        %2652 = vmatprep.mubr.f32.mxu0 0.0
        %2653 = vmatmul.mubr.f32.gmra.mrb[0].mxu0 %v2534
        %v2654 = vpop.f32.mrb[0].mxu0
        %v2655 = vadd.f32 0.0, %v2654
        %v2656 = vpop.f32.mrb[0].mxu0
        %2657 = vmatprep.mubr.f32.mxu0 0.0
        %2658 = vmatmul.mubr.f32.gmra.mrb[0].mxu0 %v2537
        %v2659 = vpop.f32.mrb[0].mxu0
        %v2660 = vadd.f32 0.0, %v2659
        %v2661 = vpop.f32.mrb[0].mxu0
        %2662 = vmatprep.mubr.f32.mxu0 0.0
        %2663 = vmatmul.mubr.f32.gmra.mrb[0].mxu0 %v2540
        %v2664 = vpop.f32.mrb[0].mxu0
        %v2665 = vadd.f32 0.0, %v2664
        %v2666 = vpop.f32.mrb[0].mxu0
        %2667 = vmatprep.mubr.f32.mxu0 0.0
        %2668 = vmatmul.mubr.f32.gmra.mrb[0].mxu0 %v2543
        %v2669 = vpop.f32.mrb[0].mxu0
        %v2670 = vadd.f32 0.0, %v2669
        %v2671 = vpop.f32.mrb[0].mxu0
        %2672 = vmatprep.mubr.f32.mxu0 0.0
        %2673 = vmatmul.mubr.f32.gmra.mrb[0].mxu0 %v2546
        %v2674 = vpop.f32.mrb[0].mxu0
        %v2675 = vadd.f32 0.0, %v2674
        %v2676 = vpop.f32.mrb[0].mxu0
        %2677 = vmatprep.mubr.f32.mxu0 0.0
        %2678 = vmatmul.mubr.f32.gmra.mrb[0].mxu0 %v2549
        %v2679 = vpop.f32.mrb[0].mxu0
        %v2680 = vadd.f32 0.0, %v2679
        %v2681 = vpop.f32.mrb[0].mxu0
        %2682 = vmatprep.mubr.f32.mxu0 0.0
        %2683 = vmatmul.mubr.f32.gmra.mrb[0].mxu0 %v2552
        %v2684 = vpop.f32.mrb[0].mxu0
        %v2685 = vadd.f32 0.0, %v2684
        %v2686 = vpop.f32.mrb[0].mxu0
        %2687 = vmatprep.mubr.f32.mxu0 0.0
        %2688 = vmatmul.mubr.f32.gmra.mrb[0].mxu0 %v2555
        %v2689 = vpop.f32.mrb[0].mxu0
        %v2690 = vadd.f32 0.0, %v2689
        %v2691 = vpop.f32.mrb[0].mxu0
        %2692 = vmatprep.mubr.f32.mxu0 0.0
        %2693 = vmatmul.mubr.f32.gmra.mrb[0].mxu0 %v2558
        %v2694 = vpop.f32.mrb[0].mxu0
        %v2695 = vadd.f32 0.0, %v2694
        %v2696 = vpop.f32.mrb[0].mxu0
        %2697 = vmatprep.mubr.f32.mxu0 0.0
        %2698 = vmatmul.mubr.f32.gmra.mrb[0].mxu0 %v2561
        %v2699 = vpop.f32.mrb[0].mxu0
        %v2700 = vadd.f32 0.0, %v2699
        %v2701 = vpop.f32.mrb[0].mxu0
        %2702 = vmatprep.mubr.f32.mxu0 0.0
        %2703 = vmatmul.mubr.f32.gmra.mrb[0].mxu0 %v2564
        %v2704 = vpop.f32.mrb[0].mxu0
        %v2705 = vadd.f32 0.0, %v2704
        %v2706 = vpop.f32.mrb[0].mxu0
        %2707 = vmatprep.mubr.f32.mxu0 0.0
        %2708 = vmatmul.mubr.f32.gmra.mrb[0].mxu0 %v2567
        %v2709 = vpop.f32.mrb[0].mxu0
        %v2710 = vadd.f32 0.0, %v2709
        %v2711 = vpop.f32.mrb[0].mxu0
        %2712 = vmatprep.mubr.f32.mxu0 0.0
        %2713 = vmatmul.mubr.f32.gmra.mrb[0].mxu0 %v2570
        %v2714 = vpop.f32.mrb[0].mxu0
        %v2715 = vadd.f32 0.0, %v2714
        %v2716 = vpop.f32.mrb[0].mxu0
        %2717 = vmatprep.mubr.f32.mxu0 0.0
        %2718 = vmatmul.mubr.f32.gmra.mrb[0].mxu0 %v2573
        %v2719 = vpop.f32.mrb[0].mxu0
        %v2720 = vadd.f32 0.0, %v2719
        %v2721 = vpop.f32.mrb[0].mxu0
        %2722 = vdwg.mxu0
        %v2723 = vadd.f32 %v2267, %v2645
        %v2724 = vadd.f32 %v2268, %v2650
        %v2725 = vadd.f32 %v2269, %v2655
        %v2726 = vadd.f32 %v2270, %v2660
        %v2727 = vadd.f32 %v2271, %v2665
        %v2728 = vadd.f32 %v2272, %v2670
        %v2729 = vadd.f32 %v2273, %v2675
        %v2730 = vadd.f32 %v2274, %v2680
        %v2731 = vadd.f32 %v2275, %v2685
        %v2732 = vadd.f32 %v2276, %v2690
        %v2733 = vadd.f32 %v2277, %v2695
        %v2734 = vadd.f32 %v2278, %v2700
        %v2735 = vadd.f32 %v2279, %v2705
        %v2736 = vadd.f32 %v2280, %v2710
        %v2737 = vadd.f32 %v2281, %v2715
        %v2738 = vadd.f32 %v2282, %v2720
        %s2739 = scalar_lea.vmem %s5, 1
        %v2740 = vld [vmem:[%s2739] sm:$0x1]
        %s2741 = scalar_lea.vmem %s6, 1
        %v2742 = vld [vmem:[%s2741] sm:$0x1]
        %2743 = vadd.xlane.f32.xlu0 %v2723
        %v2744 = vpop.xlane.xlu0 %2743
        %2745 = vadd.xlane.f32.xlu0 %v2724
        %v2746 = vpop.xlane.xlu0 %2745
        %2747 = vadd.xlane.f32.xlu0 %v2725
        %v2748 = vpop.xlane.xlu0 %2747
        %2749 = vadd.xlane.f32.xlu0 %v2726
        %v2750 = vpop.xlane.xlu0 %2749
        %2751 = vadd.xlane.f32.xlu0 %v2727
        %v2752 = vpop.xlane.xlu0 %2751
        %2753 = vadd.xlane.f32.xlu0 %v2728
        %v2754 = vpop.xlane.xlu0 %2753
        %2755 = vadd.xlane.f32.xlu0 %v2729
        %v2756 = vpop.xlane.xlu0 %2755
        %2757 = vadd.xlane.f32.xlu0 %v2730
        %v2758 = vpop.xlane.xlu0 %2757
        %2759 = vadd.xlane.f32.xlu0 %v2731
        %v2760 = vpop.xlane.xlu0 %2759
        %2761 = vadd.xlane.f32.xlu0 %v2732
        %v2762 = vpop.xlane.xlu0 %2761
        %2763 = vadd.xlane.f32.xlu0 %v2733
        %v2764 = vpop.xlane.xlu0 %2763
        %2765 = vadd.xlane.f32.xlu0 %v2734
        %v2766 = vpop.xlane.xlu0 %2765
        %2767 = vadd.xlane.f32.xlu0 %v2735
        %v2768 = vpop.xlane.xlu0 %2767
        %2769 = vadd.xlane.f32.xlu0 %v2736
        %v2770 = vpop.xlane.xlu0 %2769
        %2771 = vadd.xlane.f32.xlu0 %v2737
        %v2772 = vpop.xlane.xlu0 %2771
        %2773 = vadd.xlane.f32.xlu0 %v2738
        %v2774 = vpop.xlane.xlu0 %2773
        %v2775 = vmul.f32 %v2744, %v1638
        %v2776 = vmul.f32 %v2746, %v1638
        %v2777 = vmul.f32 %v2748, %v1638
        %v2778 = vmul.f32 %v2750, %v1638
        %v2779 = vmul.f32 %v2752, %v1638
        %v2780 = vmul.f32 %v2754, %v1638
        %v2781 = vmul.f32 %v2756, %v1638
        %v2782 = vmul.f32 %v2758, %v1638
        %v2783 = vmul.f32 %v2760, %v1638
        %v2784 = vmul.f32 %v2762, %v1638
        %v2785 = vmul.f32 %v2764, %v1638
        %v2786 = vmul.f32 %v2766, %v1638
        %v2787 = vmul.f32 %v2768, %v1638
        %v2788 = vmul.f32 %v2770, %v1638
        %v2789 = vmul.f32 %v2772, %v1638
        %v2790 = vmul.f32 %v2774, %v1638
        %v2791 = vsub.f32 %v2723, %v2775
        %v2792 = vsub.f32 %v2724, %v2776
        %v2793 = vsub.f32 %v2725, %v2777
        %v2794 = vsub.f32 %v2726, %v2778
        %v2795 = vsub.f32 %v2727, %v2779
        %v2796 = vsub.f32 %v2728, %v2780
        %v2797 = vsub.f32 %v2729, %v2781
        %v2798 = vsub.f32 %v2730, %v2782
        %v2799 = vsub.f32 %v2731, %v2783
        %v2800 = vsub.f32 %v2732, %v2784
        %v2801 = vsub.f32 %v2733, %v2785
        %v2802 = vsub.f32 %v2734, %v2786
        %v2803 = vsub.f32 %v2735, %v2787
        %v2804 = vsub.f32 %v2736, %v2788
        %v2805 = vsub.f32 %v2737, %v2789
        %v2806 = vsub.f32 %v2738, %v2790
        %v2807 = vmul.f32 %v2791, %v2791
        %v2808 = vmul.f32 %v2792, %v2792
        %v2809 = vmul.f32 %v2793, %v2793
        %v2810 = vmul.f32 %v2794, %v2794
        %v2811 = vmul.f32 %v2795, %v2795
        %v2812 = vmul.f32 %v2796, %v2796
        %v2813 = vmul.f32 %v2797, %v2797
        %v2814 = vmul.f32 %v2798, %v2798
        %v2815 = vmul.f32 %v2799, %v2799
        %v2816 = vmul.f32 %v2800, %v2800
        %v2817 = vmul.f32 %v2801, %v2801
        %v2818 = vmul.f32 %v2802, %v2802
        %v2819 = vmul.f32 %v2803, %v2803
        %v2820 = vmul.f32 %v2804, %v2804
        %v2821 = vmul.f32 %v2805, %v2805
        %v2822 = vmul.f32 %v2806, %v2806
        %2823 = vadd.xlane.f32.xlu0 %v2807
        %v2824 = vpop.xlane.xlu0 %2823
        %2825 = vadd.xlane.f32.xlu0 %v2808
        %v2826 = vpop.xlane.xlu0 %2825
        %2827 = vadd.xlane.f32.xlu0 %v2809
        %v2828 = vpop.xlane.xlu0 %2827
        %2829 = vadd.xlane.f32.xlu0 %v2810
        %v2830 = vpop.xlane.xlu0 %2829
        %2831 = vadd.xlane.f32.xlu0 %v2811
        %v2832 = vpop.xlane.xlu0 %2831
        %2833 = vadd.xlane.f32.xlu0 %v2812
        %v2834 = vpop.xlane.xlu0 %2833
        %2835 = vadd.xlane.f32.xlu0 %v2813
        %v2836 = vpop.xlane.xlu0 %2835
        %2837 = vadd.xlane.f32.xlu0 %v2814
        %v2838 = vpop.xlane.xlu0 %2837
        %2839 = vadd.xlane.f32.xlu0 %v2815
        %v2840 = vpop.xlane.xlu0 %2839
        %2841 = vadd.xlane.f32.xlu0 %v2816
        %v2842 = vpop.xlane.xlu0 %2841
        %2843 = vadd.xlane.f32.xlu0 %v2817
        %v2844 = vpop.xlane.xlu0 %2843
        %2845 = vadd.xlane.f32.xlu0 %v2818
        %v2846 = vpop.xlane.xlu0 %2845
        %2847 = vadd.xlane.f32.xlu0 %v2819
        %v2848 = vpop.xlane.xlu0 %2847
        %2849 = vadd.xlane.f32.xlu0 %v2820
        %v2850 = vpop.xlane.xlu0 %2849
        %2851 = vadd.xlane.f32.xlu0 %v2821
        %v2852 = vpop.xlane.xlu0 %2851
        %2853 = vadd.xlane.f32.xlu0 %v2822
        %v2854 = vpop.xlane.xlu0 %2853
        %v2855 = vmul.f32 %v2824, %v1638
        %v2856 = vmul.f32 %v2826, %v1638
        %v2857 = vmul.f32 %v2828, %v1638
        %v2858 = vmul.f32 %v2830, %v1638
        %v2859 = vmul.f32 %v2832, %v1638
        %v2860 = vmul.f32 %v2834, %v1638
        %v2861 = vmul.f32 %v2836, %v1638
        %v2862 = vmul.f32 %v2838, %v1638
        %v2863 = vmul.f32 %v2840, %v1638
        %v2864 = vmul.f32 %v2842, %v1638
        %v2865 = vmul.f32 %v2844, %v1638
        %v2866 = vmul.f32 %v2846, %v1638
        %v2867 = vmul.f32 %v2848, %v1638
        %v2868 = vmul.f32 %v2850, %v1638
        %v2869 = vmul.f32 %v2852, %v1638
        %v2870 = vmul.f32 %v2854, %v1638
        %v2871 = vadd.f32 %v2855, 1e-05
        %v2872 = vadd.f32 %v2856, 1e-05
        %v2873 = vadd.f32 %v2857, 1e-05
        %v2874 = vadd.f32 %v2858, 1e-05
        %v2875 = vadd.f32 %v2859, 1e-05
        %v2876 = vadd.f32 %v2860, 1e-05
        %v2877 = vadd.f32 %v2861, 1e-05
        %v2878 = vadd.f32 %v2862, 1e-05
        %v2879 = vadd.f32 %v2863, 1e-05
        %v2880 = vadd.f32 %v2864, 1e-05
        %v2881 = vadd.f32 %v2865, 1e-05
        %v2882 = vadd.f32 %v2866, 1e-05
        %v2883 = vadd.f32 %v2867, 1e-05
        %v2884 = vadd.f32 %v2868, 1e-05
        %v2885 = vadd.f32 %v2869, 1e-05
        %v2886 = vadd.f32 %v2870, 1e-05
        %v2887 = vrsqrt.pop %v2871
        %v2888 = vrsqrt.pop %v2872
        %v2889 = vrsqrt.pop %v2873
        %v2890 = vrsqrt.pop %v2874
        %v2891 = vrsqrt.pop %v2875
        %v2892 = vrsqrt.pop %v2876
        %v2893 = vrsqrt.pop %v2877
        %v2894 = vrsqrt.pop %v2878
        %v2895 = vrsqrt.pop %v2879
        %v2896 = vrsqrt.pop %v2880
        %v2897 = vrsqrt.pop %v2881
        %v2898 = vrsqrt.pop %v2882
        %v2899 = vrsqrt.pop %v2883
        %v2900 = vrsqrt.pop %v2884
        %v2901 = vrsqrt.pop %v2885
        %v2902 = vrsqrt.pop %v2886
        %v2903 = vmul.f32 %v2791, %v2887
        %v2904 = vmul.f32 %v2792, %v2888
        %v2905 = vmul.f32 %v2793, %v2889
        %v2906 = vmul.f32 %v2794, %v2890
        %v2907 = vmul.f32 %v2795, %v2891
        %v2908 = vmul.f32 %v2796, %v2892
        %v2909 = vmul.f32 %v2797, %v2893
        %v2910 = vmul.f32 %v2798, %v2894
        %v2911 = vmul.f32 %v2799, %v2895
        %v2912 = vmul.f32 %v2800, %v2896
        %v2913 = vmul.f32 %v2801, %v2897
        %v2914 = vmul.f32 %v2802, %v2898
        %v2915 = vmul.f32 %v2803, %v2899
        %v2916 = vmul.f32 %v2804, %v2900
        %v2917 = vmul.f32 %v2805, %v2901
        %v2918 = vmul.f32 %v2806, %v2902
        %v2920 = vlaneseq
        %v2921 = vshrl.u32 %v2920, 7
        %v2922 = vsub.s32 0, %v2921
        %v2923 = vrot.slane %v2740, %v2922
        %v2925 = vmul.f32 %v2903, %v2923
        %v2926 = vmul.f32 %v2904, %v2923
        %v2927 = vmul.f32 %v2905, %v2923
        %v2928 = vmul.f32 %v2906, %v2923
        %v2929 = vmul.f32 %v2907, %v2923
        %v2930 = vmul.f32 %v2908, %v2923
        %v2931 = vmul.f32 %v2909, %v2923
        %v2932 = vmul.f32 %v2910, %v2923
        %v2933 = vmul.f32 %v2911, %v2923
        %v2934 = vmul.f32 %v2912, %v2923
        %v2935 = vmul.f32 %v2913, %v2923
        %v2936 = vmul.f32 %v2914, %v2923
        %v2937 = vmul.f32 %v2915, %v2923
        %v2938 = vmul.f32 %v2916, %v2923
        %v2939 = vmul.f32 %v2917, %v2923
        %v2940 = vmul.f32 %v2918, %v2923
        %v2942 = vlaneseq
        %v2943 = vshrl.u32 %v2942, 7
        %v2944 = vsub.s32 0, %v2943
        %v2945 = vrot.slane %v2742, %v2944
        %v2947 = vadd.f32 %v2925, %v2945
        %v2948 = vadd.f32 %v2926, %v2945
        %v2949 = vadd.f32 %v2927, %v2945
        %v2950 = vadd.f32 %v2928, %v2945
        %v2951 = vadd.f32 %v2929, %v2945
        %v2952 = vadd.f32 %v2930, %v2945
        %v2953 = vadd.f32 %v2931, %v2945
        %v2954 = vadd.f32 %v2932, %v2945
        %v2955 = vadd.f32 %v2933, %v2945
        %v2956 = vadd.f32 %v2934, %v2945
        %v2957 = vadd.f32 %v2935, %v2945
        %v2958 = vadd.f32 %v2936, %v2945
        %v2959 = vadd.f32 %v2937, %v2945
        %v2960 = vadd.f32 %v2938, %v2945
        %v2961 = vadd.f32 %v2939, %v2945
        %v2962 = vadd.f32 %v2940, %v2945
        %v2963 = vld [vmem:[%s7] sm:$0x1]
        %v2964 = vld [vmem:[%s8] sm:$0x1]
        %2965 = vadd.xlane.f32.xlu0 %v2947
        %v2966 = vpop.xlane.xlu0 %2965
        %2967 = vadd.xlane.f32.xlu0 %v2948
        %v2968 = vpop.xlane.xlu0 %2967
        %2969 = vadd.xlane.f32.xlu0 %v2949
        %v2970 = vpop.xlane.xlu0 %2969
        %2971 = vadd.xlane.f32.xlu0 %v2950
        %v2972 = vpop.xlane.xlu0 %2971
        %2973 = vadd.xlane.f32.xlu0 %v2951
        %v2974 = vpop.xlane.xlu0 %2973
        %2975 = vadd.xlane.f32.xlu0 %v2952
        %v2976 = vpop.xlane.xlu0 %2975
        %2977 = vadd.xlane.f32.xlu0 %v2953
        %v2978 = vpop.xlane.xlu0 %2977
        %2979 = vadd.xlane.f32.xlu0 %v2954
        %v2980 = vpop.xlane.xlu0 %2979
        %2981 = vadd.xlane.f32.xlu0 %v2955
        %v2982 = vpop.xlane.xlu0 %2981
        %2983 = vadd.xlane.f32.xlu0 %v2956
        %v2984 = vpop.xlane.xlu0 %2983
        %2985 = vadd.xlane.f32.xlu0 %v2957
        %v2986 = vpop.xlane.xlu0 %2985
        %2987 = vadd.xlane.f32.xlu0 %v2958
        %v2988 = vpop.xlane.xlu0 %2987
        %2989 = vadd.xlane.f32.xlu0 %v2959
        %v2990 = vpop.xlane.xlu0 %2989
        %2991 = vadd.xlane.f32.xlu0 %v2960
        %v2992 = vpop.xlane.xlu0 %2991
        %2993 = vadd.xlane.f32.xlu0 %v2961
        %v2994 = vpop.xlane.xlu0 %2993
        %2995 = vadd.xlane.f32.xlu0 %v2962
        %v2996 = vpop.xlane.xlu0 %2995
        %v2997 = vmul.f32 %v2966, %v1638
        %v2998 = vmul.f32 %v2968, %v1638
        %v2999 = vmul.f32 %v2970, %v1638
        %v3000 = vmul.f32 %v2972, %v1638
        %v3001 = vmul.f32 %v2974, %v1638
        %v3002 = vmul.f32 %v2976, %v1638
        %v3003 = vmul.f32 %v2978, %v1638
        %v3004 = vmul.f32 %v2980, %v1638
        %v3005 = vmul.f32 %v2982, %v1638
        %v3006 = vmul.f32 %v2984, %v1638
        %v3007 = vmul.f32 %v2986, %v1638
        %v3008 = vmul.f32 %v2988, %v1638
        %v3009 = vmul.f32 %v2990, %v1638
        %v3010 = vmul.f32 %v2992, %v1638
        %v3011 = vmul.f32 %v2994, %v1638
        %v3012 = vmul.f32 %v2996, %v1638
        %v3013 = vsub.f32 %v2947, %v2997
        %v3014 = vsub.f32 %v2948, %v2998
        %v3015 = vsub.f32 %v2949, %v2999
        %v3016 = vsub.f32 %v2950, %v3000
        %v3017 = vsub.f32 %v2951, %v3001
        %v3018 = vsub.f32 %v2952, %v3002
        %v3019 = vsub.f32 %v2953, %v3003
        %v3020 = vsub.f32 %v2954, %v3004
        %v3021 = vsub.f32 %v2955, %v3005
        %v3022 = vsub.f32 %v2956, %v3006
        %v3023 = vsub.f32 %v2957, %v3007
        %v3024 = vsub.f32 %v2958, %v3008
        %v3025 = vsub.f32 %v2959, %v3009
        %v3026 = vsub.f32 %v2960, %v3010
        %v3027 = vsub.f32 %v2961, %v3011
        %v3028 = vsub.f32 %v2962, %v3012
        %v3029 = vmul.f32 %v3013, %v3013
        %v3030 = vmul.f32 %v3014, %v3014
        %v3031 = vmul.f32 %v3015, %v3015
        %v3032 = vmul.f32 %v3016, %v3016
        %v3033 = vmul.f32 %v3017, %v3017
        %v3034 = vmul.f32 %v3018, %v3018
        %v3035 = vmul.f32 %v3019, %v3019
        %v3036 = vmul.f32 %v3020, %v3020
        %v3037 = vmul.f32 %v3021, %v3021
        %v3038 = vmul.f32 %v3022, %v3022
        %v3039 = vmul.f32 %v3023, %v3023
        %v3040 = vmul.f32 %v3024, %v3024
        %v3041 = vmul.f32 %v3025, %v3025
        %v3042 = vmul.f32 %v3026, %v3026
        %v3043 = vmul.f32 %v3027, %v3027
        %v3044 = vmul.f32 %v3028, %v3028
        %3045 = vadd.xlane.f32.xlu0 %v3029
        %v3046 = vpop.xlane.xlu0 %3045
        %3047 = vadd.xlane.f32.xlu0 %v3030
        %v3048 = vpop.xlane.xlu0 %3047
        %3049 = vadd.xlane.f32.xlu0 %v3031
        %v3050 = vpop.xlane.xlu0 %3049
        %3051 = vadd.xlane.f32.xlu0 %v3032
        %v3052 = vpop.xlane.xlu0 %3051
        %3053 = vadd.xlane.f32.xlu0 %v3033
        %v3054 = vpop.xlane.xlu0 %3053
        %3055 = vadd.xlane.f32.xlu0 %v3034
        %v3056 = vpop.xlane.xlu0 %3055
        %3057 = vadd.xlane.f32.xlu0 %v3035
        %v3058 = vpop.xlane.xlu0 %3057
        %3059 = vadd.xlane.f32.xlu0 %v3036
        %v3060 = vpop.xlane.xlu0 %3059
        %3061 = vadd.xlane.f32.xlu0 %v3037
        %v3062 = vpop.xlane.xlu0 %3061
        %3063 = vadd.xlane.f32.xlu0 %v3038
        %v3064 = vpop.xlane.xlu0 %3063
        %3065 = vadd.xlane.f32.xlu0 %v3039
        %v3066 = vpop.xlane.xlu0 %3065
        %3067 = vadd.xlane.f32.xlu0 %v3040
        %v3068 = vpop.xlane.xlu0 %3067
        %3069 = vadd.xlane.f32.xlu0 %v3041
        %v3070 = vpop.xlane.xlu0 %3069
        %3071 = vadd.xlane.f32.xlu0 %v3042
        %v3072 = vpop.xlane.xlu0 %3071
        %3073 = vadd.xlane.f32.xlu0 %v3043
        %v3074 = vpop.xlane.xlu0 %3073
        %3075 = vadd.xlane.f32.xlu0 %v3044
        %v3076 = vpop.xlane.xlu0 %3075
        %v3077 = vmul.f32 %v3046, %v1638
        %v3078 = vmul.f32 %v3048, %v1638
        %v3079 = vmul.f32 %v3050, %v1638
        %v3080 = vmul.f32 %v3052, %v1638
        %v3081 = vmul.f32 %v3054, %v1638
        %v3082 = vmul.f32 %v3056, %v1638
        %v3083 = vmul.f32 %v3058, %v1638
        %v3084 = vmul.f32 %v3060, %v1638
        %v3085 = vmul.f32 %v3062, %v1638
        %v3086 = vmul.f32 %v3064, %v1638
        %v3087 = vmul.f32 %v3066, %v1638
        %v3088 = vmul.f32 %v3068, %v1638
        %v3089 = vmul.f32 %v3070, %v1638
        %v3090 = vmul.f32 %v3072, %v1638
        %v3091 = vmul.f32 %v3074, %v1638
        %v3092 = vmul.f32 %v3076, %v1638
        %v3093 = vadd.f32 %v3077, 1e-05
        %v3094 = vadd.f32 %v3078, 1e-05
        %v3095 = vadd.f32 %v3079, 1e-05
        %v3096 = vadd.f32 %v3080, 1e-05
        %v3097 = vadd.f32 %v3081, 1e-05
        %v3098 = vadd.f32 %v3082, 1e-05
        %v3099 = vadd.f32 %v3083, 1e-05
        %v3100 = vadd.f32 %v3084, 1e-05
        %v3101 = vadd.f32 %v3085, 1e-05
        %v3102 = vadd.f32 %v3086, 1e-05
        %v3103 = vadd.f32 %v3087, 1e-05
        %v3104 = vadd.f32 %v3088, 1e-05
        %v3105 = vadd.f32 %v3089, 1e-05
        %v3106 = vadd.f32 %v3090, 1e-05
        %v3107 = vadd.f32 %v3091, 1e-05
        %v3108 = vadd.f32 %v3092, 1e-05
        %v3109 = vrsqrt.pop %v3093
        %v3110 = vrsqrt.pop %v3094
        %v3111 = vrsqrt.pop %v3095
        %v3112 = vrsqrt.pop %v3096
        %v3113 = vrsqrt.pop %v3097
        %v3114 = vrsqrt.pop %v3098
        %v3115 = vrsqrt.pop %v3099
        %v3116 = vrsqrt.pop %v3100
        %v3117 = vrsqrt.pop %v3101
        %v3118 = vrsqrt.pop %v3102
        %v3119 = vrsqrt.pop %v3103
        %v3120 = vrsqrt.pop %v3104
        %v3121 = vrsqrt.pop %v3105
        %v3122 = vrsqrt.pop %v3106
        %v3123 = vrsqrt.pop %v3107
        %v3124 = vrsqrt.pop %v3108
        %v3125 = vmul.f32 %v3013, %v3109
        %v3126 = vmul.f32 %v3014, %v3110
        %v3127 = vmul.f32 %v3015, %v3111
        %v3128 = vmul.f32 %v3016, %v3112
        %v3129 = vmul.f32 %v3017, %v3113
        %v3130 = vmul.f32 %v3018, %v3114
        %v3131 = vmul.f32 %v3019, %v3115
        %v3132 = vmul.f32 %v3020, %v3116
        %v3133 = vmul.f32 %v3021, %v3117
        %v3134 = vmul.f32 %v3022, %v3118
        %v3135 = vmul.f32 %v3023, %v3119
        %v3136 = vmul.f32 %v3024, %v3120
        %v3137 = vmul.f32 %v3025, %v3121
        %v3138 = vmul.f32 %v3026, %v3122
        %v3139 = vmul.f32 %v3027, %v3123
        %v3140 = vmul.f32 %v3028, %v3124
        %v3142 = vlaneseq
        %v3143 = vshrl.u32 %v3142, 7
        %v3144 = vsub.s32 0, %v3143
        %v3145 = vrot.slane %v2963, %v3144
        %v3147 = vmul.f32 %v3125, %v3145
        %v3148 = vmul.f32 %v3126, %v3145
        %v3149 = vmul.f32 %v3127, %v3145
        %v3150 = vmul.f32 %v3128, %v3145
        %v3151 = vmul.f32 %v3129, %v3145
        %v3152 = vmul.f32 %v3130, %v3145
        %v3153 = vmul.f32 %v3131, %v3145
        %v3154 = vmul.f32 %v3132, %v3145
        %v3155 = vmul.f32 %v3133, %v3145
        %v3156 = vmul.f32 %v3134, %v3145
        %v3157 = vmul.f32 %v3135, %v3145
        %v3158 = vmul.f32 %v3136, %v3145
        %v3159 = vmul.f32 %v3137, %v3145
        %v3160 = vmul.f32 %v3138, %v3145
        %v3161 = vmul.f32 %v3139, %v3145
        %v3162 = vmul.f32 %v3140, %v3145
        %v3164 = vlaneseq
        %v3165 = vshrl.u32 %v3164, 7
        %v3166 = vsub.s32 0, %v3165
        %v3167 = vrot.slane %v2964, %v3166
        %v3169 = vadd.f32 %v3147, %v3167
        %v3170 = vadd.f32 %v3148, %v3167
        %v3171 = vadd.f32 %v3149, %v3167
        %v3172 = vadd.f32 %v3150, %v3167
        %v3173 = vadd.f32 %v3151, %v3167
        %v3174 = vadd.f32 %v3152, %v3167
        %v3175 = vadd.f32 %v3153, %v3167
        %v3176 = vadd.f32 %v3154, %v3167
        %v3177 = vadd.f32 %v3155, %v3167
        %v3178 = vadd.f32 %v3156, %v3167
        %v3179 = vadd.f32 %v3157, %v3167
        %v3180 = vadd.f32 %v3158, %v3167
        %v3181 = vadd.f32 %v3159, %v3167
        %v3182 = vadd.f32 %v3160, %v3167
        %v3183 = vadd.f32 %v3161, %v3167
        %v3184 = vadd.f32 %v3162, %v3167
        %v3185 = vld [vmem:[%s9] sm:$0xff]
        %v3186 = vld [vmem:[%s9 + $0x8] sm:$0xff]
        %v3187 = vld [vmem:[%s9 + $0x10] sm:$0xff]
        %v3188 = vld [vmem:[%s9 + $0x18] sm:$0xff]
        %v3189 = vld [vmem:[%s9 + $0x20] sm:$0xff]
        %v3190 = vld [vmem:[%s9 + $0x28] sm:$0xff]
        %v3191 = vld [vmem:[%s9 + $0x30] sm:$0xff]
        %v3192 = vld [vmem:[%s9 + $0x38] sm:$0xff]
        %v3193 = vld [vmem:[%s9 + $0x40] sm:$0xff]
        %v3194 = vld [vmem:[%s9 + $0x48] sm:$0xff]
        %v3195 = vld [vmem:[%s9 + $0x50] sm:$0xff]
        %v3196 = vld [vmem:[%s9 + $0x58] sm:$0xff]
        %v3197 = vld [vmem:[%s9 + $0x60] sm:$0xff]
        %v3198 = vld [vmem:[%s9 + $0x68] sm:$0xff]
        %v3199 = vld [vmem:[%s9 + $0x70] sm:$0xff]
        %v3200 = vld [vmem:[%s9 + $0x78] sm:$0xff]
        %v3201 = vld [vmem:[%s10] sm:$0x1]
        %v3203 = vlaneseq
        %v3204 = vshrl.u32 %v3203, 7
        %v3205 = vsub.s32 0, %v3204
        %v3206 = vrot.slane %v3201, %v3205
        %3208 = vmatprep.subr.mxu0 0.0
        %3209 = vmatpush1.msra.mxu0 %v3185
        %3210 = vmatprep.subr.mxu0 0.0
        %3211 = vmatpush1.msra.mxu0 %v3186
        %3212 = vmatprep.subr.mxu0 0.0
        %3213 = vmatpush1.msra.mxu0 %v3187
        %3214 = vmatprep.subr.mxu0 0.0
        %3215 = vmatpush1.msra.mxu0 %v3188
        %3216 = vmatprep.subr.mxu0 0.0
        %3217 = vmatpush1.msra.mxu0 %v3189
        %3218 = vmatprep.subr.mxu0 0.0
        %3219 = vmatpush1.msra.mxu0 %v3190
        %3220 = vmatprep.subr.mxu0 0.0
        %3221 = vmatpush1.msra.mxu0 %v3191
        %3222 = vmatprep.subr.mxu0 0.0
        %3223 = vmatpush1.msra.mxu0 %v3192
        %3224 = vmatprep.subr.mxu0 0.0
        %3225 = vmatpush1.msra.mxu0 %v3193
        %3226 = vmatprep.subr.mxu0 0.0
        %3227 = vmatpush1.msra.mxu0 %v3194
        %3228 = vmatprep.subr.mxu0 0.0
        %3229 = vmatpush1.msra.mxu0 %v3195
        %3230 = vmatprep.subr.mxu0 0.0
        %3231 = vmatpush1.msra.mxu0 %v3196
        %3232 = vmatprep.subr.mxu0 0.0
        %3233 = vmatpush1.msra.mxu0 %v3197
        %3234 = vmatprep.subr.mxu0 0.0
        %3235 = vmatpush1.msra.mxu0 %v3198
        %3236 = vmatprep.subr.mxu0 0.0
        %3237 = vmatpush1.msra.mxu0 %v3199
        %3238 = vmatprep.subr.mxu0 0.0
        %3239 = vmatpush1.msra.mxu0 %v3200
        %3240 = vmatprep.subr.mxu0 0.0
        %3241 = vmatpush1.msra.mxu0 0.0
        %3242 = vmatprep.subr.mxu0 0.0
        %3243 = vmatpush1.msra.mxu0 0.0
        %3244 = vmatprep.subr.mxu0 0.0
        %3245 = vmatpush1.msra.mxu0 0.0
        %3246 = vmatprep.subr.mxu0 0.0
        %3247 = vmatpush1.msra.mxu0 0.0
        %3248 = vmatprep.subr.mxu0 0.0
        %3249 = vmatpush1.msra.mxu0 0.0
        %3250 = vmatprep.subr.mxu0 0.0
        %3251 = vmatpush1.msra.mxu0 0.0
        %3252 = vmatprep.subr.mxu0 0.0
        %3253 = vmatpush1.msra.mxu0 0.0
        %3254 = vmatprep.subr.mxu0 0.0
        %3255 = vmatpush1.msra.mxu0 0.0
        %3256 = vmatprep.subr.mxu0 0.0
        %3257 = vmatpush1.msra.mxu0 0.0
        %3258 = vmatprep.subr.mxu0 0.0
        %3259 = vmatpush1.msra.mxu0 0.0
        %3260 = vmatprep.subr.mxu0 0.0
        %3261 = vmatpush1.msra.mxu0 0.0
        %3262 = vmatprep.subr.mxu0 0.0
        %3263 = vmatpush1.msra.mxu0 0.0
        %3264 = vmatprep.subr.mxu0 0.0
        %3265 = vmatpush1.msra.mxu0 0.0
        %3266 = vmatprep.subr.mxu0 0.0
        %3267 = vmatpush1.msra.mxu0 0.0
        %3268 = vmatprep.subr.mxu0 0.0
        %3269 = vmatpush1.msra.mxu0 0.0
        %3270 = vmatprep.subr.mxu0 0.0
        %3271 = vmatpush1.msra.mxu0 0.0
        %3272 = vmatprep.mubr.f32.mxu0 0.0
        %3273 = vmatmul.mubr.f32.gmra.mrb[0].mxu0 %v3169
        %v3274 = vpop.f32.mrb[0].mxu0
        %v3275 = vadd.f32 %v3206, %v3274
        %v3276 = vpop.f32.mrb[0].mxu0
        %3277 = vmatprep.mubr.f32.mxu0 0.0
        %3278 = vmatmul.mubr.f32.gmra.mrb[0].mxu0 %v3170
        %v3279 = vpop.f32.mrb[0].mxu0
        %v3280 = vadd.f32 %v3206, %v3279
        %v3281 = vpop.f32.mrb[0].mxu0
        %3282 = vmatprep.mubr.f32.mxu0 0.0
        %3283 = vmatmul.mubr.f32.gmra.mrb[0].mxu0 %v3171
        %v3284 = vpop.f32.mrb[0].mxu0
        %v3285 = vadd.f32 %v3206, %v3284
        %v3286 = vpop.f32.mrb[0].mxu0
        %3287 = vmatprep.mubr.f32.mxu0 0.0
        %3288 = vmatmul.mubr.f32.gmra.mrb[0].mxu0 %v3172
        %v3289 = vpop.f32.mrb[0].mxu0
        %v3290 = vadd.f32 %v3206, %v3289
        %v3291 = vpop.f32.mrb[0].mxu0
        %3292 = vmatprep.mubr.f32.mxu0 0.0
        %3293 = vmatmul.mubr.f32.gmra.mrb[0].mxu0 %v3173
        %v3294 = vpop.f32.mrb[0].mxu0
        %v3295 = vadd.f32 %v3206, %v3294
        %v3296 = vpop.f32.mrb[0].mxu0
        %3297 = vmatprep.mubr.f32.mxu0 0.0
        %3298 = vmatmul.mubr.f32.gmra.mrb[0].mxu0 %v3174
        %v3299 = vpop.f32.mrb[0].mxu0
        %v3300 = vadd.f32 %v3206, %v3299
        %v3301 = vpop.f32.mrb[0].mxu0
        %3302 = vmatprep.mubr.f32.mxu0 0.0
        %3303 = vmatmul.mubr.f32.gmra.mrb[0].mxu0 %v3175
        %v3304 = vpop.f32.mrb[0].mxu0
        %v3305 = vadd.f32 %v3206, %v3304
        %v3306 = vpop.f32.mrb[0].mxu0
        %3307 = vmatprep.mubr.f32.mxu0 0.0
        %3308 = vmatmul.mubr.f32.gmra.mrb[0].mxu0 %v3176
        %v3309 = vpop.f32.mrb[0].mxu0
        %v3310 = vadd.f32 %v3206, %v3309
        %v3311 = vpop.f32.mrb[0].mxu0
        %3312 = vmatprep.mubr.f32.mxu0 0.0
        %3313 = vmatmul.mubr.f32.gmra.mrb[0].mxu0 %v3177
        %v3314 = vpop.f32.mrb[0].mxu0
        %v3315 = vadd.f32 %v3206, %v3314
        %v3316 = vpop.f32.mrb[0].mxu0
        %3317 = vmatprep.mubr.f32.mxu0 0.0
        %3318 = vmatmul.mubr.f32.gmra.mrb[0].mxu0 %v3178
        %v3319 = vpop.f32.mrb[0].mxu0
        %v3320 = vadd.f32 %v3206, %v3319
        %v3321 = vpop.f32.mrb[0].mxu0
        %3322 = vmatprep.mubr.f32.mxu0 0.0
        %3323 = vmatmul.mubr.f32.gmra.mrb[0].mxu0 %v3179
        %v3324 = vpop.f32.mrb[0].mxu0
        %v3325 = vadd.f32 %v3206, %v3324
        %v3326 = vpop.f32.mrb[0].mxu0
        %3327 = vmatprep.mubr.f32.mxu0 0.0
        %3328 = vmatmul.mubr.f32.gmra.mrb[0].mxu0 %v3180
        %v3329 = vpop.f32.mrb[0].mxu0
        %v3330 = vadd.f32 %v3206, %v3329
        %v3331 = vpop.f32.mrb[0].mxu0
        %3332 = vmatprep.mubr.f32.mxu0 0.0
        %3333 = vmatmul.mubr.f32.gmra.mrb[0].mxu0 %v3181
        %v3334 = vpop.f32.mrb[0].mxu0
        %v3335 = vadd.f32 %v3206, %v3334
        %v3336 = vpop.f32.mrb[0].mxu0
        %3337 = vmatprep.mubr.f32.mxu0 0.0
        %3338 = vmatmul.mubr.f32.gmra.mrb[0].mxu0 %v3182
        %v3339 = vpop.f32.mrb[0].mxu0
        %v3340 = vadd.f32 %v3206, %v3339
        %v3341 = vpop.f32.mrb[0].mxu0
        %3342 = vmatprep.mubr.f32.mxu0 0.0
        %3343 = vmatmul.mubr.f32.gmra.mrb[0].mxu0 %v3183
        %v3344 = vpop.f32.mrb[0].mxu0
        %v3345 = vadd.f32 %v3206, %v3344
        %v3346 = vpop.f32.mrb[0].mxu0
        %3347 = vmatprep.mubr.f32.mxu0 0.0
        %3348 = vmatmul.mubr.f32.gmra.mrb[0].mxu0 %v3184
        %v3349 = vpop.f32.mrb[0].mxu0
        %v3350 = vadd.f32 %v3206, %v3349
        %v3351 = vpop.f32.mrb[0].mxu0
        %3352 = vdwg.mxu0
        %v3353 = vmax.f32 %v3275, 0.0
        %v3354 = vmax.f32 %v3280, 0.0
        %v3355 = vmax.f32 %v3285, 0.0
        %v3356 = vmax.f32 %v3290, 0.0
        %v3357 = vmax.f32 %v3295, 0.0
        %v3358 = vmax.f32 %v3300, 0.0
        %v3359 = vmax.f32 %v3305, 0.0
        %v3360 = vmax.f32 %v3310, 0.0
        %v3361 = vmax.f32 %v3315, 0.0
        %v3362 = vmax.f32 %v3320, 0.0
        %v3363 = vmax.f32 %v3325, 0.0
        %v3364 = vmax.f32 %v3330, 0.0
        %v3365 = vmax.f32 %v3335, 0.0
        %v3366 = vmax.f32 %v3340, 0.0
        %v3367 = vmax.f32 %v3345, 0.0
        %v3368 = vmax.f32 %v3350, 0.0
        %v3369 = vld [vmem:[%s11] sm:$0xff]
        %v3370 = vld [vmem:[%s11 + $0x8] sm:$0xff]
        %v3371 = vld [vmem:[%s11 + $0x10] sm:$0xff]
        %v3372 = vld [vmem:[%s11 + $0x18] sm:$0xff]
        %v3373 = vld [vmem:[%s11 + $0x20] sm:$0xff]
        %v3374 = vld [vmem:[%s11 + $0x28] sm:$0xff]
        %v3375 = vld [vmem:[%s11 + $0x30] sm:$0xff]
        %v3376 = vld [vmem:[%s11 + $0x38] sm:$0xff]
        %v3377 = vld [vmem:[%s12] sm:$0x1]
        %v3379 = vlaneseq
        %v3380 = vshrl.u32 %v3379, 7
        %v3381 = vsub.s32 0, %v3380
        %v3382 = vrot.slane %v3377, %v3381
        %vm3384 = vcmask 523264
        %v3386 = vsel %vm3384, %v3353, 0
        %v3389 = vsel %vm3384, %v3354, 0
        %v3392 = vsel %vm3384, %v3355, 0
        %v3395 = vsel %vm3384, %v3356, 0
        %v3398 = vsel %vm3384, %v3357, 0
        %v3401 = vsel %vm3384, %v3358, 0
        %v3404 = vsel %vm3384, %v3359, 0
        %v3407 = vsel %vm3384, %v3360, 0
        %v3410 = vsel %vm3384, %v3361, 0
        %v3413 = vsel %vm3384, %v3362, 0
        %v3416 = vsel %vm3384, %v3363, 0
        %v3419 = vsel %vm3384, %v3364, 0
        %v3422 = vsel %vm3384, %v3365, 0
        %v3425 = vsel %vm3384, %v3366, 0
        %v3428 = vsel %vm3384, %v3367, 0
        %v3431 = vsel %vm3384, %v3368, 0
        %3433 = vmatprep.subr.mxu0 0.0
        %3434 = vmatpush1.msra.mxu0 %v3369
        %3435 = vmatprep.subr.mxu0 0.0
        %3436 = vmatpush1.msra.mxu0 %v3370
        %3437 = vmatprep.subr.mxu0 0.0
        %3438 = vmatpush1.msra.mxu0 %v3371
        %3439 = vmatprep.subr.mxu0 0.0
        %3440 = vmatpush1.msra.mxu0 %v3372
        %3441 = vmatprep.subr.mxu0 0.0
        %3442 = vmatpush1.msra.mxu0 %v3373
        %3443 = vmatprep.subr.mxu0 0.0
        %3444 = vmatpush1.msra.mxu0 %v3374
        %3445 = vmatprep.subr.mxu0 0.0
        %3446 = vmatpush1.msra.mxu0 %v3375
        %3447 = vmatprep.subr.mxu0 0.0
        %3448 = vmatpush1.msra.mxu0 %v3376
        %3449 = vmatprep.subr.mxu0 0.0
        %3450 = vmatpush1.msra.mxu0 0.0
        %3451 = vmatprep.subr.mxu0 0.0
        %3452 = vmatpush1.msra.mxu0 0.0
        %3453 = vmatprep.subr.mxu0 0.0
        %3454 = vmatpush1.msra.mxu0 0.0
        %3455 = vmatprep.subr.mxu0 0.0
        %3456 = vmatpush1.msra.mxu0 0.0
        %3457 = vmatprep.subr.mxu0 0.0
        %3458 = vmatpush1.msra.mxu0 0.0
        %3459 = vmatprep.subr.mxu0 0.0
        %3460 = vmatpush1.msra.mxu0 0.0
        %3461 = vmatprep.subr.mxu0 0.0
        %3462 = vmatpush1.msra.mxu0 0.0
        %3463 = vmatprep.subr.mxu0 0.0
        %3464 = vmatpush1.msra.mxu0 0.0
        %3465 = vmatprep.subr.mxu0 0.0
        %3466 = vmatpush1.msra.mxu0 0.0
        %3467 = vmatprep.subr.mxu0 0.0
        %3468 = vmatpush1.msra.mxu0 0.0
        %3469 = vmatprep.subr.mxu0 0.0
        %3470 = vmatpush1.msra.mxu0 0.0
        %3471 = vmatprep.subr.mxu0 0.0
        %3472 = vmatpush1.msra.mxu0 0.0
        %3473 = vmatprep.subr.mxu0 0.0
        %3474 = vmatpush1.msra.mxu0 0.0
        %3475 = vmatprep.subr.mxu0 0.0
        %3476 = vmatpush1.msra.mxu0 0.0
        %3477 = vmatprep.subr.mxu0 0.0
        %3478 = vmatpush1.msra.mxu0 0.0
        %3479 = vmatprep.subr.mxu0 0.0
        %3480 = vmatpush1.msra.mxu0 0.0
        %3481 = vmatprep.subr.mxu0 0.0
        %3482 = vmatpush1.msra.mxu0 0.0
        %3483 = vmatprep.subr.mxu0 0.0
        %3484 = vmatpush1.msra.mxu0 0.0
        %3485 = vmatprep.subr.mxu0 0.0
        %3486 = vmatpush1.msra.mxu0 0.0
        %3487 = vmatprep.subr.mxu0 0.0
        %3488 = vmatpush1.msra.mxu0 0.0
        %3489 = vmatprep.subr.mxu0 0.0
        %3490 = vmatpush1.msra.mxu0 0.0
        %3491 = vmatprep.subr.mxu0 0.0
        %3492 = vmatpush1.msra.mxu0 0.0
        %3493 = vmatprep.subr.mxu0 0.0
        %3494 = vmatpush1.msra.mxu0 0.0
        %3495 = vmatprep.subr.mxu0 0.0
        %3496 = vmatpush1.msra.mxu0 0.0
        %3497 = vmatprep.mubr.f32.mxu0 0.0
        %3498 = vmatmul.mubr.f32.gmra.mrb[0].mxu0 %v3386
        %v3499 = vpop.f32.mrb[0].mxu0
        %v3500 = vadd.f32 %v3382, %v3499
        %v3501 = vpop.f32.mrb[0].mxu0
        %3502 = vmatprep.mubr.f32.mxu0 0.0
        %3503 = vmatmul.mubr.f32.gmra.mrb[0].mxu0 %v3389
        %v3504 = vpop.f32.mrb[0].mxu0
        %v3505 = vadd.f32 %v3382, %v3504
        %v3506 = vpop.f32.mrb[0].mxu0
        %3507 = vmatprep.mubr.f32.mxu0 0.0
        %3508 = vmatmul.mubr.f32.gmra.mrb[0].mxu0 %v3392
        %v3509 = vpop.f32.mrb[0].mxu0
        %v3510 = vadd.f32 %v3382, %v3509
        %v3511 = vpop.f32.mrb[0].mxu0
        %3512 = vmatprep.mubr.f32.mxu0 0.0
        %3513 = vmatmul.mubr.f32.gmra.mrb[0].mxu0 %v3395
        %v3514 = vpop.f32.mrb[0].mxu0
        %v3515 = vadd.f32 %v3382, %v3514
        %v3516 = vpop.f32.mrb[0].mxu0
        %3517 = vmatprep.mubr.f32.mxu0 0.0
        %3518 = vmatmul.mubr.f32.gmra.mrb[0].mxu0 %v3398
        %v3519 = vpop.f32.mrb[0].mxu0
        %v3520 = vadd.f32 %v3382, %v3519
        %v3521 = vpop.f32.mrb[0].mxu0
        %3522 = vmatprep.mubr.f32.mxu0 0.0
        %3523 = vmatmul.mubr.f32.gmra.mrb[0].mxu0 %v3401
        %v3524 = vpop.f32.mrb[0].mxu0
        %v3525 = vadd.f32 %v3382, %v3524
        %v3526 = vpop.f32.mrb[0].mxu0
        %3527 = vmatprep.mubr.f32.mxu0 0.0
        %3528 = vmatmul.mubr.f32.gmra.mrb[0].mxu0 %v3404
        %v3529 = vpop.f32.mrb[0].mxu0
        %v3530 = vadd.f32 %v3382, %v3529
        %v3531 = vpop.f32.mrb[0].mxu0
        %3532 = vmatprep.mubr.f32.mxu0 0.0
        %3533 = vmatmul.mubr.f32.gmra.mrb[0].mxu0 %v3407
        %v3534 = vpop.f32.mrb[0].mxu0
        %v3535 = vadd.f32 %v3382, %v3534
        %v3536 = vpop.f32.mrb[0].mxu0
        %3537 = vmatprep.mubr.f32.mxu0 0.0
        %3538 = vmatmul.mubr.f32.gmra.mrb[0].mxu0 %v3410
        %v3539 = vpop.f32.mrb[0].mxu0
        %v3540 = vadd.f32 %v3382, %v3539
        %v3541 = vpop.f32.mrb[0].mxu0
        %3542 = vmatprep.mubr.f32.mxu0 0.0
        %3543 = vmatmul.mubr.f32.gmra.mrb[0].mxu0 %v3413
        %v3544 = vpop.f32.mrb[0].mxu0
        %v3545 = vadd.f32 %v3382, %v3544
        %v3546 = vpop.f32.mrb[0].mxu0
        %3547 = vmatprep.mubr.f32.mxu0 0.0
        %3548 = vmatmul.mubr.f32.gmra.mrb[0].mxu0 %v3416
        %v3549 = vpop.f32.mrb[0].mxu0
        %v3550 = vadd.f32 %v3382, %v3549
        %v3551 = vpop.f32.mrb[0].mxu0
        %3552 = vmatprep.mubr.f32.mxu0 0.0
        %3553 = vmatmul.mubr.f32.gmra.mrb[0].mxu0 %v3419
        %v3554 = vpop.f32.mrb[0].mxu0
        %v3555 = vadd.f32 %v3382, %v3554
        %v3556 = vpop.f32.mrb[0].mxu0
        %3557 = vmatprep.mubr.f32.mxu0 0.0
        %3558 = vmatmul.mubr.f32.gmra.mrb[0].mxu0 %v3422
        %v3559 = vpop.f32.mrb[0].mxu0
        %v3560 = vadd.f32 %v3382, %v3559
        %v3561 = vpop.f32.mrb[0].mxu0
        %3562 = vmatprep.mubr.f32.mxu0 0.0
        %3563 = vmatmul.mubr.f32.gmra.mrb[0].mxu0 %v3425
        %v3564 = vpop.f32.mrb[0].mxu0
        %v3565 = vadd.f32 %v3382, %v3564
        %v3566 = vpop.f32.mrb[0].mxu0
        %3567 = vmatprep.mubr.f32.mxu0 0.0
        %3568 = vmatmul.mubr.f32.gmra.mrb[0].mxu0 %v3428
        %v3569 = vpop.f32.mrb[0].mxu0
        %v3570 = vadd.f32 %v3382, %v3569
        %v3571 = vpop.f32.mrb[0].mxu0
        %3572 = vmatprep.mubr.f32.mxu0 0.0
        %3573 = vmatmul.mubr.f32.gmra.mrb[0].mxu0 %v3431
        %v3574 = vpop.f32.mrb[0].mxu0
        %v3575 = vadd.f32 %v3382, %v3574
        %v3576 = vpop.f32.mrb[0].mxu0
        %3577 = vdwg.mxu0
        %3578 = vst [vmem:[%s451] sm:$0xff] %v3500
        %3579 = vst [vmem:[%s451 + $0x8] sm:$0xff] %v3505
        %3580 = vst [vmem:[%s451 + $0x10] sm:$0xff] %v3510
        %3581 = vst [vmem:[%s451 + $0x18] sm:$0xff] %v3515
        %3582 = vst [vmem:[%s451 + $0x20] sm:$0xff] %v3520
        %3583 = vst [vmem:[%s451 + $0x28] sm:$0xff] %v3525
        %3584 = vst [vmem:[%s451 + $0x30] sm:$0xff] %v3530
        %3585 = vst [vmem:[%s451 + $0x38] sm:$0xff] %v3535
        %3586 = vst [vmem:[%s451 + $0x40] sm:$0xff] %v3540
        %3587 = vst [vmem:[%s451 + $0x48] sm:$0xff] %v3545
        %3588 = vst [vmem:[%s451 + $0x50] sm:$0xff] %v3550
        %3589 = vst [vmem:[%s451 + $0x58] sm:$0xff] %v3555
        %3590 = vst [vmem:[%s451 + $0x60] sm:$0xff] %v3560
        %3591 = vst [vmem:[%s451 + $0x68] sm:$0xff] %v3565
        %3592 = vst [vmem:[%s451 + $0x70] sm:$0xff] %v3570
        %3593 = vst [vmem:[%s451 + $0x78] sm:$0xff] %v3575
        %s3594 = sand.u32 %s314, 1
        %s3595 = scalar_lea.sflag [#allocation4], %s3594
        %s3596 = sand.u32 %s314, 1
        %s3597 = smul.addr %s3596, 128
        %s3598 = scalar_lea.vmem [#allocation5], %s3597
        // Predicated region
        $region77: #{tpu_custom_call.1} parent=71 // pred_check
          %p3599 = pneg %p324
        $region78: #{tpu_custom_call.1} parent=71 // pred_check_branch
          %3601 = sbr.rel (%p3599) target = $region80
        $region79: #{tpu_custom_call.1} parent=71 // pred_region
          %s3602 = smul.u32 16, %s28
          %s3604 = ssub.s32 2048, 2048
          %3605 = vsyncadd %s3595, %s3604
          %s3606 = smul.addr %s3602, 128
          %s3607 = scalar_lea.hbm %s13, %s3606
          %s3608 = sshll.u32 %s3598, 4
          %s3609 = int_to_ptr.vmem [resolvable:$true] %s3608
          %3614 = dma.vmem_to_hbm [thread:$0]  %s3609, 2048, %s3607, %s3595, 128, 128, 8
        $region80: #{tpu_custom_call.1} parent=71 // pred_fallthru
          _
      $region72: #{tpu_custom_call.1} parent=5 // pred_fallthru
        _
      %p3615 = scmp.le.s32.totalorder 2, %s23
      // Predicated region
      $region81: #{tpu_custom_call.1} parent=5 // pred_check
        %p3616 = pneg %p3615
      $region82: #{tpu_custom_call.1} parent=5 // pred_check_branch
        %3618 = sbr.rel (%p3616) target = $region84
      $region83: #{tpu_custom_call.1} parent=5 // pred_region
        %s3619 = ssub.s32 %s23, 2
        // Predicated region
        $region85: #{tpu_custom_call.1} parent=83 // pred_check
          %p3620 = pneg %p330
        $region86: #{tpu_custom_call.1} parent=83 // pred_check_branch
          %3622 = sbr.rel (%p3620) target = $region88
        $region87: #{tpu_custom_call.1} parent=83 // pred_region
          %s3623 = sand.u32 %s315, 1
          %s3624 = scalar_lea.sflag [#allocation4], %s3623
          %s3625 = sand.u32 %s315, 1
          %s3626 = smul.addr %s3625, 128
          %s3627 = scalar_lea.vmem [#allocation5], %s3626
          %3628 = dma.done %s3624, 2048
        $region88: #{tpu_custom_call.1} parent=83 // pred_fallthru
          _
      $region84: #{tpu_custom_call.1} parent=5 // pred_fallthru
        _
    $region6: #{tpu_custom_call.1} parent=1 // loop_footer
      %s27 = sadd.s32 1, %s23
    $region7: #{tpu_custom_call.1} parent=1 // loop_footer_branch
      %22 = sbr.rel target = $region3
    $region8: #{tpu_custom_call.1} parent=1 // loop_exit
      _
    %3629 = vsyncpa [#allocation3], 1
    %s3630 = scalar_lea.sflag [#allocation3], 1
    %3631 = vsyncpa %s3630, 1
    %3632 = vsyncpa [#allocation4], 1
    %s3633 = scalar_lea.sflag [#allocation4], 1
    %3634 = vsyncpa %s3633, 1

</llo_original>
